<compile_context>
chip_gen: v6e
topology: v6e:2x2x1
jax: 0.10.0
libtpu: 0.0.40
codegen_flags: <defaults>
</compile_context>

<pallas_src>
import math

import numpy as np

import jax
import jax.numpy as jnp
from jax.experimental import pallas as pl
from jax.experimental.pallas import tpu as pltpu

_LANES = 128  # TPU lane width; channel dims are zero-padded to this.


# --------------------------------------------------------------------------- #
# Fused Pallas kernel body (one image per grid step)
# --------------------------------------------------------------------------- #
def _make_kernel(layer_meta):
    """layer_meta: tuple of (H_in, W_in, downsample) per conv layer.

    Layer 0 consumes a lane/K-packed (im2col-lite) input and is a single MXU
    dot. Deeper layers do conv3x3 as 9 shifted taps: XLU sublane roll + VPU
    select border mask + bf16 MXU dot accumulated in f32.
    """
    num_layers = len(layer_meta)

    def kernel(*refs):
        o_ref = refs[-1]
        wl_ref, bl_ref = refs[-3], refs[-2]
        C = _LANES
        idx = 1

        # ---- Layer 0: taps pre-packed into lanes/K by the wrapper -> 1 dot. --
        w_ref, b_ref = refs[idx], refs[idx + 1]
        idx += 2
        acc = jnp.dot(refs[0][0], w_ref[...],                  # (H*W, C) f32
                      preferred_element_type=jnp.float32)
        acc = jnp.maximum(acc + b_ref[...], 0.0)               # bias + ReLU
        if layer_meta[0][2]:                                   # static skip
            acc = jnp.dot(refs[idx][...], acc.astype(jnp.bfloat16),
                          preferred_element_type=jnp.float32)  # 2x2 avg pool
            idx += 1

        # ---- Layers 1..: 9 shifted taps (roll + select + bf16 MXU dot). -----
        for l in range(1, num_layers):
            H, W, ds = layer_meta[l]
            M = H * W
            w_ref, b_ref = refs[idx], refs[idx + 1]
            idx += 2
            # (y, x) decode of the per-image flat row index (H, W powers of 2).
            m = jax.lax.broadcasted_iota(jnp.int32, (M, 1), 0)
            xw = m & (W - 1)
            yh = m >> (W.bit_length() - 1)
            h = acc                                            # (M, C) f32 slab
            acc = jnp.broadcast_to(b_ref[...], (M, C))         # bias as acc init
            t = 0
            for dy in (-1, 0, 1):
                for dx in (-1, 0, 1):
                    if dy == 0 and dx == 0:
                        hs = h
                    else:
                        # Neighbour (y+dy, x+dx) lives at flat offset dy*W+dx:
                        # XLU sublane rotation + border select (no multiply).
                        hs = pltpu.roll(h, (-(dy * W + dx)) % M, axis=0)
                        valid = ((yh + dy >= 0) & (yh + dy < H) &
                                 (xw + dx >= 0) & (xw + dx < W))
                        hs = jnp.where(valid, hs, 0.0)
                    acc = acc + jnp.dot(hs.astype(jnp.bfloat16), w_ref[t],
                                        preferred_element_type=jnp.float32)
                    t += 1
            acc = jnp.maximum(acc, 0.0)                        # ReLU
            if ds:                                             # static skip
                acc = jnp.dot(refs[idx][...], acc.astype(jnp.bfloat16),
                              preferred_element_type=jnp.float32)
                idx += 1

        # ---- Head: global average pool -> Linear(C, 1) -> sigmoid. ----------
        pooled = jnp.mean(acc, axis=0, keepdims=True)          # (1, C) f32
        logit = jnp.sum(pooled * wl_ref[...], axis=1, keepdims=True) + bl_ref[...]
        pos = logit >= 0.0
        z = jnp.exp(jnp.where(pos, -logit, logit))             # stable sigmoid
        o_ref[...] = jnp.where(pos, 1.0 / (1.0 + z), z / (1.0 + z)).reshape(o_ref.shape)

    return kernel


# --------------------------------------------------------------------------- #
# Wrapper glue: operand packing (constants), layout conversion, pallas_call
# --------------------------------------------------------------------------- #
def _const_spec(shape):
    zeros = (0,) * len(shape)
    return pl.BlockSpec(shape, lambda n, _z=zeros: _z)


def _prep_conv_weight_taps(w_oihw, b, C):
    """(Cout, Cin, 3, 3) -> (9, C, C) bf16 tap-major weights, (1, C) f32 bias."""
    Cout, Cin, KH, KW = w_oihw.shape
    wt = jnp.transpose(w_oihw, (2, 3, 1, 0))                    # (ky,kx,Cin,Cout)
    wt = jnp.pad(wt, ((0, 0), (0, 0), (0, C - Cin), (0, C - Cout)))
    wt = wt.reshape(KH * KW, C, C).astype(jnp.bfloat16)
    bt = jnp.pad(b, (0, C - Cout)).reshape(1, C).astype(jnp.float32)
    return wt, bt


def _prep_conv_weight_packed(w_oihw, b, C):
    """Layer-0 weight with the 9 taps packed along K: (C, C) bf16, (1, C) bias."""
    Cout, Cin, KH, KW = w_oihw.shape
    wt = jnp.transpose(w_oihw, (2, 3, 1, 0)).reshape(KH * KW * Cin, Cout)
    wt = jnp.pad(wt, ((0, C - KH * KW * Cin), (0, C - Cout))).astype(jnp.bfloat16)
    bt = jnp.pad(b, (0, C - Cout)).reshape(1, C).astype(jnp.float32)
    return wt, bt


def _pool_matrix(H, W):
    """Per-image avg_pool2d(2) as a constant (Ho*Wo, H*W) bf16 left matrix."""
    Ho, Wo = H // 2, W // 2
    P = np.zeros((Ho * Wo, H * W), np.float32)
    for yo in range(Ho):
        for xo in range(Wo):
            mo = yo * Wo + xo
            for dy in range(2):
                for dx in range(2):
                    P[mo, (2 * yo + dy) * W + 2 * xo + dx] = 0.25
    return jnp.asarray(P, dtype=jnp.bfloat16), Ho, Wo


def _pack_layer0_input(x_nchw, C):
    """NCHW input -> (N, H*W, 128) bf16 slab with the 9 conv taps packed into lanes."""
    N, Cin, H, W = x_nchw.shape
    x = jnp.transpose(x_nchw, (0, 2, 3, 1)).astype(jnp.float32)     # NHWC
    xp = jnp.pad(x, ((0, 0), (1, 1), (1, 1), (0, 0)))               # spatial zero pad
    taps = [xp[:, 1 + dy:1 + dy + H, 1 + dx:1 + dx + W, :]
            for dy in (-1, 0, 1) for dx in (-1, 0, 1)]              # tap value in[y+dy, x+dx]
    xk = jnp.concatenate(taps, axis=-1)                             # (N, H, W, 9*Cin)
    xk = jnp.pad(xk, ((0, 0), (0, 0), (0, 0), (0, C - 9 * Cin)))
    return xk.reshape(N, H * W, C).astype(jnp.bfloat16)


def cgan_discriminator_forward(x_nchw, params, downsample=(True, True, True)):
    """Forward pass matching CGAN_Discriminator.forward(x) with num_classes=0."""
    N, Cin, H, W = x_nchw.shape
    C = _LANES
    layers = params["layers"]
    num_layers = len(layers)
    if 9 * Cin > C:
        raise ValueError("layer-0 tap packing requires 9*in_channels <= 128")
    if any(wb[0].shape[0] > C for wb in layers):
        raise ValueError("channel counts must be <= 128 for this kernel")

    # TODO(synk): fold this NCHW -> lane-packed layout conversion into the kernel
    # (ANY/HBM ref + in-kernel DMA) if input sizes ever make it the dominant HBM traffic.
    x_packed = _pack_layer0_input(x_nchw, C)                        # (N, H*W, 128) bf16

    operands = [x_packed]
    in_specs = [pl.BlockSpec((1, H * W, C), lambda n: (n, 0, 0))]
    layer_meta = []
    h_dim, w_dim = H, W
    for l, ((w, b), ds) in enumerate(zip(layers, downsample)):
        if l == 0:
            wk, bk = _prep_conv_weight_packed(w, b, C)
        else:
            if (h_dim & (h_dim - 1)) or (w_dim & (w_dim - 1)):
                raise ValueError("in-kernel border masks require power-of-two H, W")
            wk, bk = _prep_conv_weight_taps(w, b, C)
        operands += [wk, bk]
        in_specs += [_const_spec(wk.shape), _const_spec(bk.shape)]
        layer_meta.append((h_dim, w_dim, bool(ds)))
        if ds:
            pm, h_dim, w_dim = _pool_matrix(h_dim, w_dim)
            operands.append(pm)
            in_specs.append(_const_spec(pm.shape))

    wl = params["linear_w"].astype(jnp.float32)
    wl = jnp.pad(wl, ((0, 0), (0, C - wl.shape[1])))                # (1, C)
    bl = params["linear_b"].reshape(1, 1).astype(jnp.float32)
    operands += [wl, bl]
    in_specs += [_const_spec(wl.shape), _const_spec(bl.shape)]

    kernel = _make_kernel(tuple(layer_meta))
    out = pl.pallas_call(
        kernel,
        grid=(N,),
        in_specs=in_specs,
        out_specs=pl.BlockSpec((1, 1, 1), lambda n: (n, 0, 0)),
        out_shape=jax.ShapeDtypeStruct((N, 1, 1), jnp.float32),
        compiler_params=pltpu.CompilerParams(
            dimension_semantics=("parallel",),
            vmem_limit_bytes=32 * 1024 * 1024),
    )(*operands)
    # TODO(synk): label-conditional projection (self.l_y embedding, used when
    # num_classes > 0 and y is not None) is not implemented; this instance has
    # num_classes=0 so the reference forward never takes that branch.
    return out.reshape(N, 1)


# --------------------------------------------------------------------------- #
# Parameter setup (deterministic, mimics the PyTorch module's __init__)
# --------------------------------------------------------------------------- #
def spectral_normalize(w_oihw, key, n_power_iterations=1, eps=1e-12):
    """Mimics torch.nn.utils.spectral_norm: one power iteration, W / sigma."""
    cout = w_oihw.shape[0]
    w_mat = w_oihw.reshape(cout, -1)
    u = jax.random.normal(key, (cout,), jnp.float32)
    u = u / (jnp.linalg.norm(u) + eps)
    v = None
    for _ in range(n_power_iterations):
        v = w_mat.T @ u
        v = v / (jnp.linalg.norm(v) + eps)
        u = w_mat @ v
        u = u / (jnp.linalg.norm(u) + eps)
    sigma = u @ (w_mat @ v)
    return w_oihw / sigma


def init_params(key, in_channels, num_layers=3, sn=True):
    layers = []
    channels = 32
    cin = in_channels
    for i in range(num_layers):
        cout = channels if i == 0 else channels * 2
        if i > 0:
            channels = cout
        key, kw, kb, ku = jax.random.split(key, 4)
        w = 0.01 * jax.random.normal(kw, (cout, cin, 3, 3), jnp.float32)  # normal_(0, 0.01)
        bound = 1.0 / math.sqrt(cin * 9)
        b = jax.random.uniform(kb, (cout,), jnp.float32, -bound, bound)
        if sn:
            w = spectral_normalize(w, ku)
        layers.append((w, b))
        cin = cout
    key, kw, kb = jax.random.split(key, 3)
    bound = 1.0 / math.sqrt(channels)
    w_lin = jax.random.uniform(kw, (1, channels), jnp.float32, -bound, bound)
    b_lin = jax.random.uniform(kb, (1,), jnp.float32, -bound, bound)
    return {"layers": layers, "linear_w": w_lin, "linear_b": b_lin}


if __name__ == "__main__":
    key = jax.random.PRNGKey(0)
    kx, kp = jax.random.split(key)
    x = jax.random.normal(kx, (2, 4, 16, 16), jnp.float32)  # NCHW, in_channels=4
    params = init_params(kp, in_channels=4, num_layers=3, sn=True)

    fwd = jax.jit(cgan_discriminator_forward)
    out = jax.block_until_ready(fwd(x, params))

    assert out.shape == (2, 1), out.shape
    assert bool(jnp.all(jnp.isfinite(out)))
    assert bool(jnp.all((out >= 0.0) & (out <= 1.0)))
    print("KERNEL_OK")
</pallas_src>

<mosaic_0001>
module attributes {stable_mosaic.version = 11 : i64} {
  func.func @kernel(%arg0: i32, %arg1: memref<1x256x128xbf16, #tpu.memory_space<vmem>>, %arg2: memref<128x128xbf16, #tpu.memory_space<vmem>>, %arg3: memref<1x128xf32, #tpu.memory_space<vmem>>, %arg4: memref<64x256xbf16, #tpu.memory_space<vmem>>, %arg5: memref<9x128x128xbf16, #tpu.memory_space<vmem>>, %arg6: memref<1x128xf32, #tpu.memory_space<vmem>>, %arg7: memref<16x64xbf16, #tpu.memory_space<vmem>>, %arg8: memref<9x128x128xbf16, #tpu.memory_space<vmem>>, %arg9: memref<1x128xf32, #tpu.memory_space<vmem>>, %arg10: memref<4x16xbf16, #tpu.memory_space<vmem>>, %arg11: memref<1x128xf32, #tpu.memory_space<vmem>>, %arg12: memref<1x1xf32, #tpu.memory_space<vmem>>, %arg13: memref<1x1x1xf32, #tpu.memory_space<vmem>>) attributes {dimension_semantics = [#tpu.dimension_semantics<parallel>], iteration_bounds = array<i64: 2>, scalar_prefetch = 0 : i64, scratch_operands = 0 : i64, tpu.core_type = #tpu.core_type<tc>, window_params = [{transform_indices = @transform_0, window_bounds = array<i64: 1, 256, 128>}, {pipeline_mode = #tpu.pipeline_mode<synchronous>, transform_indices = @transform_1, window_bounds = array<i64: 128, 128>}, {pipeline_mode = #tpu.pipeline_mode<synchronous>, transform_indices = @transform_2, window_bounds = array<i64: 1, 128>}, {pipeline_mode = #tpu.pipeline_mode<synchronous>, transform_indices = @transform_3, window_bounds = array<i64: 64, 256>}, {pipeline_mode = #tpu.pipeline_mode<synchronous>, transform_indices = @transform_4, window_bounds = array<i64: 9, 128, 128>}, {pipeline_mode = #tpu.pipeline_mode<synchronous>, transform_indices = @transform_5, window_bounds = array<i64: 1, 128>}, {pipeline_mode = #tpu.pipeline_mode<synchronous>, transform_indices = @transform_6, window_bounds = array<i64: 16, 64>}, {pipeline_mode = #tpu.pipeline_mode<synchronous>, transform_indices = @transform_7, window_bounds = array<i64: 9, 128, 128>}, {pipeline_mode = #tpu.pipeline_mode<synchronous>, transform_indices = @transform_8, window_bounds = array<i64: 1, 128>}, {pipeline_mode = #tpu.pipeline_mode<synchronous>, transform_indices = @transform_9, window_bounds = array<i64: 4, 16>}, {pipeline_mode = #tpu.pipeline_mode<synchronous>, transform_indices = @transform_10, window_bounds = array<i64: 1, 128>}, {pipeline_mode = #tpu.pipeline_mode<synchronous>, transform_indices = @transform_11, window_bounds = array<i64: 1, 1>}, {transform_indices = @transform_12, window_bounds = array<i64: 1, 1, 1>}]} {
    %c0 = arith.constant 0 : index
    %c0_0 = arith.constant 0 : index
    %c0_1 = arith.constant 0 : index
    %0 = vector.load %arg1[%c0, %c0_0, %c0_1] : memref<1x256x128xbf16, #tpu.memory_space<vmem>>, vector<1x256x128xbf16>
    %1 = vector.shape_cast %0 : vector<1x256x128xbf16> to vector<256x128xbf16>
    %c0_2 = arith.constant 0 : index
    %c0_3 = arith.constant 0 : index
    %2 = vector.load %arg2[%c0_2, %c0_3] : memref<128x128xbf16, #tpu.memory_space<vmem>>, vector<128x128xbf16>
    %cst = arith.constant dense<0.000000e+00> : vector<256x128xf32>
    %3 = tpu.matmul %1, %2, %cst {dimension_numbers = #tpu.dot_dimension_numbers<[1], [0], [0], [1], [0, 0, 1, 1], [], []>} : vector<256x128xbf16>, vector<128x128xbf16>, vector<256x128xf32> -> vector<256x128xf32>
    %c0_4 = arith.constant 0 : index
    %c0_5 = arith.constant 0 : index
    %4 = vector.load %arg3[%c0_4, %c0_5] : memref<1x128xf32, #tpu.memory_space<vmem>>, vector<1x128xf32>
    %5 = vector.broadcast %4 : vector<1x128xf32> to vector<256x128xf32>
    %6 = arith.addf %3, %5 : vector<256x128xf32>
    %cst_6 = arith.constant 0.000000e+00 : f32
    %7 = vector.broadcast %cst_6 : f32 to vector<256x128xf32>
    %8 = arith.maximumf %6, %7 : vector<256x128xf32>
    %c0_7 = arith.constant 0 : index
    %c0_8 = arith.constant 0 : index
    %9 = vector.load %arg4[%c0_7, %c0_8] : memref<64x256xbf16, #tpu.memory_space<vmem>>, vector<64x256xbf16>
    %10 = arith.truncf %8 : vector<256x128xf32> to vector<256x128xbf16>
    %cst_9 = arith.constant dense<0.000000e+00> : vector<64x128xf32>
    %11 = tpu.matmul %9, %10, %cst_9 {dimension_numbers = #tpu.dot_dimension_numbers<[1], [0], [0], [1], [0, 0, 1, 1], [], []>} : vector<64x256xbf16>, vector<256x128xbf16>, vector<64x128xf32> -> vector<64x128xf32>
    %12 = tpu.iota {dimensions = array<i32: 0>} : vector<64x1xi32>
    %c7_i32 = arith.constant 7 : i32
    %13 = vector.broadcast %c7_i32 : i32 to vector<64x1xi32>
    %14 = arith.andi %12, %13 : vector<64x1xi32>
    %c3_i32 = arith.constant 3 : i32
    %15 = vector.broadcast %c3_i32 : i32 to vector<64x1xi32>
    %16 = arith.shrsi %12, %15 : vector<64x1xi32>
    %c0_10 = arith.constant 0 : index
    %c0_11 = arith.constant 0 : index
    %17 = vector.load %arg6[%c0_10, %c0_11] : memref<1x128xf32, #tpu.memory_space<vmem>>, vector<1x128xf32>
    %18 = vector.shape_cast %17 : vector<1x128xf32> to vector<1x128xf32>
    %19 = vector.broadcast %18 : vector<1x128xf32> to vector<64x128xf32>
    %c9_i32 = arith.constant 9 : i32
    %20 = tpu.dynamic_rotate %11 by %c9_i32 dim 0 : vector<64x128xf32>, i32 -> vector<64x128xf32>
    %c-1_i32 = arith.constant -1 : i32
    %21 = vector.broadcast %c-1_i32 : i32 to vector<64x1xi32>
    %22 = arith.addi %16, %21 : vector<64x1xi32>
    %c0_i32 = arith.constant 0 : i32
    %23 = vector.broadcast %c0_i32 : i32 to vector<64x1xi32>
    %24 = arith.cmpi sge, %22, %23 : vector<64x1xi32>
    %c-1_i32_12 = arith.constant -1 : i32
    %25 = vector.broadcast %c-1_i32_12 : i32 to vector<64x1xi32>
    %26 = arith.addi %16, %25 : vector<64x1xi32>
    %c8_i32 = arith.constant 8 : i32
    %27 = vector.broadcast %c8_i32 : i32 to vector<64x1xi32>
    %28 = arith.cmpi slt, %26, %27 : vector<64x1xi32>
    %29 = arith.andi %24, %28 : vector<64x1xi1>
    %c-1_i32_13 = arith.constant -1 : i32
    %30 = vector.broadcast %c-1_i32_13 : i32 to vector<64x1xi32>
    %31 = arith.addi %14, %30 : vector<64x1xi32>
    %c0_i32_14 = arith.constant 0 : i32
    %32 = vector.broadcast %c0_i32_14 : i32 to vector<64x1xi32>
    %33 = arith.cmpi sge, %31, %32 : vector<64x1xi32>
    %34 = arith.andi %29, %33 : vector<64x1xi1>
    %c-1_i32_15 = arith.constant -1 : i32
    %35 = vector.broadcast %c-1_i32_15 : i32 to vector<64x1xi32>
    %36 = arith.addi %14, %35 : vector<64x1xi32>
    %c8_i32_16 = arith.constant 8 : i32
    %37 = vector.broadcast %c8_i32_16 : i32 to vector<64x1xi32>
    %38 = arith.cmpi slt, %36, %37 : vector<64x1xi32>
    %39 = arith.andi %34, %38 : vector<64x1xi1>
    %cst_17 = arith.constant 0.000000e+00 : f32
    %40 = vector.shape_cast %39 : vector<64x1xi1> to vector<64x1xi1>
    %41 = vector.broadcast %40 : vector<64x1xi1> to vector<64x128xi1>
    %42 = vector.broadcast %cst_17 : f32 to vector<64x128xf32>
    %43 = arith.select %41, %20, %42 : vector<64x128xi1>, vector<64x128xf32>
    %44 = arith.truncf %43 : vector<64x128xf32> to vector<64x128xbf16>
    %c0_18 = arith.constant 0 : index
    %c0_19 = arith.constant 0 : index
    %c0_20 = arith.constant 0 : index
    %45 = vector.load %arg5[%c0_18, %c0_19, %c0_20] : memref<9x128x128xbf16, #tpu.memory_space<vmem>>, vector<1x128x128xbf16>
    %46 = vector.shape_cast %45 : vector<1x128x128xbf16> to vector<128x128xbf16>
    %cst_21 = arith.constant dense<0.000000e+00> : vector<64x128xf32>
    %47 = tpu.matmul %44, %46, %cst_21 {dimension_numbers = #tpu.dot_dimension_numbers<[1], [0], [0], [1], [0, 0, 1, 1], [], []>} : vector<64x128xbf16>, vector<128x128xbf16>, vector<64x128xf32> -> vector<64x128xf32>
    %48 = arith.addf %19, %47 : vector<64x128xf32>
    %c8_i32_22 = arith.constant 8 : i32
    %49 = tpu.dynamic_rotate %11 by %c8_i32_22 dim 0 : vector<64x128xf32>, i32 -> vector<64x128xf32>
    %c-1_i32_23 = arith.constant -1 : i32
    %50 = vector.broadcast %c-1_i32_23 : i32 to vector<64x1xi32>
    %51 = arith.addi %16, %50 : vector<64x1xi32>
    %c0_i32_24 = arith.constant 0 : i32
    %52 = vector.broadcast %c0_i32_24 : i32 to vector<64x1xi32>
    %53 = arith.cmpi sge, %51, %52 : vector<64x1xi32>
    %c-1_i32_25 = arith.constant -1 : i32
    %54 = vector.broadcast %c-1_i32_25 : i32 to vector<64x1xi32>
    %55 = arith.addi %16, %54 : vector<64x1xi32>
    %c8_i32_26 = arith.constant 8 : i32
    %56 = vector.broadcast %c8_i32_26 : i32 to vector<64x1xi32>
    %57 = arith.cmpi slt, %55, %56 : vector<64x1xi32>
    %58 = arith.andi %53, %57 : vector<64x1xi1>
    %c0_i32_27 = arith.constant 0 : i32
    %59 = vector.broadcast %c0_i32_27 : i32 to vector<64x1xi32>
    %60 = arith.addi %14, %59 : vector<64x1xi32>
    %c0_i32_28 = arith.constant 0 : i32
    %61 = vector.broadcast %c0_i32_28 : i32 to vector<64x1xi32>
    %62 = arith.cmpi sge, %60, %61 : vector<64x1xi32>
    %63 = arith.andi %58, %62 : vector<64x1xi1>
    %c0_i32_29 = arith.constant 0 : i32
    %64 = vector.broadcast %c0_i32_29 : i32 to vector<64x1xi32>
    %65 = arith.addi %14, %64 : vector<64x1xi32>
    %c8_i32_30 = arith.constant 8 : i32
    %66 = vector.broadcast %c8_i32_30 : i32 to vector<64x1xi32>
    %67 = arith.cmpi slt, %65, %66 : vector<64x1xi32>
    %68 = arith.andi %63, %67 : vector<64x1xi1>
    %cst_31 = arith.constant 0.000000e+00 : f32
    %69 = vector.shape_cast %68 : vector<64x1xi1> to vector<64x1xi1>
    %70 = vector.broadcast %69 : vector<64x1xi1> to vector<64x128xi1>
    %71 = vector.broadcast %cst_31 : f32 to vector<64x128xf32>
    %72 = arith.select %70, %49, %71 : vector<64x128xi1>, vector<64x128xf32>
    %73 = arith.truncf %72 : vector<64x128xf32> to vector<64x128xbf16>
    %c1 = arith.constant 1 : index
    %c0_32 = arith.constant 0 : index
    %c0_33 = arith.constant 0 : index
    %74 = vector.load %arg5[%c1, %c0_32, %c0_33] : memref<9x128x128xbf16, #tpu.memory_space<vmem>>, vector<1x128x128xbf16>
    %75 = vector.shape_cast %74 : vector<1x128x128xbf16> to vector<128x128xbf16>
    %cst_34 = arith.constant dense<0.000000e+00> : vector<64x128xf32>
    %76 = tpu.matmul %73, %75, %cst_34 {dimension_numbers = #tpu.dot_dimension_numbers<[1], [0], [0], [1], [0, 0, 1, 1], [], []>} : vector<64x128xbf16>, vector<128x128xbf16>, vector<64x128xf32> -> vector<64x128xf32>
    %77 = arith.addf %48, %76 : vector<64x128xf32>
    %c7_i32_35 = arith.constant 7 : i32
    %78 = tpu.dynamic_rotate %11 by %c7_i32_35 dim 0 : vector<64x128xf32>, i32 -> vector<64x128xf32>
    %c-1_i32_36 = arith.constant -1 : i32
    %79 = vector.broadcast %c-1_i32_36 : i32 to vector<64x1xi32>
    %80 = arith.addi %16, %79 : vector<64x1xi32>
    %c0_i32_37 = arith.constant 0 : i32
    %81 = vector.broadcast %c0_i32_37 : i32 to vector<64x1xi32>
    %82 = arith.cmpi sge, %80, %81 : vector<64x1xi32>
    %c-1_i32_38 = arith.constant -1 : i32
    %83 = vector.broadcast %c-1_i32_38 : i32 to vector<64x1xi32>
    %84 = arith.addi %16, %83 : vector<64x1xi32>
    %c8_i32_39 = arith.constant 8 : i32
    %85 = vector.broadcast %c8_i32_39 : i32 to vector<64x1xi32>
    %86 = arith.cmpi slt, %84, %85 : vector<64x1xi32>
    %87 = arith.andi %82, %86 : vector<64x1xi1>
    %c1_i32 = arith.constant 1 : i32
    %88 = vector.broadcast %c1_i32 : i32 to vector<64x1xi32>
    %89 = arith.addi %14, %88 : vector<64x1xi32>
    %c0_i32_40 = arith.constant 0 : i32
    %90 = vector.broadcast %c0_i32_40 : i32 to vector<64x1xi32>
    %91 = arith.cmpi sge, %89, %90 : vector<64x1xi32>
    %92 = arith.andi %87, %91 : vector<64x1xi1>
    %c1_i32_41 = arith.constant 1 : i32
    %93 = vector.broadcast %c1_i32_41 : i32 to vector<64x1xi32>
    %94 = arith.addi %14, %93 : vector<64x1xi32>
    %c8_i32_42 = arith.constant 8 : i32
    %95 = vector.broadcast %c8_i32_42 : i32 to vector<64x1xi32>
    %96 = arith.cmpi slt, %94, %95 : vector<64x1xi32>
    %97 = arith.andi %92, %96 : vector<64x1xi1>
    %cst_43 = arith.constant 0.000000e+00 : f32
    %98 = vector.shape_cast %97 : vector<64x1xi1> to vector<64x1xi1>
    %99 = vector.broadcast %98 : vector<64x1xi1> to vector<64x128xi1>
    %100 = vector.broadcast %cst_43 : f32 to vector<64x128xf32>
    %101 = arith.select %99, %78, %100 : vector<64x128xi1>, vector<64x128xf32>
    %102 = arith.truncf %101 : vector<64x128xf32> to vector<64x128xbf16>
    %c2 = arith.constant 2 : index
    %c0_44 = arith.constant 0 : index
    %c0_45 = arith.constant 0 : index
    %103 = vector.load %arg5[%c2, %c0_44, %c0_45] : memref<9x128x128xbf16, #tpu.memory_space<vmem>>, vector<1x128x128xbf16>
    %104 = vector.shape_cast %103 : vector<1x128x128xbf16> to vector<128x128xbf16>
    %cst_46 = arith.constant dense<0.000000e+00> : vector<64x128xf32>
    %105 = tpu.matmul %102, %104, %cst_46 {dimension_numbers = #tpu.dot_dimension_numbers<[1], [0], [0], [1], [0, 0, 1, 1], [], []>} : vector<64x128xbf16>, vector<128x128xbf16>, vector<64x128xf32> -> vector<64x128xf32>
    %106 = arith.addf %77, %105 : vector<64x128xf32>
    %c1_i32_47 = arith.constant 1 : i32
    %107 = tpu.dynamic_rotate %11 by %c1_i32_47 dim 0 : vector<64x128xf32>, i32 -> vector<64x128xf32>
    %c0_i32_48 = arith.constant 0 : i32
    %108 = vector.broadcast %c0_i32_48 : i32 to vector<64x1xi32>
    %109 = arith.addi %16, %108 : vector<64x1xi32>
    %c0_i32_49 = arith.constant 0 : i32
    %110 = vector.broadcast %c0_i32_49 : i32 to vector<64x1xi32>
    %111 = arith.cmpi sge, %109, %110 : vector<64x1xi32>
    %c0_i32_50 = arith.constant 0 : i32
    %112 = vector.broadcast %c0_i32_50 : i32 to vector<64x1xi32>
    %113 = arith.addi %16, %112 : vector<64x1xi32>
    %c8_i32_51 = arith.constant 8 : i32
    %114 = vector.broadcast %c8_i32_51 : i32 to vector<64x1xi32>
    %115 = arith.cmpi slt, %113, %114 : vector<64x1xi32>
    %116 = arith.andi %111, %115 : vector<64x1xi1>
    %c-1_i32_52 = arith.constant -1 : i32
    %117 = vector.broadcast %c-1_i32_52 : i32 to vector<64x1xi32>
    %118 = arith.addi %14, %117 : vector<64x1xi32>
    %c0_i32_53 = arith.constant 0 : i32
    %119 = vector.broadcast %c0_i32_53 : i32 to vector<64x1xi32>
    %120 = arith.cmpi sge, %118, %119 : vector<64x1xi32>
    %121 = arith.andi %116, %120 : vector<64x1xi1>
    %c-1_i32_54 = arith.constant -1 : i32
    %122 = vector.broadcast %c-1_i32_54 : i32 to vector<64x1xi32>
    %123 = arith.addi %14, %122 : vector<64x1xi32>
    %c8_i32_55 = arith.constant 8 : i32
    %124 = vector.broadcast %c8_i32_55 : i32 to vector<64x1xi32>
    %125 = arith.cmpi slt, %123, %124 : vector<64x1xi32>
    %126 = arith.andi %121, %125 : vector<64x1xi1>
    %cst_56 = arith.constant 0.000000e+00 : f32
    %127 = vector.shape_cast %126 : vector<64x1xi1> to vector<64x1xi1>
    %128 = vector.broadcast %127 : vector<64x1xi1> to vector<64x128xi1>
    %129 = vector.broadcast %cst_56 : f32 to vector<64x128xf32>
    %130 = arith.select %128, %107, %129 : vector<64x128xi1>, vector<64x128xf32>
    %131 = arith.truncf %130 : vector<64x128xf32> to vector<64x128xbf16>
    %c3 = arith.constant 3 : index
    %c0_57 = arith.constant 0 : index
    %c0_58 = arith.constant 0 : index
    %132 = vector.load %arg5[%c3, %c0_57, %c0_58] : memref<9x128x128xbf16, #tpu.memory_space<vmem>>, vector<1x128x128xbf16>
    %133 = vector.shape_cast %132 : vector<1x128x128xbf16> to vector<128x128xbf16>
    %cst_59 = arith.constant dense<0.000000e+00> : vector<64x128xf32>
    %134 = tpu.matmul %131, %133, %cst_59 {dimension_numbers = #tpu.dot_dimension_numbers<[1], [0], [0], [1], [0, 0, 1, 1], [], []>} : vector<64x128xbf16>, vector<128x128xbf16>, vector<64x128xf32> -> vector<64x128xf32>
    %135 = arith.addf %106, %134 : vector<64x128xf32>
    %136 = arith.truncf %11 : vector<64x128xf32> to vector<64x128xbf16>
    %c4 = arith.constant 4 : index
    %c0_60 = arith.constant 0 : index
    %c0_61 = arith.constant 0 : index
    %137 = vector.load %arg5[%c4, %c0_60, %c0_61] : memref<9x128x128xbf16, #tpu.memory_space<vmem>>, vector<1x128x128xbf16>
    %138 = vector.shape_cast %137 : vector<1x128x128xbf16> to vector<128x128xbf16>
    %cst_62 = arith.constant dense<0.000000e+00> : vector<64x128xf32>
    %139 = tpu.matmul %136, %138, %cst_62 {dimension_numbers = #tpu.dot_dimension_numbers<[1], [0], [0], [1], [0, 0, 1, 1], [], []>} : vector<64x128xbf16>, vector<128x128xbf16>, vector<64x128xf32> -> vector<64x128xf32>
    %140 = arith.addf %135, %139 : vector<64x128xf32>
    %c63_i32 = arith.constant 63 : i32
    %141 = tpu.dynamic_rotate %11 by %c63_i32 dim 0 : vector<64x128xf32>, i32 -> vector<64x128xf32>
    %c0_i32_63 = arith.constant 0 : i32
    %142 = vector.broadcast %c0_i32_63 : i32 to vector<64x1xi32>
    %143 = arith.addi %16, %142 : vector<64x1xi32>
    %c0_i32_64 = arith.constant 0 : i32
    %144 = vector.broadcast %c0_i32_64 : i32 to vector<64x1xi32>
    %145 = arith.cmpi sge, %143, %144 : vector<64x1xi32>
    %c0_i32_65 = arith.constant 0 : i32
    %146 = vector.broadcast %c0_i32_65 : i32 to vector<64x1xi32>
    %147 = arith.addi %16, %146 : vector<64x1xi32>
    %c8_i32_66 = arith.constant 8 : i32
    %148 = vector.broadcast %c8_i32_66 : i32 to vector<64x1xi32>
    %149 = arith.cmpi slt, %147, %148 : vector<64x1xi32>
    %150 = arith.andi %145, %149 : vector<64x1xi1>
    %c1_i32_67 = arith.constant 1 : i32
    %151 = vector.broadcast %c1_i32_67 : i32 to vector<64x1xi32>
    %152 = arith.addi %14, %151 : vector<64x1xi32>
    %c0_i32_68 = arith.constant 0 : i32
    %153 = vector.broadcast %c0_i32_68 : i32 to vector<64x1xi32>
    %154 = arith.cmpi sge, %152, %153 : vector<64x1xi32>
    %155 = arith.andi %150, %154 : vector<64x1xi1>
    %c1_i32_69 = arith.constant 1 : i32
    %156 = vector.broadcast %c1_i32_69 : i32 to vector<64x1xi32>
    %157 = arith.addi %14, %156 : vector<64x1xi32>
    %c8_i32_70 = arith.constant 8 : i32
    %158 = vector.broadcast %c8_i32_70 : i32 to vector<64x1xi32>
    %159 = arith.cmpi slt, %157, %158 : vector<64x1xi32>
    %160 = arith.andi %155, %159 : vector<64x1xi1>
    %cst_71 = arith.constant 0.000000e+00 : f32
    %161 = vector.shape_cast %160 : vector<64x1xi1> to vector<64x1xi1>
    %162 = vector.broadcast %161 : vector<64x1xi1> to vector<64x128xi1>
    %163 = vector.broadcast %cst_71 : f32 to vector<64x128xf32>
    %164 = arith.select %162, %141, %163 : vector<64x128xi1>, vector<64x128xf32>
    %165 = arith.truncf %164 : vector<64x128xf32> to vector<64x128xbf16>
    %c5 = arith.constant 5 : index
    %c0_72 = arith.constant 0 : index
    %c0_73 = arith.constant 0 : index
    %166 = vector.load %arg5[%c5, %c0_72, %c0_73] : memref<9x128x128xbf16, #tpu.memory_space<vmem>>, vector<1x128x128xbf16>
    %167 = vector.shape_cast %166 : vector<1x128x128xbf16> to vector<128x128xbf16>
    %cst_74 = arith.constant dense<0.000000e+00> : vector<64x128xf32>
    %168 = tpu.matmul %165, %167, %cst_74 {dimension_numbers = #tpu.dot_dimension_numbers<[1], [0], [0], [1], [0, 0, 1, 1], [], []>} : vector<64x128xbf16>, vector<128x128xbf16>, vector<64x128xf32> -> vector<64x128xf32>
    %169 = arith.addf %140, %168 : vector<64x128xf32>
    %c57_i32 = arith.constant 57 : i32
    %170 = tpu.dynamic_rotate %11 by %c57_i32 dim 0 : vector<64x128xf32>, i32 -> vector<64x128xf32>
    %c1_i32_75 = arith.constant 1 : i32
    %171 = vector.broadcast %c1_i32_75 : i32 to vector<64x1xi32>
    %172 = arith.addi %16, %171 : vector<64x1xi32>
    %c0_i32_76 = arith.constant 0 : i32
    %173 = vector.broadcast %c0_i32_76 : i32 to vector<64x1xi32>
    %174 = arith.cmpi sge, %172, %173 : vector<64x1xi32>
    %c1_i32_77 = arith.constant 1 : i32
    %175 = vector.broadcast %c1_i32_77 : i32 to vector<64x1xi32>
    %176 = arith.addi %16, %175 : vector<64x1xi32>
    %c8_i32_78 = arith.constant 8 : i32
    %177 = vector.broadcast %c8_i32_78 : i32 to vector<64x1xi32>
    %178 = arith.cmpi slt, %176, %177 : vector<64x1xi32>
    %179 = arith.andi %174, %178 : vector<64x1xi1>
    %c-1_i32_79 = arith.constant -1 : i32
    %180 = vector.broadcast %c-1_i32_79 : i32 to vector<64x1xi32>
    %181 = arith.addi %14, %180 : vector<64x1xi32>
    %c0_i32_80 = arith.constant 0 : i32
    %182 = vector.broadcast %c0_i32_80 : i32 to vector<64x1xi32>
    %183 = arith.cmpi sge, %181, %182 : vector<64x1xi32>
    %184 = arith.andi %179, %183 : vector<64x1xi1>
    %c-1_i32_81 = arith.constant -1 : i32
    %185 = vector.broadcast %c-1_i32_81 : i32 to vector<64x1xi32>
    %186 = arith.addi %14, %185 : vector<64x1xi32>
    %c8_i32_82 = arith.constant 8 : i32
    %187 = vector.broadcast %c8_i32_82 : i32 to vector<64x1xi32>
    %188 = arith.cmpi slt, %186, %187 : vector<64x1xi32>
    %189 = arith.andi %184, %188 : vector<64x1xi1>
    %cst_83 = arith.constant 0.000000e+00 : f32
    %190 = vector.shape_cast %189 : vector<64x1xi1> to vector<64x1xi1>
    %191 = vector.broadcast %190 : vector<64x1xi1> to vector<64x128xi1>
    %192 = vector.broadcast %cst_83 : f32 to vector<64x128xf32>
    %193 = arith.select %191, %170, %192 : vector<64x128xi1>, vector<64x128xf32>
    %194 = arith.truncf %193 : vector<64x128xf32> to vector<64x128xbf16>
    %c6 = arith.constant 6 : index
    %c0_84 = arith.constant 0 : index
    %c0_85 = arith.constant 0 : index
    %195 = vector.load %arg5[%c6, %c0_84, %c0_85] : memref<9x128x128xbf16, #tpu.memory_space<vmem>>, vector<1x128x128xbf16>
    %196 = vector.shape_cast %195 : vector<1x128x128xbf16> to vector<128x128xbf16>
    %cst_86 = arith.constant dense<0.000000e+00> : vector<64x128xf32>
    %197 = tpu.matmul %194, %196, %cst_86 {dimension_numbers = #tpu.dot_dimension_numbers<[1], [0], [0], [1], [0, 0, 1, 1], [], []>} : vector<64x128xbf16>, vector<128x128xbf16>, vector<64x128xf32> -> vector<64x128xf32>
    %198 = arith.addf %169, %197 : vector<64x128xf32>
    %c56_i32 = arith.constant 56 : i32
    %199 = tpu.dynamic_rotate %11 by %c56_i32 dim 0 : vector<64x128xf32>, i32 -> vector<64x128xf32>
    %c1_i32_87 = arith.constant 1 : i32
    %200 = vector.broadcast %c1_i32_87 : i32 to vector<64x1xi32>
    %201 = arith.addi %16, %200 : vector<64x1xi32>
    %c0_i32_88 = arith.constant 0 : i32
    %202 = vector.broadcast %c0_i32_88 : i32 to vector<64x1xi32>
    %203 = arith.cmpi sge, %201, %202 : vector<64x1xi32>
    %c1_i32_89 = arith.constant 1 : i32
    %204 = vector.broadcast %c1_i32_89 : i32 to vector<64x1xi32>
    %205 = arith.addi %16, %204 : vector<64x1xi32>
    %c8_i32_90 = arith.constant 8 : i32
    %206 = vector.broadcast %c8_i32_90 : i32 to vector<64x1xi32>
    %207 = arith.cmpi slt, %205, %206 : vector<64x1xi32>
    %208 = arith.andi %203, %207 : vector<64x1xi1>
    %c0_i32_91 = arith.constant 0 : i32
    %209 = vector.broadcast %c0_i32_91 : i32 to vector<64x1xi32>
    %210 = arith.addi %14, %209 : vector<64x1xi32>
    %c0_i32_92 = arith.constant 0 : i32
    %211 = vector.broadcast %c0_i32_92 : i32 to vector<64x1xi32>
    %212 = arith.cmpi sge, %210, %211 : vector<64x1xi32>
    %213 = arith.andi %208, %212 : vector<64x1xi1>
    %c0_i32_93 = arith.constant 0 : i32
    %214 = vector.broadcast %c0_i32_93 : i32 to vector<64x1xi32>
    %215 = arith.addi %14, %214 : vector<64x1xi32>
    %c8_i32_94 = arith.constant 8 : i32
    %216 = vector.broadcast %c8_i32_94 : i32 to vector<64x1xi32>
    %217 = arith.cmpi slt, %215, %216 : vector<64x1xi32>
    %218 = arith.andi %213, %217 : vector<64x1xi1>
    %cst_95 = arith.constant 0.000000e+00 : f32
    %219 = vector.shape_cast %218 : vector<64x1xi1> to vector<64x1xi1>
    %220 = vector.broadcast %219 : vector<64x1xi1> to vector<64x128xi1>
    %221 = vector.broadcast %cst_95 : f32 to vector<64x128xf32>
    %222 = arith.select %220, %199, %221 : vector<64x128xi1>, vector<64x128xf32>
    %223 = arith.truncf %222 : vector<64x128xf32> to vector<64x128xbf16>
    %c7 = arith.constant 7 : index
    %c0_96 = arith.constant 0 : index
    %c0_97 = arith.constant 0 : index
    %224 = vector.load %arg5[%c7, %c0_96, %c0_97] : memref<9x128x128xbf16, #tpu.memory_space<vmem>>, vector<1x128x128xbf16>
    %225 = vector.shape_cast %224 : vector<1x128x128xbf16> to vector<128x128xbf16>
    %cst_98 = arith.constant dense<0.000000e+00> : vector<64x128xf32>
    %226 = tpu.matmul %223, %225, %cst_98 {dimension_numbers = #tpu.dot_dimension_numbers<[1], [0], [0], [1], [0, 0, 1, 1], [], []>} : vector<64x128xbf16>, vector<128x128xbf16>, vector<64x128xf32> -> vector<64x128xf32>
    %227 = arith.addf %198, %226 : vector<64x128xf32>
    %c55_i32 = arith.constant 55 : i32
    %228 = tpu.dynamic_rotate %11 by %c55_i32 dim 0 : vector<64x128xf32>, i32 -> vector<64x128xf32>
    %c1_i32_99 = arith.constant 1 : i32
    %229 = vector.broadcast %c1_i32_99 : i32 to vector<64x1xi32>
    %230 = arith.addi %16, %229 : vector<64x1xi32>
    %c0_i32_100 = arith.constant 0 : i32
    %231 = vector.broadcast %c0_i32_100 : i32 to vector<64x1xi32>
    %232 = arith.cmpi sge, %230, %231 : vector<64x1xi32>
    %c1_i32_101 = arith.constant 1 : i32
    %233 = vector.broadcast %c1_i32_101 : i32 to vector<64x1xi32>
    %234 = arith.addi %16, %233 : vector<64x1xi32>
    %c8_i32_102 = arith.constant 8 : i32
    %235 = vector.broadcast %c8_i32_102 : i32 to vector<64x1xi32>
    %236 = arith.cmpi slt, %234, %235 : vector<64x1xi32>
    %237 = arith.andi %232, %236 : vector<64x1xi1>
    %c1_i32_103 = arith.constant 1 : i32
    %238 = vector.broadcast %c1_i32_103 : i32 to vector<64x1xi32>
    %239 = arith.addi %14, %238 : vector<64x1xi32>
    %c0_i32_104 = arith.constant 0 : i32
    %240 = vector.broadcast %c0_i32_104 : i32 to vector<64x1xi32>
    %241 = arith.cmpi sge, %239, %240 : vector<64x1xi32>
    %242 = arith.andi %237, %241 : vector<64x1xi1>
    %c1_i32_105 = arith.constant 1 : i32
    %243 = vector.broadcast %c1_i32_105 : i32 to vector<64x1xi32>
    %244 = arith.addi %14, %243 : vector<64x1xi32>
    %c8_i32_106 = arith.constant 8 : i32
    %245 = vector.broadcast %c8_i32_106 : i32 to vector<64x1xi32>
    %246 = arith.cmpi slt, %244, %245 : vector<64x1xi32>
    %247 = arith.andi %242, %246 : vector<64x1xi1>
    %cst_107 = arith.constant 0.000000e+00 : f32
    %248 = vector.shape_cast %247 : vector<64x1xi1> to vector<64x1xi1>
    %249 = vector.broadcast %248 : vector<64x1xi1> to vector<64x128xi1>
    %250 = vector.broadcast %cst_107 : f32 to vector<64x128xf32>
    %251 = arith.select %249, %228, %250 : vector<64x128xi1>, vector<64x128xf32>
    %252 = arith.truncf %251 : vector<64x128xf32> to vector<64x128xbf16>
    %c8 = arith.constant 8 : index
    %c0_108 = arith.constant 0 : index
    %c0_109 = arith.constant 0 : index
    %253 = vector.load %arg5[%c8, %c0_108, %c0_109] : memref<9x128x128xbf16, #tpu.memory_space<vmem>>, vector<1x128x128xbf16>
    %254 = vector.shape_cast %253 : vector<1x128x128xbf16> to vector<128x128xbf16>
    %cst_110 = arith.constant dense<0.000000e+00> : vector<64x128xf32>
    %255 = tpu.matmul %252, %254, %cst_110 {dimension_numbers = #tpu.dot_dimension_numbers<[1], [0], [0], [1], [0, 0, 1, 1], [], []>} : vector<64x128xbf16>, vector<128x128xbf16>, vector<64x128xf32> -> vector<64x128xf32>
    %256 = arith.addf %227, %255 : vector<64x128xf32>
    %cst_111 = arith.constant 0.000000e+00 : f32
    %257 = vector.broadcast %cst_111 : f32 to vector<64x128xf32>
    %258 = arith.maximumf %256, %257 : vector<64x128xf32>
    %c0_112 = arith.constant 0 : index
    %c0_113 = arith.constant 0 : index
    %259 = vector.load %arg7[%c0_112, %c0_113] : memref<16x64xbf16, #tpu.memory_space<vmem>>, vector<16x64xbf16>
    %260 = arith.truncf %258 : vector<64x128xf32> to vector<64x128xbf16>
    %cst_114 = arith.constant dense<0.000000e+00> : vector<16x128xf32>
    %261 = tpu.matmul %259, %260, %cst_114 {dimension_numbers = #tpu.dot_dimension_numbers<[1], [0], [0], [1], [0, 0, 1, 1], [], []>} : vector<16x64xbf16>, vector<64x128xbf16>, vector<16x128xf32> -> vector<16x128xf32>
    %262 = tpu.iota {dimensions = array<i32: 0>} : vector<16x1xi32>
    %c3_i32_115 = arith.constant 3 : i32
    %263 = vector.broadcast %c3_i32_115 : i32 to vector<16x1xi32>
    %264 = arith.andi %262, %263 : vector<16x1xi32>
    %c2_i32 = arith.constant 2 : i32
    %265 = vector.broadcast %c2_i32 : i32 to vector<16x1xi32>
    %266 = arith.shrsi %262, %265 : vector<16x1xi32>
    %c0_116 = arith.constant 0 : index
    %c0_117 = arith.constant 0 : index
    %267 = vector.load %arg9[%c0_116, %c0_117] : memref<1x128xf32, #tpu.memory_space<vmem>>, vector<1x128xf32>
    %268 = vector.shape_cast %267 : vector<1x128xf32> to vector<1x128xf32>
    %269 = vector.broadcast %268 : vector<1x128xf32> to vector<16x128xf32>
    %c5_i32 = arith.constant 5 : i32
    %270 = tpu.dynamic_rotate %261 by %c5_i32 dim 0 : vector<16x128xf32>, i32 -> vector<16x128xf32>
    %c-1_i32_118 = arith.constant -1 : i32
    %271 = vector.broadcast %c-1_i32_118 : i32 to vector<16x1xi32>
    %272 = arith.addi %266, %271 : vector<16x1xi32>
    %c0_i32_119 = arith.constant 0 : i32
    %273 = vector.broadcast %c0_i32_119 : i32 to vector<16x1xi32>
    %274 = arith.cmpi sge, %272, %273 : vector<16x1xi32>
    %c-1_i32_120 = arith.constant -1 : i32
    %275 = vector.broadcast %c-1_i32_120 : i32 to vector<16x1xi32>
    %276 = arith.addi %266, %275 : vector<16x1xi32>
    %c4_i32 = arith.constant 4 : i32
    %277 = vector.broadcast %c4_i32 : i32 to vector<16x1xi32>
    %278 = arith.cmpi slt, %276, %277 : vector<16x1xi32>
    %279 = arith.andi %274, %278 : vector<16x1xi1>
    %c-1_i32_121 = arith.constant -1 : i32
    %280 = vector.broadcast %c-1_i32_121 : i32 to vector<16x1xi32>
    %281 = arith.addi %264, %280 : vector<16x1xi32>
    %c0_i32_122 = arith.constant 0 : i32
    %282 = vector.broadcast %c0_i32_122 : i32 to vector<16x1xi32>
    %283 = arith.cmpi sge, %281, %282 : vector<16x1xi32>
    %284 = arith.andi %279, %283 : vector<16x1xi1>
    %c-1_i32_123 = arith.constant -1 : i32
    %285 = vector.broadcast %c-1_i32_123 : i32 to vector<16x1xi32>
    %286 = arith.addi %264, %285 : vector<16x1xi32>
    %c4_i32_124 = arith.constant 4 : i32
    %287 = vector.broadcast %c4_i32_124 : i32 to vector<16x1xi32>
    %288 = arith.cmpi slt, %286, %287 : vector<16x1xi32>
    %289 = arith.andi %284, %288 : vector<16x1xi1>
    %cst_125 = arith.constant 0.000000e+00 : f32
    %290 = vector.shape_cast %289 : vector<16x1xi1> to vector<16x1xi1>
    %291 = vector.broadcast %290 : vector<16x1xi1> to vector<16x128xi1>
    %292 = vector.broadcast %cst_125 : f32 to vector<16x128xf32>
    %293 = arith.select %291, %270, %292 : vector<16x128xi1>, vector<16x128xf32>
    %294 = arith.truncf %293 : vector<16x128xf32> to vector<16x128xbf16>
    %c0_126 = arith.constant 0 : index
    %c0_127 = arith.constant 0 : index
    %c0_128 = arith.constant 0 : index
    %295 = vector.load %arg8[%c0_126, %c0_127, %c0_128] : memref<9x128x128xbf16, #tpu.memory_space<vmem>>, vector<1x128x128xbf16>
    %296 = vector.shape_cast %295 : vector<1x128x128xbf16> to vector<128x128xbf16>
    %cst_129 = arith.constant dense<0.000000e+00> : vector<16x128xf32>
    %297 = tpu.matmul %294, %296, %cst_129 {dimension_numbers = #tpu.dot_dimension_numbers<[1], [0], [0], [1], [0, 0, 1, 1], [], []>} : vector<16x128xbf16>, vector<128x128xbf16>, vector<16x128xf32> -> vector<16x128xf32>
    %298 = arith.addf %269, %297 : vector<16x128xf32>
    %c4_i32_130 = arith.constant 4 : i32
    %299 = tpu.dynamic_rotate %261 by %c4_i32_130 dim 0 : vector<16x128xf32>, i32 -> vector<16x128xf32>
    %c-1_i32_131 = arith.constant -1 : i32
    %300 = vector.broadcast %c-1_i32_131 : i32 to vector<16x1xi32>
    %301 = arith.addi %266, %300 : vector<16x1xi32>
    %c0_i32_132 = arith.constant 0 : i32
    %302 = vector.broadcast %c0_i32_132 : i32 to vector<16x1xi32>
    %303 = arith.cmpi sge, %301, %302 : vector<16x1xi32>
    %c-1_i32_133 = arith.constant -1 : i32
    %304 = vector.broadcast %c-1_i32_133 : i32 to vector<16x1xi32>
    %305 = arith.addi %266, %304 : vector<16x1xi32>
    %c4_i32_134 = arith.constant 4 : i32
    %306 = vector.broadcast %c4_i32_134 : i32 to vector<16x1xi32>
    %307 = arith.cmpi slt, %305, %306 : vector<16x1xi32>
    %308 = arith.andi %303, %307 : vector<16x1xi1>
    %c0_i32_135 = arith.constant 0 : i32
    %309 = vector.broadcast %c0_i32_135 : i32 to vector<16x1xi32>
    %310 = arith.addi %264, %309 : vector<16x1xi32>
    %c0_i32_136 = arith.constant 0 : i32
    %311 = vector.broadcast %c0_i32_136 : i32 to vector<16x1xi32>
    %312 = arith.cmpi sge, %310, %311 : vector<16x1xi32>
    %313 = arith.andi %308, %312 : vector<16x1xi1>
    %c0_i32_137 = arith.constant 0 : i32
    %314 = vector.broadcast %c0_i32_137 : i32 to vector<16x1xi32>
    %315 = arith.addi %264, %314 : vector<16x1xi32>
    %c4_i32_138 = arith.constant 4 : i32
    %316 = vector.broadcast %c4_i32_138 : i32 to vector<16x1xi32>
    %317 = arith.cmpi slt, %315, %316 : vector<16x1xi32>
    %318 = arith.andi %313, %317 : vector<16x1xi1>
    %cst_139 = arith.constant 0.000000e+00 : f32
    %319 = vector.shape_cast %318 : vector<16x1xi1> to vector<16x1xi1>
    %320 = vector.broadcast %319 : vector<16x1xi1> to vector<16x128xi1>
    %321 = vector.broadcast %cst_139 : f32 to vector<16x128xf32>
    %322 = arith.select %320, %299, %321 : vector<16x128xi1>, vector<16x128xf32>
    %323 = arith.truncf %322 : vector<16x128xf32> to vector<16x128xbf16>
    %c1_140 = arith.constant 1 : index
    %c0_141 = arith.constant 0 : index
    %c0_142 = arith.constant 0 : index
    %324 = vector.load %arg8[%c1_140, %c0_141, %c0_142] : memref<9x128x128xbf16, #tpu.memory_space<vmem>>, vector<1x128x128xbf16>
    %325 = vector.shape_cast %324 : vector<1x128x128xbf16> to vector<128x128xbf16>
    %cst_143 = arith.constant dense<0.000000e+00> : vector<16x128xf32>
    %326 = tpu.matmul %323, %325, %cst_143 {dimension_numbers = #tpu.dot_dimension_numbers<[1], [0], [0], [1], [0, 0, 1, 1], [], []>} : vector<16x128xbf16>, vector<128x128xbf16>, vector<16x128xf32> -> vector<16x128xf32>
    %327 = arith.addf %298, %326 : vector<16x128xf32>
    %c3_i32_144 = arith.constant 3 : i32
    %328 = tpu.dynamic_rotate %261 by %c3_i32_144 dim 0 : vector<16x128xf32>, i32 -> vector<16x128xf32>
    %c-1_i32_145 = arith.constant -1 : i32
    %329 = vector.broadcast %c-1_i32_145 : i32 to vector<16x1xi32>
    %330 = arith.addi %266, %329 : vector<16x1xi32>
    %c0_i32_146 = arith.constant 0 : i32
    %331 = vector.broadcast %c0_i32_146 : i32 to vector<16x1xi32>
    %332 = arith.cmpi sge, %330, %331 : vector<16x1xi32>
    %c-1_i32_147 = arith.constant -1 : i32
    %333 = vector.broadcast %c-1_i32_147 : i32 to vector<16x1xi32>
    %334 = arith.addi %266, %333 : vector<16x1xi32>
    %c4_i32_148 = arith.constant 4 : i32
    %335 = vector.broadcast %c4_i32_148 : i32 to vector<16x1xi32>
    %336 = arith.cmpi slt, %334, %335 : vector<16x1xi32>
    %337 = arith.andi %332, %336 : vector<16x1xi1>
    %c1_i32_149 = arith.constant 1 : i32
    %338 = vector.broadcast %c1_i32_149 : i32 to vector<16x1xi32>
    %339 = arith.addi %264, %338 : vector<16x1xi32>
    %c0_i32_150 = arith.constant 0 : i32
    %340 = vector.broadcast %c0_i32_150 : i32 to vector<16x1xi32>
    %341 = arith.cmpi sge, %339, %340 : vector<16x1xi32>
    %342 = arith.andi %337, %341 : vector<16x1xi1>
    %c1_i32_151 = arith.constant 1 : i32
    %343 = vector.broadcast %c1_i32_151 : i32 to vector<16x1xi32>
    %344 = arith.addi %264, %343 : vector<16x1xi32>
    %c4_i32_152 = arith.constant 4 : i32
    %345 = vector.broadcast %c4_i32_152 : i32 to vector<16x1xi32>
    %346 = arith.cmpi slt, %344, %345 : vector<16x1xi32>
    %347 = arith.andi %342, %346 : vector<16x1xi1>
    %cst_153 = arith.constant 0.000000e+00 : f32
    %348 = vector.shape_cast %347 : vector<16x1xi1> to vector<16x1xi1>
    %349 = vector.broadcast %348 : vector<16x1xi1> to vector<16x128xi1>
    %350 = vector.broadcast %cst_153 : f32 to vector<16x128xf32>
    %351 = arith.select %349, %328, %350 : vector<16x128xi1>, vector<16x128xf32>
    %352 = arith.truncf %351 : vector<16x128xf32> to vector<16x128xbf16>
    %c2_154 = arith.constant 2 : index
    %c0_155 = arith.constant 0 : index
    %c0_156 = arith.constant 0 : index
    %353 = vector.load %arg8[%c2_154, %c0_155, %c0_156] : memref<9x128x128xbf16, #tpu.memory_space<vmem>>, vector<1x128x128xbf16>
    %354 = vector.shape_cast %353 : vector<1x128x128xbf16> to vector<128x128xbf16>
    %cst_157 = arith.constant dense<0.000000e+00> : vector<16x128xf32>
    %355 = tpu.matmul %352, %354, %cst_157 {dimension_numbers = #tpu.dot_dimension_numbers<[1], [0], [0], [1], [0, 0, 1, 1], [], []>} : vector<16x128xbf16>, vector<128x128xbf16>, vector<16x128xf32> -> vector<16x128xf32>
    %356 = arith.addf %327, %355 : vector<16x128xf32>
    %c1_i32_158 = arith.constant 1 : i32
    %357 = tpu.dynamic_rotate %261 by %c1_i32_158 dim 0 : vector<16x128xf32>, i32 -> vector<16x128xf32>
    %c0_i32_159 = arith.constant 0 : i32
    %358 = vector.broadcast %c0_i32_159 : i32 to vector<16x1xi32>
    %359 = arith.addi %266, %358 : vector<16x1xi32>
    %c0_i32_160 = arith.constant 0 : i32
    %360 = vector.broadcast %c0_i32_160 : i32 to vector<16x1xi32>
    %361 = arith.cmpi sge, %359, %360 : vector<16x1xi32>
    %c0_i32_161 = arith.constant 0 : i32
    %362 = vector.broadcast %c0_i32_161 : i32 to vector<16x1xi32>
    %363 = arith.addi %266, %362 : vector<16x1xi32>
    %c4_i32_162 = arith.constant 4 : i32
    %364 = vector.broadcast %c4_i32_162 : i32 to vector<16x1xi32>
    %365 = arith.cmpi slt, %363, %364 : vector<16x1xi32>
    %366 = arith.andi %361, %365 : vector<16x1xi1>
    %c-1_i32_163 = arith.constant -1 : i32
    %367 = vector.broadcast %c-1_i32_163 : i32 to vector<16x1xi32>
    %368 = arith.addi %264, %367 : vector<16x1xi32>
    %c0_i32_164 = arith.constant 0 : i32
    %369 = vector.broadcast %c0_i32_164 : i32 to vector<16x1xi32>
    %370 = arith.cmpi sge, %368, %369 : vector<16x1xi32>
    %371 = arith.andi %366, %370 : vector<16x1xi1>
    %c-1_i32_165 = arith.constant -1 : i32
    %372 = vector.broadcast %c-1_i32_165 : i32 to vector<16x1xi32>
    %373 = arith.addi %264, %372 : vector<16x1xi32>
    %c4_i32_166 = arith.constant 4 : i32
    %374 = vector.broadcast %c4_i32_166 : i32 to vector<16x1xi32>
    %375 = arith.cmpi slt, %373, %374 : vector<16x1xi32>
    %376 = arith.andi %371, %375 : vector<16x1xi1>
    %cst_167 = arith.constant 0.000000e+00 : f32
    %377 = vector.shape_cast %376 : vector<16x1xi1> to vector<16x1xi1>
    %378 = vector.broadcast %377 : vector<16x1xi1> to vector<16x128xi1>
    %379 = vector.broadcast %cst_167 : f32 to vector<16x128xf32>
    %380 = arith.select %378, %357, %379 : vector<16x128xi1>, vector<16x128xf32>
    %381 = arith.truncf %380 : vector<16x128xf32> to vector<16x128xbf16>
    %c3_168 = arith.constant 3 : index
    %c0_169 = arith.constant 0 : index
    %c0_170 = arith.constant 0 : index
    %382 = vector.load %arg8[%c3_168, %c0_169, %c0_170] : memref<9x128x128xbf16, #tpu.memory_space<vmem>>, vector<1x128x128xbf16>
    %383 = vector.shape_cast %382 : vector<1x128x128xbf16> to vector<128x128xbf16>
    %cst_171 = arith.constant dense<0.000000e+00> : vector<16x128xf32>
    %384 = tpu.matmul %381, %383, %cst_171 {dimension_numbers = #tpu.dot_dimension_numbers<[1], [0], [0], [1], [0, 0, 1, 1], [], []>} : vector<16x128xbf16>, vector<128x128xbf16>, vector<16x128xf32> -> vector<16x128xf32>
    %385 = arith.addf %356, %384 : vector<16x128xf32>
    %386 = arith.truncf %261 : vector<16x128xf32> to vector<16x128xbf16>
    %c4_172 = arith.constant 4 : index
    %c0_173 = arith.constant 0 : index
    %c0_174 = arith.constant 0 : index
    %387 = vector.load %arg8[%c4_172, %c0_173, %c0_174] : memref<9x128x128xbf16, #tpu.memory_space<vmem>>, vector<1x128x128xbf16>
    %388 = vector.shape_cast %387 : vector<1x128x128xbf16> to vector<128x128xbf16>
    %cst_175 = arith.constant dense<0.000000e+00> : vector<16x128xf32>
    %389 = tpu.matmul %386, %388, %cst_175 {dimension_numbers = #tpu.dot_dimension_numbers<[1], [0], [0], [1], [0, 0, 1, 1], [], []>} : vector<16x128xbf16>, vector<128x128xbf16>, vector<16x128xf32> -> vector<16x128xf32>
    %390 = arith.addf %385, %389 : vector<16x128xf32>
    %c15_i32 = arith.constant 15 : i32
    %391 = tpu.dynamic_rotate %261 by %c15_i32 dim 0 : vector<16x128xf32>, i32 -> vector<16x128xf32>
    %c0_i32_176 = arith.constant 0 : i32
    %392 = vector.broadcast %c0_i32_176 : i32 to vector<16x1xi32>
    %393 = arith.addi %266, %392 : vector<16x1xi32>
    %c0_i32_177 = arith.constant 0 : i32
    %394 = vector.broadcast %c0_i32_177 : i32 to vector<16x1xi32>
    %395 = arith.cmpi sge, %393, %394 : vector<16x1xi32>
    %c0_i32_178 = arith.constant 0 : i32
    %396 = vector.broadcast %c0_i32_178 : i32 to vector<16x1xi32>
    %397 = arith.addi %266, %396 : vector<16x1xi32>
    %c4_i32_179 = arith.constant 4 : i32
    %398 = vector.broadcast %c4_i32_179 : i32 to vector<16x1xi32>
    %399 = arith.cmpi slt, %397, %398 : vector<16x1xi32>
    %400 = arith.andi %395, %399 : vector<16x1xi1>
    %c1_i32_180 = arith.constant 1 : i32
    %401 = vector.broadcast %c1_i32_180 : i32 to vector<16x1xi32>
    %402 = arith.addi %264, %401 : vector<16x1xi32>
    %c0_i32_181 = arith.constant 0 : i32
    %403 = vector.broadcast %c0_i32_181 : i32 to vector<16x1xi32>
    %404 = arith.cmpi sge, %402, %403 : vector<16x1xi32>
    %405 = arith.andi %400, %404 : vector<16x1xi1>
    %c1_i32_182 = arith.constant 1 : i32
    %406 = vector.broadcast %c1_i32_182 : i32 to vector<16x1xi32>
    %407 = arith.addi %264, %406 : vector<16x1xi32>
    %c4_i32_183 = arith.constant 4 : i32
    %408 = vector.broadcast %c4_i32_183 : i32 to vector<16x1xi32>
    %409 = arith.cmpi slt, %407, %408 : vector<16x1xi32>
    %410 = arith.andi %405, %409 : vector<16x1xi1>
    %cst_184 = arith.constant 0.000000e+00 : f32
    %411 = vector.shape_cast %410 : vector<16x1xi1> to vector<16x1xi1>
    %412 = vector.broadcast %411 : vector<16x1xi1> to vector<16x128xi1>
    %413 = vector.broadcast %cst_184 : f32 to vector<16x128xf32>
    %414 = arith.select %412, %391, %413 : vector<16x128xi1>, vector<16x128xf32>
    %415 = arith.truncf %414 : vector<16x128xf32> to vector<16x128xbf16>
    %c5_185 = arith.constant 5 : index
    %c0_186 = arith.constant 0 : index
    %c0_187 = arith.constant 0 : index
    %416 = vector.load %arg8[%c5_185, %c0_186, %c0_187] : memref<9x128x128xbf16, #tpu.memory_space<vmem>>, vector<1x128x128xbf16>
    %417 = vector.shape_cast %416 : vector<1x128x128xbf16> to vector<128x128xbf16>
    %cst_188 = arith.constant dense<0.000000e+00> : vector<16x128xf32>
    %418 = tpu.matmul %415, %417, %cst_188 {dimension_numbers = #tpu.dot_dimension_numbers<[1], [0], [0], [1], [0, 0, 1, 1], [], []>} : vector<16x128xbf16>, vector<128x128xbf16>, vector<16x128xf32> -> vector<16x128xf32>
    %419 = arith.addf %390, %418 : vector<16x128xf32>
    %c13_i32 = arith.constant 13 : i32
    %420 = tpu.dynamic_rotate %261 by %c13_i32 dim 0 : vector<16x128xf32>, i32 -> vector<16x128xf32>
    %c1_i32_189 = arith.constant 1 : i32
    %421 = vector.broadcast %c1_i32_189 : i32 to vector<16x1xi32>
    %422 = arith.addi %266, %421 : vector<16x1xi32>
    %c0_i32_190 = arith.constant 0 : i32
    %423 = vector.broadcast %c0_i32_190 : i32 to vector<16x1xi32>
    %424 = arith.cmpi sge, %422, %423 : vector<16x1xi32>
    %c1_i32_191 = arith.constant 1 : i32
    %425 = vector.broadcast %c1_i32_191 : i32 to vector<16x1xi32>
    %426 = arith.addi %266, %425 : vector<16x1xi32>
    %c4_i32_192 = arith.constant 4 : i32
    %427 = vector.broadcast %c4_i32_192 : i32 to vector<16x1xi32>
    %428 = arith.cmpi slt, %426, %427 : vector<16x1xi32>
    %429 = arith.andi %424, %428 : vector<16x1xi1>
    %c-1_i32_193 = arith.constant -1 : i32
    %430 = vector.broadcast %c-1_i32_193 : i32 to vector<16x1xi32>
    %431 = arith.addi %264, %430 : vector<16x1xi32>
    %c0_i32_194 = arith.constant 0 : i32
    %432 = vector.broadcast %c0_i32_194 : i32 to vector<16x1xi32>
    %433 = arith.cmpi sge, %431, %432 : vector<16x1xi32>
    %434 = arith.andi %429, %433 : vector<16x1xi1>
    %c-1_i32_195 = arith.constant -1 : i32
    %435 = vector.broadcast %c-1_i32_195 : i32 to vector<16x1xi32>
    %436 = arith.addi %264, %435 : vector<16x1xi32>
    %c4_i32_196 = arith.constant 4 : i32
    %437 = vector.broadcast %c4_i32_196 : i32 to vector<16x1xi32>
    %438 = arith.cmpi slt, %436, %437 : vector<16x1xi32>
    %439 = arith.andi %434, %438 : vector<16x1xi1>
    %cst_197 = arith.constant 0.000000e+00 : f32
    %440 = vector.shape_cast %439 : vector<16x1xi1> to vector<16x1xi1>
    %441 = vector.broadcast %440 : vector<16x1xi1> to vector<16x128xi1>
    %442 = vector.broadcast %cst_197 : f32 to vector<16x128xf32>
    %443 = arith.select %441, %420, %442 : vector<16x128xi1>, vector<16x128xf32>
    %444 = arith.truncf %443 : vector<16x128xf32> to vector<16x128xbf16>
    %c6_198 = arith.constant 6 : index
    %c0_199 = arith.constant 0 : index
    %c0_200 = arith.constant 0 : index
    %445 = vector.load %arg8[%c6_198, %c0_199, %c0_200] : memref<9x128x128xbf16, #tpu.memory_space<vmem>>, vector<1x128x128xbf16>
    %446 = vector.shape_cast %445 : vector<1x128x128xbf16> to vector<128x128xbf16>
    %cst_201 = arith.constant dense<0.000000e+00> : vector<16x128xf32>
    %447 = tpu.matmul %444, %446, %cst_201 {dimension_numbers = #tpu.dot_dimension_numbers<[1], [0], [0], [1], [0, 0, 1, 1], [], []>} : vector<16x128xbf16>, vector<128x128xbf16>, vector<16x128xf32> -> vector<16x128xf32>
    %448 = arith.addf %419, %447 : vector<16x128xf32>
    %c12_i32 = arith.constant 12 : i32
    %449 = tpu.dynamic_rotate %261 by %c12_i32 dim 0 : vector<16x128xf32>, i32 -> vector<16x128xf32>
    %c1_i32_202 = arith.constant 1 : i32
    %450 = vector.broadcast %c1_i32_202 : i32 to vector<16x1xi32>
    %451 = arith.addi %266, %450 : vector<16x1xi32>
    %c0_i32_203 = arith.constant 0 : i32
    %452 = vector.broadcast %c0_i32_203 : i32 to vector<16x1xi32>
    %453 = arith.cmpi sge, %451, %452 : vector<16x1xi32>
    %c1_i32_204 = arith.constant 1 : i32
    %454 = vector.broadcast %c1_i32_204 : i32 to vector<16x1xi32>
    %455 = arith.addi %266, %454 : vector<16x1xi32>
    %c4_i32_205 = arith.constant 4 : i32
    %456 = vector.broadcast %c4_i32_205 : i32 to vector<16x1xi32>
    %457 = arith.cmpi slt, %455, %456 : vector<16x1xi32>
    %458 = arith.andi %453, %457 : vector<16x1xi1>
    %c0_i32_206 = arith.constant 0 : i32
    %459 = vector.broadcast %c0_i32_206 : i32 to vector<16x1xi32>
    %460 = arith.addi %264, %459 : vector<16x1xi32>
    %c0_i32_207 = arith.constant 0 : i32
    %461 = vector.broadcast %c0_i32_207 : i32 to vector<16x1xi32>
    %462 = arith.cmpi sge, %460, %461 : vector<16x1xi32>
    %463 = arith.andi %458, %462 : vector<16x1xi1>
    %c0_i32_208 = arith.constant 0 : i32
    %464 = vector.broadcast %c0_i32_208 : i32 to vector<16x1xi32>
    %465 = arith.addi %264, %464 : vector<16x1xi32>
    %c4_i32_209 = arith.constant 4 : i32
    %466 = vector.broadcast %c4_i32_209 : i32 to vector<16x1xi32>
    %467 = arith.cmpi slt, %465, %466 : vector<16x1xi32>
    %468 = arith.andi %463, %467 : vector<16x1xi1>
    %cst_210 = arith.constant 0.000000e+00 : f32
    %469 = vector.shape_cast %468 : vector<16x1xi1> to vector<16x1xi1>
    %470 = vector.broadcast %469 : vector<16x1xi1> to vector<16x128xi1>
    %471 = vector.broadcast %cst_210 : f32 to vector<16x128xf32>
    %472 = arith.select %470, %449, %471 : vector<16x128xi1>, vector<16x128xf32>
    %473 = arith.truncf %472 : vector<16x128xf32> to vector<16x128xbf16>
    %c7_211 = arith.constant 7 : index
    %c0_212 = arith.constant 0 : index
    %c0_213 = arith.constant 0 : index
    %474 = vector.load %arg8[%c7_211, %c0_212, %c0_213] : memref<9x128x128xbf16, #tpu.memory_space<vmem>>, vector<1x128x128xbf16>
    %475 = vector.shape_cast %474 : vector<1x128x128xbf16> to vector<128x128xbf16>
    %cst_214 = arith.constant dense<0.000000e+00> : vector<16x128xf32>
    %476 = tpu.matmul %473, %475, %cst_214 {dimension_numbers = #tpu.dot_dimension_numbers<[1], [0], [0], [1], [0, 0, 1, 1], [], []>} : vector<16x128xbf16>, vector<128x128xbf16>, vector<16x128xf32> -> vector<16x128xf32>
    %477 = arith.addf %448, %476 : vector<16x128xf32>
    %c11_i32 = arith.constant 11 : i32
    %478 = tpu.dynamic_rotate %261 by %c11_i32 dim 0 : vector<16x128xf32>, i32 -> vector<16x128xf32>
    %c1_i32_215 = arith.constant 1 : i32
    %479 = vector.broadcast %c1_i32_215 : i32 to vector<16x1xi32>
    %480 = arith.addi %266, %479 : vector<16x1xi32>
    %c0_i32_216 = arith.constant 0 : i32
    %481 = vector.broadcast %c0_i32_216 : i32 to vector<16x1xi32>
    %482 = arith.cmpi sge, %480, %481 : vector<16x1xi32>
    %c1_i32_217 = arith.constant 1 : i32
    %483 = vector.broadcast %c1_i32_217 : i32 to vector<16x1xi32>
    %484 = arith.addi %266, %483 : vector<16x1xi32>
    %c4_i32_218 = arith.constant 4 : i32
    %485 = vector.broadcast %c4_i32_218 : i32 to vector<16x1xi32>
    %486 = arith.cmpi slt, %484, %485 : vector<16x1xi32>
    %487 = arith.andi %482, %486 : vector<16x1xi1>
    %c1_i32_219 = arith.constant 1 : i32
    %488 = vector.broadcast %c1_i32_219 : i32 to vector<16x1xi32>
    %489 = arith.addi %264, %488 : vector<16x1xi32>
    %c0_i32_220 = arith.constant 0 : i32
    %490 = vector.broadcast %c0_i32_220 : i32 to vector<16x1xi32>
    %491 = arith.cmpi sge, %489, %490 : vector<16x1xi32>
    %492 = arith.andi %487, %491 : vector<16x1xi1>
    %c1_i32_221 = arith.constant 1 : i32
    %493 = vector.broadcast %c1_i32_221 : i32 to vector<16x1xi32>
    %494 = arith.addi %264, %493 : vector<16x1xi32>
    %c4_i32_222 = arith.constant 4 : i32
    %495 = vector.broadcast %c4_i32_222 : i32 to vector<16x1xi32>
    %496 = arith.cmpi slt, %494, %495 : vector<16x1xi32>
    %497 = arith.andi %492, %496 : vector<16x1xi1>
    %cst_223 = arith.constant 0.000000e+00 : f32
    %498 = vector.shape_cast %497 : vector<16x1xi1> to vector<16x1xi1>
    %499 = vector.broadcast %498 : vector<16x1xi1> to vector<16x128xi1>
    %500 = vector.broadcast %cst_223 : f32 to vector<16x128xf32>
    %501 = arith.select %499, %478, %500 : vector<16x128xi1>, vector<16x128xf32>
    %502 = arith.truncf %501 : vector<16x128xf32> to vector<16x128xbf16>
    %c8_224 = arith.constant 8 : index
    %c0_225 = arith.constant 0 : index
    %c0_226 = arith.constant 0 : index
    %503 = vector.load %arg8[%c8_224, %c0_225, %c0_226] : memref<9x128x128xbf16, #tpu.memory_space<vmem>>, vector<1x128x128xbf16>
    %504 = vector.shape_cast %503 : vector<1x128x128xbf16> to vector<128x128xbf16>
    %cst_227 = arith.constant dense<0.000000e+00> : vector<16x128xf32>
    %505 = tpu.matmul %502, %504, %cst_227 {dimension_numbers = #tpu.dot_dimension_numbers<[1], [0], [0], [1], [0, 0, 1, 1], [], []>} : vector<16x128xbf16>, vector<128x128xbf16>, vector<16x128xf32> -> vector<16x128xf32>
    %506 = arith.addf %477, %505 : vector<16x128xf32>
    %cst_228 = arith.constant 0.000000e+00 : f32
    %507 = vector.broadcast %cst_228 : f32 to vector<16x128xf32>
    %508 = arith.maximumf %506, %507 : vector<16x128xf32>
    %c0_229 = arith.constant 0 : index
    %c0_230 = arith.constant 0 : index
    %509 = vector.load %arg10[%c0_229, %c0_230] : memref<4x16xbf16, #tpu.memory_space<vmem>>, vector<4x16xbf16>
    %510 = arith.truncf %508 : vector<16x128xf32> to vector<16x128xbf16>
    %cst_231 = arith.constant dense<0.000000e+00> : vector<4x128xf32>
    %511 = tpu.matmul %509, %510, %cst_231 {dimension_numbers = #tpu.dot_dimension_numbers<[1], [0], [0], [1], [0, 0, 1, 1], [], []>} : vector<4x16xbf16>, vector<16x128xbf16>, vector<4x128xf32> -> vector<4x128xf32>
    %cst_232 = arith.constant dense<0.000000e+00> : vector<128xf32>
    %512 = vector.multi_reduction <add>, %511, %cst_232 [0] : vector<4x128xf32> to vector<128xf32>
    %513 = vector.shape_cast %512 : vector<128xf32> to vector<1x128xf32>
    %cst_233 = arith.constant 4.000000e+00 : f32
    %514 = vector.broadcast %cst_233 : f32 to vector<1x128xf32>
    %515 = arith.divf %513, %514 : vector<1x128xf32>
    %c0_234 = arith.constant 0 : index
    %c0_235 = arith.constant 0 : index
    %516 = vector.load %arg11[%c0_234, %c0_235] : memref<1x128xf32, #tpu.memory_space<vmem>>, vector<1x128xf32>
    %517 = arith.mulf %515, %516 : vector<1x128xf32>
    %cst_236 = arith.constant dense<0.000000e+00> : vector<1xf32>
    %518 = vector.multi_reduction <add>, %517, %cst_236 [1] : vector<1x128xf32> to vector<1xf32>
    %519 = vector.shape_cast %518 : vector<1xf32> to vector<1x1xf32>
    %c0_237 = arith.constant 0 : index
    %c0_238 = arith.constant 0 : index
    %520 = vector.load %arg12[%c0_237, %c0_238] : memref<1x1xf32, #tpu.memory_space<vmem>>, vector<1x1xf32>
    %521 = arith.addf %519, %520 : vector<1x1xf32>
    %cst_239 = arith.constant 0.000000e+00 : f32
    %522 = vector.broadcast %cst_239 : f32 to vector<1x1xf32>
    %523 = arith.cmpf oge, %521, %522 : vector<1x1xf32>
    %cst_240 = arith.constant 0.000000e+00 : f32
    %524 = vector.broadcast %cst_240 : f32 to vector<1x1xf32>
    %525 = arith.subf %524, %521 : vector<1x1xf32>
    %526 = arith.select %523, %525, %521 : vector<1x1xi1>, vector<1x1xf32>
    %527 = math.exp %526 : vector<1x1xf32>
    %cst_241 = arith.constant 1.000000e+00 : f32
    %528 = vector.broadcast %cst_241 : f32 to vector<1x1xf32>
    %529 = arith.addf %528, %527 : vector<1x1xf32>
    %cst_242 = arith.constant 1.000000e+00 : f32
    %530 = vector.broadcast %cst_242 : f32 to vector<1x1xf32>
    %531 = arith.divf %530, %529 : vector<1x1xf32>
    %cst_243 = arith.constant 1.000000e+00 : f32
    %532 = vector.broadcast %cst_243 : f32 to vector<1x1xf32>
    %533 = arith.addf %532, %527 : vector<1x1xf32>
    %534 = arith.divf %527, %533 : vector<1x1xf32>
    %535 = arith.select %523, %531, %534 : vector<1x1xi1>, vector<1x1xf32>
    %536 = vector.shape_cast %535 : vector<1x1xf32> to vector<1x1x1xf32>
    %c0_244 = arith.constant 0 : index
    %c0_245 = arith.constant 0 : index
    %c0_246 = arith.constant 0 : index
    %537 = vector.load %arg13[%c0_244, %c0_245, %c0_246] : memref<1x1x1xf32, #tpu.memory_space<vmem>>, vector<1x1x1xf32>
    tpu.vector_store %arg13[%c0_244, %c0_245, %c0_246], %536 {strides = array<i32>} : memref<1x1x1xf32, #tpu.memory_space<vmem>>, vector<1x1x1xf32>,
    return
  }
  func.func @transform_0(%arg0: i32) -> (i32, i32, i32) {
    %c0_i32 = arith.constant 0 : i32
    %c0_i32_0 = arith.constant 0 : i32
    %c0_i32_1 = arith.constant 0 : i32
    return %arg0, %c0_i32, %c0_i32_0 : i32, i32, i32
  }
  func.func @transform_1(%arg0: i32) -> (i32, i32) {
    %c0_i32 = arith.constant 0 : i32
    %c0_i32_0 = arith.constant 0 : i32
    %c0_i32_1 = arith.constant 0 : i32
    return %c0_i32, %c0_i32_0 : i32, i32
  }
  func.func @transform_2(%arg0: i32) -> (i32, i32) {
    %c0_i32 = arith.constant 0 : i32
    %c0_i32_0 = arith.constant 0 : i32
    %c0_i32_1 = arith.constant 0 : i32
    return %c0_i32, %c0_i32_0 : i32, i32
  }
  func.func @transform_3(%arg0: i32) -> (i32, i32) {
    %c0_i32 = arith.constant 0 : i32
    %c0_i32_0 = arith.constant 0 : i32
    %c0_i32_1 = arith.constant 0 : i32
    return %c0_i32, %c0_i32_0 : i32, i32
  }
  func.func @transform_4(%arg0: i32) -> (i32, i32, i32) {
    %c0_i32 = arith.constant 0 : i32
    %c0_i32_0 = arith.constant 0 : i32
    %c0_i32_1 = arith.constant 0 : i32
    %c0_i32_2 = arith.constant 0 : i32
    return %c0_i32, %c0_i32_0, %c0_i32_1 : i32, i32, i32
  }
  func.func @transform_5(%arg0: i32) -> (i32, i32) {
    %c0_i32 = arith.constant 0 : i32
    %c0_i32_0 = arith.constant 0 : i32
    %c0_i32_1 = arith.constant 0 : i32
    return %c0_i32, %c0_i32_0 : i32, i32
  }
  func.func @transform_6(%arg0: i32) -> (i32, i32) {
    %c0_i32 = arith.constant 0 : i32
    %c0_i32_0 = arith.constant 0 : i32
    %c0_i32_1 = arith.constant 0 : i32
    return %c0_i32, %c0_i32_0 : i32, i32
  }
  func.func @transform_7(%arg0: i32) -> (i32, i32, i32) {
    %c0_i32 = arith.constant 0 : i32
    %c0_i32_0 = arith.constant 0 : i32
    %c0_i32_1 = arith.constant 0 : i32
    %c0_i32_2 = arith.constant 0 : i32
    return %c0_i32, %c0_i32_0, %c0_i32_1 : i32, i32, i32
  }
  func.func @transform_8(%arg0: i32) -> (i32, i32) {
    %c0_i32 = arith.constant 0 : i32
    %c0_i32_0 = arith.constant 0 : i32
    %c0_i32_1 = arith.constant 0 : i32
    return %c0_i32, %c0_i32_0 : i32, i32
  }
  func.func @transform_9(%arg0: i32) -> (i32, i32) {
    %c0_i32 = arith.constant 0 : i32
    %c0_i32_0 = arith.constant 0 : i32
    %c0_i32_1 = arith.constant 0 : i32
    return %c0_i32, %c0_i32_0 : i32, i32
  }
  func.func @transform_10(%arg0: i32) -> (i32, i32) {
    %c0_i32 = arith.constant 0 : i32
    %c0_i32_0 = arith.constant 0 : i32
    %c0_i32_1 = arith.constant 0 : i32
    return %c0_i32, %c0_i32_0 : i32, i32
  }
  func.func @transform_11(%arg0: i32) -> (i32, i32) {
    %c0_i32 = arith.constant 0 : i32
    %c0_i32_0 = arith.constant 0 : i32
    %c0_i32_1 = arith.constant 0 : i32
    return %c0_i32, %c0_i32_0 : i32, i32
  }
  func.func @transform_12(%arg0: i32) -> (i32, i32, i32) {
    %c0_i32 = arith.constant 0 : i32
    %c0_i32_0 = arith.constant 0 : i32
    %c0_i32_1 = arith.constant 0 : i32
    return %arg0, %c0_i32, %c0_i32_0 : i32, i32, i32
  }
}

</mosaic_0001>

<llo_original>
// kernel: cgan_discriminator_forward.1
$region0: #{cgan_discriminator_forward.1}
  #allocation0 [shape = 'u32[]', space=smem, size = 0x4, offset = 0x4, fixed_abs, tag = 'smem constant byte address 0x4 - core index']
  #allocation1 [shape = 'u32[144,128]{1,0:T(1,128)}', space=vmem, size = 0x12000, scoped, tag = 'internal scratch']
  #allocation2 [shape = 'f32[1,1]{1,0:T(1,128)S(1)}', space=vmem, size = 0x200, scoped, tag = 'scoped memory for cgan_discriminator_forward.1']
  %s0 = inlined_call_operand.vmem [shape: bf16[2,256,128], index: 0, kind: input, shape index: {}]
  %s1 = inlined_call_operand.vmem [shape: bf16[128,128], index: 1, kind: input, shape index: {}]
  %s2 = inlined_call_operand.vmem [shape: f32[1,128], index: 2, kind: input, shape index: {}]
  %s3 = inlined_call_operand.vmem [shape: bf16[64,256], index: 3, kind: input, shape index: {}]
  %s4 = inlined_call_operand.vmem [shape: bf16[9,128,128], index: 4, kind: input, shape index: {}]
  %s5 = inlined_call_operand.vmem [shape: f32[1,128], index: 5, kind: input, shape index: {}]
  %s6 = inlined_call_operand.vmem [shape: bf16[16,64], index: 6, kind: input, shape index: {}]
  %s7 = inlined_call_operand.vmem [shape: bf16[9,128,128], index: 7, kind: input, shape index: {}]
  %s8 = inlined_call_operand.vmem [shape: f32[1,128], index: 8, kind: input, shape index: {}]
  %s9 = inlined_call_operand.vmem [shape: bf16[4,16], index: 9, kind: input, shape index: {}]
  %s10 = inlined_call_operand.vmem [shape: f32[1,128], index: 10, kind: input, shape index: {}]
  %s11 = inlined_call_operand.<no memory space> [shape: f32[1,1], index: 11, kind: input, shape index: {}]
  %s12 = inlined_call_operand.vmem [shape: f32[2,1,1], index: 12, kind: output, shape index: {}]
  %s13 = sld [smem:[#allocation0]]
  $region81: #{cgan_discriminator_forward.1} parent=0
    _
  %s15 = ssub.s32 1, %s13
  %s16 = scalar_select 0, %s15, %s13
  %v17 = vstv %s11
  %18 = vst [vmem:[#allocation2] sm:$0x1] %v17
  loop: start=0, step=1, limit=4
  $region2: #{cgan_discriminator_forward.1} parent=0 // loop_pre_header
    _
  $region3: #{cgan_discriminator_forward.1} parent=0 // loop_header
    %s20 = sphi 0, %s24
    %p21 = scmp.ge.s32.totalorder %s20, 4
    %s30 = sphi 0, %s32
    %s33 = sphi 0, %s30
    %s34 = sphi 0, %s33
    %s50 = sphi 0, %s34
    %s54 = sphi 0, %s54
    %s56 = sphi 0, %s54
    %s57 = sphi 0, %s56
    %s71 = sphi 0, %s57
    %s75 = sphi 0, %s75
    %s77 = sphi 0, %s75
    %s78 = sphi 0, %s77
    %s92 = sphi 0, %s78
    %s96 = sphi 0, %s96
    %s98 = sphi 0, %s96
    %s99 = sphi 0, %s98
    %s113 = sphi 0, %s99
    %s117 = sphi 0, %s117
    %s119 = sphi 0, %s117
    %s120 = sphi 0, %s119
    %s134 = sphi 0, %s120
    %s138 = sphi 0, %s138
    %s140 = sphi 0, %s138
    %s141 = sphi 0, %s140
    %s155 = sphi 0, %s141
    %s159 = sphi 0, %s159
    %s161 = sphi 0, %s159
    %s162 = sphi 0, %s161
    %s176 = sphi 0, %s162
    %s180 = sphi 0, %s180
    %s182 = sphi 0, %s180
    %s183 = sphi 0, %s182
    %s197 = sphi 0, %s183
    %s201 = sphi 0, %s201
    %s203 = sphi 0, %s201
    %s204 = sphi 0, %s203
    %s218 = sphi 0, %s204
    %s222 = sphi 0, %s222
    %s224 = sphi 0, %s222
    %s225 = sphi 0, %s224
    %s239 = sphi 0, %s225
    %s243 = sphi 0, %s243
    %s245 = sphi 0, %s243
    %s246 = sphi 0, %s245
    %s260 = sphi 0, %s246
    %s264 = sphi 0, %s264
    %s266 = sphi 0, %s264
    %s267 = sphi 0, %s266
    %s281 = sphi 0, %s267
    %s287 = sphi 0, %s289
    %s290 = sphi 0, %s287
    %s291 = sphi 0, %s290
    %s307 = sphi 0, %s291
  $region4: #{cgan_discriminator_forward.1} parent=0 // loop_header_branch
    %23 = sbr.rel (%p21) target = $region8
  $region5: #{cgan_discriminator_forward.1} parent=0 // loop_body
    %s25 = ssub.s32 %s20, 1
    %s26 = ssub.s32 %s20, 2
    %s27 = sadd.s32 %s20, 1
    %s28 = ssub.s32 %s20, %s27
    %p29 = scmp.eq.s32.totalorder %s28, 0
    %s31 = sadd.s32 %s30, 1
    %s32 = scalar_select %p29, %s30, %s31
    %p35 = pneg %p29
    %p36 = scmp.eq.s32.totalorder %s20, 1
    %p37 = por %p35, %p36
    %p38 = scmp.ne.s32.totalorder %s30, %s33
    %p39 = scmp.eq.s32.totalorder %s20, 0
    %p40 = por %p38, %p39
    %p41 = scmp.ne.s32.totalorder %s30, %s33
    %p42 = scmp.eq.s32.totalorder %s25, 1
    %p43 = por %p41, %p42
    %p44 = scmp.ne.s32.totalorder %s33, %s34
    %p45 = scmp.eq.s32.totalorder %s25, 0
    %p46 = por %p44, %p45
    %p47 = scmp.ne.s32.totalorder %s33, %s34
    %p48 = scmp.eq.s32.totalorder %s26, 1
    %p49 = por %p47, %p48
    %p51 = scmp.ne.s32.totalorder %s34, %s50
    %p52 = scmp.eq.s32.totalorder %s26, 0
    %p53 = por %p51, %p52
    %s55 = sadd.s32 %s54, 1
    %p58 = scmp.eq.s32.totalorder %s20, 1
    %p59 = scmp.ne.s32.totalorder %s54, %s56
    %p60 = scmp.eq.s32.totalorder %s20, 0
    %p61 = por %p59, %p60
    %p62 = scmp.ne.s32.totalorder %s54, %s56
    %p63 = scmp.eq.s32.totalorder %s25, 1
    %p64 = por %p62, %p63
    %p65 = scmp.ne.s32.totalorder %s56, %s57
    %p66 = scmp.eq.s32.totalorder %s25, 0
    %p67 = por %p65, %p66
    %p68 = scmp.ne.s32.totalorder %s56, %s57
    %p69 = scmp.eq.s32.totalorder %s26, 1
    %p70 = por %p68, %p69
    %p72 = scmp.ne.s32.totalorder %s57, %s71
    %p73 = scmp.eq.s32.totalorder %s26, 0
    %p74 = por %p72, %p73
    %s76 = sadd.s32 %s75, 1
    %p79 = scmp.eq.s32.totalorder %s20, 1
    %p80 = scmp.ne.s32.totalorder %s75, %s77
    %p81 = scmp.eq.s32.totalorder %s20, 0
    %p82 = por %p80, %p81
    %p83 = scmp.ne.s32.totalorder %s75, %s77
    %p84 = scmp.eq.s32.totalorder %s25, 1
    %p85 = por %p83, %p84
    %p86 = scmp.ne.s32.totalorder %s77, %s78
    %p87 = scmp.eq.s32.totalorder %s25, 0
    %p88 = por %p86, %p87
    %p89 = scmp.ne.s32.totalorder %s77, %s78
    %p90 = scmp.eq.s32.totalorder %s26, 1
    %p91 = por %p89, %p90
    %p93 = scmp.ne.s32.totalorder %s78, %s92
    %p94 = scmp.eq.s32.totalorder %s26, 0
    %p95 = por %p93, %p94
    %s97 = sadd.s32 %s96, 1
    %p100 = scmp.eq.s32.totalorder %s20, 1
    %p101 = scmp.ne.s32.totalorder %s96, %s98
    %p102 = scmp.eq.s32.totalorder %s20, 0
    %p103 = por %p101, %p102
    %p104 = scmp.ne.s32.totalorder %s96, %s98
    %p105 = scmp.eq.s32.totalorder %s25, 1
    %p106 = por %p104, %p105
    %p107 = scmp.ne.s32.totalorder %s98, %s99
    %p108 = scmp.eq.s32.totalorder %s25, 0
    %p109 = por %p107, %p108
    %p110 = scmp.ne.s32.totalorder %s98, %s99
    %p111 = scmp.eq.s32.totalorder %s26, 1
    %p112 = por %p110, %p111
    %p114 = scmp.ne.s32.totalorder %s99, %s113
    %p115 = scmp.eq.s32.totalorder %s26, 0
    %p116 = por %p114, %p115
    %s118 = sadd.s32 %s117, 1
    %p121 = scmp.eq.s32.totalorder %s20, 1
    %p122 = scmp.ne.s32.totalorder %s117, %s119
    %p123 = scmp.eq.s32.totalorder %s20, 0
    %p124 = por %p122, %p123
    %p125 = scmp.ne.s32.totalorder %s117, %s119
    %p126 = scmp.eq.s32.totalorder %s25, 1
    %p127 = por %p125, %p126
    %p128 = scmp.ne.s32.totalorder %s119, %s120
    %p129 = scmp.eq.s32.totalorder %s25, 0
    %p130 = por %p128, %p129
    %p131 = scmp.ne.s32.totalorder %s119, %s120
    %p132 = scmp.eq.s32.totalorder %s26, 1
    %p133 = por %p131, %p132
    %p135 = scmp.ne.s32.totalorder %s120, %s134
    %p136 = scmp.eq.s32.totalorder %s26, 0
    %p137 = por %p135, %p136
    %s139 = sadd.s32 %s138, 1
    %p142 = scmp.eq.s32.totalorder %s20, 1
    %p143 = scmp.ne.s32.totalorder %s138, %s140
    %p144 = scmp.eq.s32.totalorder %s20, 0
    %p145 = por %p143, %p144
    %p146 = scmp.ne.s32.totalorder %s138, %s140
    %p147 = scmp.eq.s32.totalorder %s25, 1
    %p148 = por %p146, %p147
    %p149 = scmp.ne.s32.totalorder %s140, %s141
    %p150 = scmp.eq.s32.totalorder %s25, 0
    %p151 = por %p149, %p150
    %p152 = scmp.ne.s32.totalorder %s140, %s141
    %p153 = scmp.eq.s32.totalorder %s26, 1
    %p154 = por %p152, %p153
    %p156 = scmp.ne.s32.totalorder %s141, %s155
    %p157 = scmp.eq.s32.totalorder %s26, 0
    %p158 = por %p156, %p157
    %s160 = sadd.s32 %s159, 1
    %p163 = scmp.eq.s32.totalorder %s20, 1
    %p164 = scmp.ne.s32.totalorder %s159, %s161
    %p165 = scmp.eq.s32.totalorder %s20, 0
    %p166 = por %p164, %p165
    %p167 = scmp.ne.s32.totalorder %s159, %s161
    %p168 = scmp.eq.s32.totalorder %s25, 1
    %p169 = por %p167, %p168
    %p170 = scmp.ne.s32.totalorder %s161, %s162
    %p171 = scmp.eq.s32.totalorder %s25, 0
    %p172 = por %p170, %p171
    %p173 = scmp.ne.s32.totalorder %s161, %s162
    %p174 = scmp.eq.s32.totalorder %s26, 1
    %p175 = por %p173, %p174
    %p177 = scmp.ne.s32.totalorder %s162, %s176
    %p178 = scmp.eq.s32.totalorder %s26, 0
    %p179 = por %p177, %p178
    %s181 = sadd.s32 %s180, 1
    %p184 = scmp.eq.s32.totalorder %s20, 1
    %p185 = scmp.ne.s32.totalorder %s180, %s182
    %p186 = scmp.eq.s32.totalorder %s20, 0
    %p187 = por %p185, %p186
    %p188 = scmp.ne.s32.totalorder %s180, %s182
    %p189 = scmp.eq.s32.totalorder %s25, 1
    %p190 = por %p188, %p189
    %p191 = scmp.ne.s32.totalorder %s182, %s183
    %p192 = scmp.eq.s32.totalorder %s25, 0
    %p193 = por %p191, %p192
    %p194 = scmp.ne.s32.totalorder %s182, %s183
    %p195 = scmp.eq.s32.totalorder %s26, 1
    %p196 = por %p194, %p195
    %p198 = scmp.ne.s32.totalorder %s183, %s197
    %p199 = scmp.eq.s32.totalorder %s26, 0
    %p200 = por %p198, %p199
    %s202 = sadd.s32 %s201, 1
    %p205 = scmp.eq.s32.totalorder %s20, 1
    %p206 = scmp.ne.s32.totalorder %s201, %s203
    %p207 = scmp.eq.s32.totalorder %s20, 0
    %p208 = por %p206, %p207
    %p209 = scmp.ne.s32.totalorder %s201, %s203
    %p210 = scmp.eq.s32.totalorder %s25, 1
    %p211 = por %p209, %p210
    %p212 = scmp.ne.s32.totalorder %s203, %s204
    %p213 = scmp.eq.s32.totalorder %s25, 0
    %p214 = por %p212, %p213
    %p215 = scmp.ne.s32.totalorder %s203, %s204
    %p216 = scmp.eq.s32.totalorder %s26, 1
    %p217 = por %p215, %p216
    %p219 = scmp.ne.s32.totalorder %s204, %s218
    %p220 = scmp.eq.s32.totalorder %s26, 0
    %p221 = por %p219, %p220
    %s223 = sadd.s32 %s222, 1
    %p226 = scmp.eq.s32.totalorder %s20, 1
    %p227 = scmp.ne.s32.totalorder %s222, %s224
    %p228 = scmp.eq.s32.totalorder %s20, 0
    %p229 = por %p227, %p228
    %p230 = scmp.ne.s32.totalorder %s222, %s224
    %p231 = scmp.eq.s32.totalorder %s25, 1
    %p232 = por %p230, %p231
    %p233 = scmp.ne.s32.totalorder %s224, %s225
    %p234 = scmp.eq.s32.totalorder %s25, 0
    %p235 = por %p233, %p234
    %p236 = scmp.ne.s32.totalorder %s224, %s225
    %p237 = scmp.eq.s32.totalorder %s26, 1
    %p238 = por %p236, %p237
    %p240 = scmp.ne.s32.totalorder %s225, %s239
    %p241 = scmp.eq.s32.totalorder %s26, 0
    %p242 = por %p240, %p241
    %s244 = sadd.s32 %s243, 1
    %p247 = scmp.eq.s32.totalorder %s20, 1
    %p248 = scmp.ne.s32.totalorder %s243, %s245
    %p249 = scmp.eq.s32.totalorder %s20, 0
    %p250 = por %p248, %p249
    %p251 = scmp.ne.s32.totalorder %s243, %s245
    %p252 = scmp.eq.s32.totalorder %s25, 1
    %p253 = por %p251, %p252
    %p254 = scmp.ne.s32.totalorder %s245, %s246
    %p255 = scmp.eq.s32.totalorder %s25, 0
    %p256 = por %p254, %p255
    %p257 = scmp.ne.s32.totalorder %s245, %s246
    %p258 = scmp.eq.s32.totalorder %s26, 1
    %p259 = por %p257, %p258
    %p261 = scmp.ne.s32.totalorder %s246, %s260
    %p262 = scmp.eq.s32.totalorder %s26, 0
    %p263 = por %p261, %p262
    %s265 = sadd.s32 %s264, 1
    %p268 = scmp.eq.s32.totalorder %s20, 1
    %p269 = scmp.ne.s32.totalorder %s264, %s266
    %p270 = scmp.eq.s32.totalorder %s20, 0
    %p271 = por %p269, %p270
    %p272 = scmp.ne.s32.totalorder %s264, %s266
    %p273 = scmp.eq.s32.totalorder %s25, 1
    %p274 = por %p272, %p273
    %p275 = scmp.ne.s32.totalorder %s266, %s267
    %p276 = scmp.eq.s32.totalorder %s25, 0
    %p277 = por %p275, %p276
    %p278 = scmp.ne.s32.totalorder %s266, %s267
    %p279 = scmp.eq.s32.totalorder %s26, 1
    %p280 = por %p278, %p279
    %p282 = scmp.ne.s32.totalorder %s267, %s281
    %p283 = scmp.eq.s32.totalorder %s26, 0
    %p284 = por %p282, %p283
    %s285 = ssub.s32 %s20, %s27
    %p286 = scmp.eq.s32.totalorder %s285, 0
    %s288 = sadd.s32 %s287, 1
    %s289 = scalar_select %p286, %s287, %s288
    %p292 = pneg %p286
    %p293 = scmp.eq.s32.totalorder %s20, 1
    %p294 = por %p292, %p293
    %p295 = scmp.ne.s32.totalorder %s287, %s290
    %p296 = scmp.eq.s32.totalorder %s20, 0
    %p297 = por %p295, %p296
    %p298 = scmp.ne.s32.totalorder %s287, %s290
    %p299 = scmp.eq.s32.totalorder %s25, 1
    %p300 = por %p298, %p299
    %p301 = scmp.ne.s32.totalorder %s290, %s291
    %p302 = scmp.eq.s32.totalorder %s25, 0
    %p303 = por %p301, %p302
    %p304 = scmp.ne.s32.totalorder %s290, %s291
    %p305 = scmp.eq.s32.totalorder %s26, 1
    %p306 = por %p304, %p305
    %p308 = scmp.ne.s32.totalorder %s291, %s307
    %p309 = scmp.eq.s32.totalorder %s26, 0
    %p310 = por %p308, %p309
    %p311 = scmp.le.s32.totalorder 1, %s20
    %p312 = scmp.lt.s32.totalorder %s20, 3
    %p313 = pnand %p311, %p312
    %p314 = pneg %p313
    // Predicated region
    $region9: #{cgan_discriminator_forward.1} parent=5 // pred_check
      _
    $region10: #{cgan_discriminator_forward.1} parent=5 // pred_check_branch
      %316 = sbr.rel (%p313) target = $region12
    $region11: #{cgan_discriminator_forward.1} parent=5 // pred_region
      %s317 = ssub.s32 %s20, 1
      // Predicated region
      $region13: #{cgan_discriminator_forward.1} parent=11 // pred_check
        %p318 = pneg %p67
      $region14: #{cgan_discriminator_forward.1} parent=11 // pred_check_branch
        %320 = sbr.rel (%p318) target = $region16
      $region15: #{cgan_discriminator_forward.1} parent=11 // pred_region
        _
      $region16: #{cgan_discriminator_forward.1} parent=11 // pred_fallthru
        _
      // Predicated region
      $region17: #{cgan_discriminator_forward.1} parent=11 // pred_check
        %p321 = pneg %p88
      $region18: #{cgan_discriminator_forward.1} parent=11 // pred_check_branch
        %323 = sbr.rel (%p321) target = $region20
      $region19: #{cgan_discriminator_forward.1} parent=11 // pred_region
        _
      $region20: #{cgan_discriminator_forward.1} parent=11 // pred_fallthru
        _
      // Predicated region
      $region21: #{cgan_discriminator_forward.1} parent=11 // pred_check
        %p324 = pneg %p109
      $region22: #{cgan_discriminator_forward.1} parent=11 // pred_check_branch
        %326 = sbr.rel (%p324) target = $region24
      $region23: #{cgan_discriminator_forward.1} parent=11 // pred_region
        _
      $region24: #{cgan_discriminator_forward.1} parent=11 // pred_fallthru
        _
      // Predicated region
      $region25: #{cgan_discriminator_forward.1} parent=11 // pred_check
        %p327 = pneg %p130
      $region26: #{cgan_discriminator_forward.1} parent=11 // pred_check_branch
        %329 = sbr.rel (%p327) target = $region28
      $region27: #{cgan_discriminator_forward.1} parent=11 // pred_region
        _
      $region28: #{cgan_discriminator_forward.1} parent=11 // pred_fallthru
        _
      // Predicated region
      $region29: #{cgan_discriminator_forward.1} parent=11 // pred_check
        %p330 = pneg %p151
      $region30: #{cgan_discriminator_forward.1} parent=11 // pred_check_branch
        %332 = sbr.rel (%p330) target = $region32
      $region31: #{cgan_discriminator_forward.1} parent=11 // pred_region
        _
      $region32: #{cgan_discriminator_forward.1} parent=11 // pred_fallthru
        _
      // Predicated region
      $region33: #{cgan_discriminator_forward.1} parent=11 // pred_check
        %p333 = pneg %p172
      $region34: #{cgan_discriminator_forward.1} parent=11 // pred_check_branch
        %335 = sbr.rel (%p333) target = $region36
      $region35: #{cgan_discriminator_forward.1} parent=11 // pred_region
        _
      $region36: #{cgan_discriminator_forward.1} parent=11 // pred_fallthru
        _
      // Predicated region
      $region37: #{cgan_discriminator_forward.1} parent=11 // pred_check
        %p336 = pneg %p193
      $region38: #{cgan_discriminator_forward.1} parent=11 // pred_check_branch
        %338 = sbr.rel (%p336) target = $region40
      $region39: #{cgan_discriminator_forward.1} parent=11 // pred_region
        _
      $region40: #{cgan_discriminator_forward.1} parent=11 // pred_fallthru
        _
      // Predicated region
      $region41: #{cgan_discriminator_forward.1} parent=11 // pred_check
        %p339 = pneg %p214
      $region42: #{cgan_discriminator_forward.1} parent=11 // pred_check_branch
        %341 = sbr.rel (%p339) target = $region44
      $region43: #{cgan_discriminator_forward.1} parent=11 // pred_region
        _
      $region44: #{cgan_discriminator_forward.1} parent=11 // pred_fallthru
        _
      // Predicated region
      $region45: #{cgan_discriminator_forward.1} parent=11 // pred_check
        %p342 = pneg %p235
      $region46: #{cgan_discriminator_forward.1} parent=11 // pred_check_branch
        %344 = sbr.rel (%p342) target = $region48
      $region47: #{cgan_discriminator_forward.1} parent=11 // pred_region
        _
      $region48: #{cgan_discriminator_forward.1} parent=11 // pred_fallthru
        _
      // Predicated region
      $region49: #{cgan_discriminator_forward.1} parent=11 // pred_check
        %p345 = pneg %p256
      $region50: #{cgan_discriminator_forward.1} parent=11 // pred_check_branch
        %347 = sbr.rel (%p345) target = $region52
      $region51: #{cgan_discriminator_forward.1} parent=11 // pred_region
        _
      $region52: #{cgan_discriminator_forward.1} parent=11 // pred_fallthru
        _
      // Predicated region
      $region53: #{cgan_discriminator_forward.1} parent=11 // pred_check
        %p348 = pneg %p277
      $region54: #{cgan_discriminator_forward.1} parent=11 // pred_check_branch
        %350 = sbr.rel (%p348) target = $region56
      $region55: #{cgan_discriminator_forward.1} parent=11 // pred_region
        _
      $region56: #{cgan_discriminator_forward.1} parent=11 // pred_fallthru
        _
    $region12: #{cgan_discriminator_forward.1} parent=5 // pred_fallthru
      _
    %p351 = scmp.lt.s32.totalorder %s20, 2
    // Predicated region
    $region57: #{cgan_discriminator_forward.1} parent=5 // pred_check
      %p352 = pneg %p351
    $region58: #{cgan_discriminator_forward.1} parent=5 // pred_check_branch
      %354 = sbr.rel (%p352) target = $region60
    $region59: #{cgan_discriminator_forward.1} parent=5 // pred_region
      // Predicated region
      $region61: #{cgan_discriminator_forward.1} parent=59 // pred_check
        %p355 = pneg %p40
      $region62: #{cgan_discriminator_forward.1} parent=59 // pred_check_branch
        %357 = sbr.rel (%p355) target = $region64
      $region63: #{cgan_discriminator_forward.1} parent=59 // pred_region
        %p358 = scmp.lt.s32.totalorder %s20, 1
        %s359 = scalar_select %p358, %s20, 1
        %s360 = smul.addr %s359, 32
        %s361 = smul.addr %s360, 4
        %s362 = scalar_lea.vmem %s0, %s361
      $region64: #{cgan_discriminator_forward.1} parent=59 // pred_fallthru
        _
    $region60: #{cgan_discriminator_forward.1} parent=5 // pred_fallthru
      _
    %p363 = scmp.le.s32.totalorder 1, %s20
    %p364 = scmp.lt.s32.totalorder %s20, 3
    %p365 = pnand %p363, %p364
    %p366 = pneg %p365
    // Predicated region
    $region65: #{cgan_discriminator_forward.1} parent=5 // pred_check
      _
    $region66: #{cgan_discriminator_forward.1} parent=5 // pred_check_branch
      %368 = sbr.rel (%p365) target = $region68
    $region67: #{cgan_discriminator_forward.1} parent=5 // pred_region
      %s369 = ssub.s32 %s20, 1
      %p370 = scmp.lt.s32.totalorder %s25, 1
      %s371 = scalar_select %p370, %s25, 1
      %s372 = smul.addr %s371, 32
      %s373 = smul.addr %s372, 4
      %s374 = scalar_lea.vmem %s0, %s373
      %p375 = pneg %p46
      %p376 = pneg %p43
      %p377 = pneg %p67
      %p378 = pneg %p64
      %p379 = pneg %p88
      %p380 = pneg %p85
      %p381 = pneg %p109
      %p382 = pneg %p106
      %p383 = pneg %p130
      %p384 = pneg %p127
      %p385 = pneg %p151
      %p386 = pneg %p148
      %p387 = pneg %p172
      %p388 = pneg %p169
      %p389 = pneg %p193
      %p390 = pneg %p190
      %p391 = pneg %p214
      %p392 = pneg %p211
      %p393 = pneg %p235
      %p394 = pneg %p232
      %p395 = pneg %p256
      %p396 = pneg %p253
      %p397 = pneg %p277
      %p398 = pneg %p274
      %p399 = pneg %p303
      %p400 = pneg %p300
      %p401 = scmp.lt.s32.totalorder %s25, 1
      %s402 = scalar_select %p401, %s25, 1
      %s403 = scalar_lea.vmem %s12, %s402
      %p404 = scmp.lt.s32.totalorder %s25, 1
      %s405 = scalar_select %p404, %s25, 1
      %s406 = smul.addr %s405, 32
      %s407 = smul.addr %s406, 4
      %s408 = scalar_lea.vmem %s0, %s407
      %p409 = scmp.lt.s32.totalorder %s25, 1
      %s410 = scalar_select %p409, %s25, 1
      %s411 = scalar_lea.vmem %s12, %s410
      %v413 = vld [vmem:[%s408] sm:$0xf]
      %v414 = vld [vmem:[%s408 + $0x4] sm:$0xf]
      %v415 = vld [vmem:[%s408 + $0x8] sm:$0xf]
      %v416 = vld [vmem:[%s408 + $0xc] sm:$0xf]
      %v417 = vld [vmem:[%s408 + $0x10] sm:$0xf]
      %v418 = vld [vmem:[%s408 + $0x14] sm:$0xf]
      %v419 = vld [vmem:[%s408 + $0x18] sm:$0xf]
      %v420 = vld [vmem:[%s408 + $0x1c] sm:$0xf]
      %v421 = vld [vmem:[%s408 + $0x20] sm:$0xf]
      %v422 = vld [vmem:[%s408 + $0x24] sm:$0xf]
      %v423 = vld [vmem:[%s408 + $0x28] sm:$0xf]
      %v424 = vld [vmem:[%s408 + $0x2c] sm:$0xf]
      %v425 = vld [vmem:[%s408 + $0x30] sm:$0xf]
      %v426 = vld [vmem:[%s408 + $0x34] sm:$0xf]
      %v427 = vld [vmem:[%s408 + $0x38] sm:$0xf]
      %v428 = vld [vmem:[%s408 + $0x3c] sm:$0xf]
      %v429 = vld [vmem:[%s408 + $0x40] sm:$0xf]
      %v430 = vld [vmem:[%s408 + $0x44] sm:$0xf]
      %v431 = vld [vmem:[%s408 + $0x48] sm:$0xf]
      %v432 = vld [vmem:[%s408 + $0x4c] sm:$0xf]
      %v433 = vld [vmem:[%s408 + $0x50] sm:$0xf]
      %v434 = vld [vmem:[%s408 + $0x54] sm:$0xf]
      %v435 = vld [vmem:[%s408 + $0x58] sm:$0xf]
      %v436 = vld [vmem:[%s408 + $0x5c] sm:$0xf]
      %v437 = vld [vmem:[%s408 + $0x60] sm:$0xf]
      %v438 = vld [vmem:[%s408 + $0x64] sm:$0xf]
      %v439 = vld [vmem:[%s408 + $0x68] sm:$0xf]
      %v440 = vld [vmem:[%s408 + $0x6c] sm:$0xf]
      %v441 = vld [vmem:[%s408 + $0x70] sm:$0xf]
      %v442 = vld [vmem:[%s408 + $0x74] sm:$0xf]
      %v443 = vld [vmem:[%s408 + $0x78] sm:$0xf]
      %v444 = vld [vmem:[%s408 + $0x7c] sm:$0xf]
      %v445 = vld [vmem:[%s1] sm:$0xf]
      %v446 = vld [vmem:[%s1 + $0x4] sm:$0xf]
      %v447 = vld [vmem:[%s1 + $0x8] sm:$0xf]
      %v448 = vld [vmem:[%s1 + $0xc] sm:$0xf]
      %v449 = vld [vmem:[%s1 + $0x10] sm:$0xf]
      %v450 = vld [vmem:[%s1 + $0x14] sm:$0xf]
      %v451 = vld [vmem:[%s1 + $0x18] sm:$0xf]
      %v452 = vld [vmem:[%s1 + $0x1c] sm:$0xf]
      %v453 = vld [vmem:[%s1 + $0x20] sm:$0xf]
      %v454 = vld [vmem:[%s1 + $0x24] sm:$0xf]
      %v455 = vld [vmem:[%s1 + $0x28] sm:$0xf]
      %v456 = vld [vmem:[%s1 + $0x2c] sm:$0xf]
      %v457 = vld [vmem:[%s1 + $0x30] sm:$0xf]
      %v458 = vld [vmem:[%s1 + $0x34] sm:$0xf]
      %v459 = vld [vmem:[%s1 + $0x38] sm:$0xf]
      %v460 = vld [vmem:[%s1 + $0x3c] sm:$0xf]
      %v461 = vld [vmem:[%s2] sm:$0x1]
      %v463 = vlaneseq
      %v464 = vshrl.u32 %v463, 7
      %v465 = vsub.s32 0, %v464
      %v466 = vrot.slane %v461, %v465
      %v500 = vunpack.c.l.b16 %v413
      %v501 = vunpack.c.l.b16 %v414
      %v502 = vunpack.c.l.b16 %v415
      %v503 = vunpack.c.l.b16 %v416
      %v504 = vunpack.c.l.b16 %v417
      %v505 = vunpack.c.l.b16 %v418
      %v506 = vunpack.c.l.b16 %v419
      %v507 = vunpack.c.l.b16 %v420
      %v508 = vunpack.c.l.b16 %v421
      %v509 = vunpack.c.l.b16 %v422
      %v510 = vunpack.c.l.b16 %v423
      %v511 = vunpack.c.l.b16 %v424
      %v512 = vunpack.c.l.b16 %v425
      %v513 = vunpack.c.l.b16 %v426
      %v514 = vunpack.c.l.b16 %v427
      %v515 = vunpack.c.l.b16 %v428
      %v516 = vunpack.c.l.b16 %v429
      %v517 = vunpack.c.l.b16 %v430
      %v518 = vunpack.c.l.b16 %v431
      %v519 = vunpack.c.l.b16 %v432
      %v520 = vunpack.c.l.b16 %v433
      %v521 = vunpack.c.l.b16 %v434
      %v522 = vunpack.c.l.b16 %v435
      %v523 = vunpack.c.l.b16 %v436
      %v524 = vunpack.c.l.b16 %v437
      %v525 = vunpack.c.l.b16 %v438
      %v526 = vunpack.c.l.b16 %v439
      %v527 = vunpack.c.l.b16 %v440
      %v528 = vunpack.c.l.b16 %v441
      %v529 = vunpack.c.l.b16 %v442
      %v530 = vunpack.c.l.b16 %v443
      %v531 = vunpack.c.l.b16 %v444
      %v532 = vpack.c.b16 %v501, %v500
      %v533 = vpack.c.b16 %v503, %v502
      %v534 = vpack.c.b16 %v505, %v504
      %v535 = vpack.c.b16 %v507, %v506
      %v536 = vpack.c.b16 %v509, %v508
      %v537 = vpack.c.b16 %v511, %v510
      %v538 = vpack.c.b16 %v513, %v512
      %v539 = vpack.c.b16 %v515, %v514
      %v540 = vpack.c.b16 %v517, %v516
      %v541 = vpack.c.b16 %v519, %v518
      %v542 = vpack.c.b16 %v521, %v520
      %v543 = vpack.c.b16 %v523, %v522
      %v544 = vpack.c.b16 %v525, %v524
      %v545 = vpack.c.b16 %v527, %v526
      %v546 = vpack.c.b16 %v529, %v528
      %v547 = vpack.c.b16 %v531, %v530
      %v580 = vunpack.c.l.b16 %v445
      %v581 = vunpack.c.l.b16 %v446
      %v582 = vunpack.c.l.b16 %v447
      %v583 = vunpack.c.l.b16 %v448
      %v584 = vunpack.c.l.b16 %v449
      %v585 = vunpack.c.l.b16 %v450
      %v586 = vunpack.c.l.b16 %v451
      %v587 = vunpack.c.l.b16 %v452
      %v588 = vunpack.c.l.b16 %v453
      %v589 = vunpack.c.l.b16 %v454
      %v590 = vunpack.c.l.b16 %v455
      %v591 = vunpack.c.l.b16 %v456
      %v592 = vunpack.c.l.b16 %v457
      %v593 = vunpack.c.l.b16 %v458
      %v594 = vunpack.c.l.b16 %v459
      %v595 = vunpack.c.l.b16 %v460
      %v596 = vpack.c.b16 %v581, %v580
      %v597 = vpack.c.b16 %v583, %v582
      %v598 = vpack.c.b16 %v585, %v584
      %v599 = vpack.c.b16 %v587, %v586
      %v600 = vpack.c.b16 %v589, %v588
      %v601 = vpack.c.b16 %v591, %v590
      %v602 = vpack.c.b16 %v593, %v592
      %v603 = vpack.c.b16 %v595, %v594
      %612 = vmatprep.subr.bf16.mxu0 0
      %613 = vmatpush1.bf16.msra.mxu0 %v603
      %614 = vmatprep.subr.bf16.mxu0 0
      %615 = vmatpush1.bf16.msra.mxu0 %v602
      %616 = vmatprep.subr.bf16.mxu0 0
      %617 = vmatpush1.bf16.msra.mxu0 %v601
      %618 = vmatprep.subr.bf16.mxu0 0
      %619 = vmatpush1.bf16.msra.mxu0 %v600
      %620 = vmatprep.subr.bf16.mxu0 0
      %621 = vmatpush1.bf16.msra.mxu0 %v599
      %622 = vmatprep.subr.bf16.mxu0 0
      %623 = vmatpush1.bf16.msra.mxu0 %v598
      %624 = vmatprep.subr.bf16.mxu0 0
      %625 = vmatpush1.bf16.msra.mxu0 %v597
      %626 = vmatprep.subr.bf16.mxu0 0
      %627 = vmatpush1.bf16.msra.mxu0 %v596
      %628 = vmatprep.subr.bf16.mxu0 0
      %629 = vmatpush2.bf16.msra.mxu0 0
      %630 = vmatprep.subr.bf16.mxu0 0
      %631 = vmatpush2.bf16.msra.mxu0 0
      %632 = vmatprep.subr.bf16.mxu0 0
      %633 = vmatpush2.bf16.msra.mxu0 0
      %634 = vmatprep.subr.bf16.mxu0 0
      %635 = vmatpush2.bf16.msra.mxu0 0
      %636 = vmatprep.subr.bf16.mxu0 0
      %637 = vmatpush2.bf16.msra.mxu0 0
      %638 = vmatprep.subr.bf16.mxu0 0
      %639 = vmatpush2.bf16.msra.mxu0 0
      %640 = vmatprep.subr.bf16.mxu0 0
      %641 = vmatpush2.bf16.msra.mxu0 0
      %642 = vmatprep.subr.bf16.mxu0 0
      %643 = vmatpush2.bf16.msra.mxu0 0
      %644 = vmatprep.mubr.bf16.mxu0 0
      %645 = vmatmul.mubr.bf16.gmra.mxu0 %v532
      %v646 = vpop.f32.mrf.mxu0
      %v647 = vadd.f32 %v466, %v646
      %v648 = vpop.f32.mrf.mxu0
      %v649 = vpop.f32.mrf.mxu0
      %v650 = vadd.f32 %v466, %v649
      %v651 = vpop.f32.mrf.mxu0
      %652 = vmatprep.mubr.bf16.mxu0 0
      %653 = vmatmul.mubr.bf16.gmra.mxu0 %v533
      %v654 = vpop.f32.mrf.mxu0
      %v655 = vadd.f32 %v466, %v654
      %v656 = vpop.f32.mrf.mxu0
      %v657 = vpop.f32.mrf.mxu0
      %v658 = vadd.f32 %v466, %v657
      %v659 = vpop.f32.mrf.mxu0
      %660 = vmatprep.mubr.bf16.mxu0 0
      %661 = vmatmul.mubr.bf16.gmra.mxu0 %v534
      %v662 = vpop.f32.mrf.mxu0
      %v663 = vadd.f32 %v466, %v662
      %v664 = vpop.f32.mrf.mxu0
      %v665 = vpop.f32.mrf.mxu0
      %v666 = vadd.f32 %v466, %v665
      %v667 = vpop.f32.mrf.mxu0
      %668 = vmatprep.mubr.bf16.mxu0 0
      %669 = vmatmul.mubr.bf16.gmra.mxu0 %v535
      %v670 = vpop.f32.mrf.mxu0
      %v671 = vadd.f32 %v466, %v670
      %v672 = vpop.f32.mrf.mxu0
      %v673 = vpop.f32.mrf.mxu0
      %v674 = vadd.f32 %v466, %v673
      %v675 = vpop.f32.mrf.mxu0
      %676 = vmatprep.mubr.bf16.mxu0 0
      %677 = vmatmul.mubr.bf16.gmra.mxu0 %v536
      %v678 = vpop.f32.mrf.mxu0
      %v679 = vadd.f32 %v466, %v678
      %v680 = vpop.f32.mrf.mxu0
      %v681 = vpop.f32.mrf.mxu0
      %v682 = vadd.f32 %v466, %v681
      %v683 = vpop.f32.mrf.mxu0
      %684 = vmatprep.mubr.bf16.mxu0 0
      %685 = vmatmul.mubr.bf16.gmra.mxu0 %v537
      %v686 = vpop.f32.mrf.mxu0
      %v687 = vadd.f32 %v466, %v686
      %v688 = vpop.f32.mrf.mxu0
      %v689 = vpop.f32.mrf.mxu0
      %v690 = vadd.f32 %v466, %v689
      %v691 = vpop.f32.mrf.mxu0
      %692 = vmatprep.mubr.bf16.mxu0 0
      %693 = vmatmul.mubr.bf16.gmra.mxu0 %v538
      %v694 = vpop.f32.mrf.mxu0
      %v695 = vadd.f32 %v466, %v694
      %v696 = vpop.f32.mrf.mxu0
      %v697 = vpop.f32.mrf.mxu0
      %v698 = vadd.f32 %v466, %v697
      %v699 = vpop.f32.mrf.mxu0
      %700 = vmatprep.mubr.bf16.mxu0 0
      %701 = vmatmul.mubr.bf16.gmra.mxu0 %v539
      %v702 = vpop.f32.mrf.mxu0
      %v703 = vadd.f32 %v466, %v702
      %v704 = vpop.f32.mrf.mxu0
      %v705 = vpop.f32.mrf.mxu0
      %v706 = vadd.f32 %v466, %v705
      %v707 = vpop.f32.mrf.mxu0
      %708 = vmatprep.mubr.bf16.mxu0 0
      %709 = vmatmul.mubr.bf16.gmra.mxu0 %v540
      %v710 = vpop.f32.mrf.mxu0
      %v711 = vadd.f32 %v466, %v710
      %v712 = vpop.f32.mrf.mxu0
      %v713 = vpop.f32.mrf.mxu0
      %v714 = vadd.f32 %v466, %v713
      %v715 = vpop.f32.mrf.mxu0
      %716 = vmatprep.mubr.bf16.mxu0 0
      %717 = vmatmul.mubr.bf16.gmra.mxu0 %v541
      %v718 = vpop.f32.mrf.mxu0
      %v719 = vadd.f32 %v466, %v718
      %v720 = vpop.f32.mrf.mxu0
      %v721 = vpop.f32.mrf.mxu0
      %v722 = vadd.f32 %v466, %v721
      %v723 = vpop.f32.mrf.mxu0
      %724 = vmatprep.mubr.bf16.mxu0 0
      %725 = vmatmul.mubr.bf16.gmra.mxu0 %v542
      %v726 = vpop.f32.mrf.mxu0
      %v727 = vadd.f32 %v466, %v726
      %v728 = vpop.f32.mrf.mxu0
      %v729 = vpop.f32.mrf.mxu0
      %v730 = vadd.f32 %v466, %v729
      %v731 = vpop.f32.mrf.mxu0
      %732 = vmatprep.mubr.bf16.mxu0 0
      %733 = vmatmul.mubr.bf16.gmra.mxu0 %v543
      %v734 = vpop.f32.mrf.mxu0
      %v735 = vadd.f32 %v466, %v734
      %v736 = vpop.f32.mrf.mxu0
      %v737 = vpop.f32.mrf.mxu0
      %v738 = vadd.f32 %v466, %v737
      %v739 = vpop.f32.mrf.mxu0
      %740 = vmatprep.mubr.bf16.mxu0 0
      %741 = vmatmul.mubr.bf16.gmra.mxu0 %v544
      %v742 = vpop.f32.mrf.mxu0
      %v743 = vadd.f32 %v466, %v742
      %v744 = vpop.f32.mrf.mxu0
      %v745 = vpop.f32.mrf.mxu0
      %v746 = vadd.f32 %v466, %v745
      %v747 = vpop.f32.mrf.mxu0
      %748 = vmatprep.mubr.bf16.mxu0 0
      %749 = vmatmul.mubr.bf16.gmra.mxu0 %v545
      %v750 = vpop.f32.mrf.mxu0
      %v751 = vadd.f32 %v466, %v750
      %v752 = vpop.f32.mrf.mxu0
      %v753 = vpop.f32.mrf.mxu0
      %v754 = vadd.f32 %v466, %v753
      %v755 = vpop.f32.mrf.mxu0
      %756 = vmatprep.mubr.bf16.mxu0 0
      %757 = vmatmul.mubr.bf16.gmra.mxu0 %v546
      %v758 = vpop.f32.mrf.mxu0
      %v759 = vadd.f32 %v466, %v758
      %v760 = vpop.f32.mrf.mxu0
      %v761 = vpop.f32.mrf.mxu0
      %v762 = vadd.f32 %v466, %v761
      %v763 = vpop.f32.mrf.mxu0
      %764 = vmatprep.mubr.bf16.mxu0 0
      %765 = vmatmul.mubr.bf16.gmra.mxu0 %v547
      %v766 = vpop.f32.mrf.mxu0
      %v767 = vadd.f32 %v466, %v766
      %v768 = vpop.f32.mrf.mxu0
      %v769 = vpop.f32.mrf.mxu0
      %v770 = vadd.f32 %v466, %v769
      %v771 = vpop.f32.mrf.mxu0
      %772 = vdwg.mxu0
      %v773 = vmax.f32 %v647, 0.0
      %v774 = vmax.f32 %v650, 0.0
      %v775 = vmax.f32 %v655, 0.0
      %v776 = vmax.f32 %v658, 0.0
      %v777 = vmax.f32 %v663, 0.0
      %v778 = vmax.f32 %v666, 0.0
      %v779 = vmax.f32 %v671, 0.0
      %v780 = vmax.f32 %v674, 0.0
      %v781 = vmax.f32 %v679, 0.0
      %v782 = vmax.f32 %v682, 0.0
      %v783 = vmax.f32 %v687, 0.0
      %v784 = vmax.f32 %v690, 0.0
      %v785 = vmax.f32 %v695, 0.0
      %v786 = vmax.f32 %v698, 0.0
      %v787 = vmax.f32 %v703, 0.0
      %v788 = vmax.f32 %v706, 0.0
      %v789 = vmax.f32 %v711, 0.0
      %v790 = vmax.f32 %v714, 0.0
      %v791 = vmax.f32 %v719, 0.0
      %v792 = vmax.f32 %v722, 0.0
      %v793 = vmax.f32 %v727, 0.0
      %v794 = vmax.f32 %v730, 0.0
      %v795 = vmax.f32 %v735, 0.0
      %v796 = vmax.f32 %v738, 0.0
      %v797 = vmax.f32 %v743, 0.0
      %v798 = vmax.f32 %v746, 0.0
      %v799 = vmax.f32 %v751, 0.0
      %v800 = vmax.f32 %v754, 0.0
      %v801 = vmax.f32 %v759, 0.0
      %v802 = vmax.f32 %v762, 0.0
      %v803 = vmax.f32 %v767, 0.0
      %v804 = vmax.f32 %v770, 0.0
      %v805 = vld [vmem:[%s3] sm:$0xff]
      %v806 = vld [vmem:[%s3 + $0x8] sm:$0xff]
      %v807 = vld [vmem:[%s3 + $0x10] sm:$0xff]
      %v808 = vld [vmem:[%s3 + $0x18] sm:$0xff]
      %v809 = vld [vmem:[%s3 + $0x20] sm:$0xff]
      %v810 = vld [vmem:[%s3 + $0x28] sm:$0xff]
      %v811 = vld [vmem:[%s3 + $0x30] sm:$0xff]
      %v812 = vld [vmem:[%s3 + $0x38] sm:$0xff]
      %v813 = vpack.c.bf16 %v774, %v773
      %v814 = vpack.c.bf16 %v776, %v775
      %v815 = vpack.c.bf16 %v778, %v777
      %v816 = vpack.c.bf16 %v780, %v779
      %v817 = vpack.c.bf16 %v782, %v781
      %v818 = vpack.c.bf16 %v784, %v783
      %v819 = vpack.c.bf16 %v786, %v785
      %v820 = vpack.c.bf16 %v788, %v787
      %v821 = vpack.c.bf16 %v790, %v789
      %v822 = vpack.c.bf16 %v792, %v791
      %v823 = vpack.c.bf16 %v794, %v793
      %v824 = vpack.c.bf16 %v796, %v795
      %v825 = vpack.c.bf16 %v798, %v797
      %v826 = vpack.c.bf16 %v800, %v799
      %v827 = vpack.c.bf16 %v802, %v801
      %v828 = vpack.c.bf16 %v804, %v803
      %v837 = vunpack.c.l.b16 %v805
      %v838 = vunpack.c.h.b16 %v805
      %v839 = vunpack.c.l.b16 %v806
      %v840 = vunpack.c.h.b16 %v806
      %v841 = vunpack.c.l.b16 %v807
      %v842 = vunpack.c.h.b16 %v807
      %v843 = vunpack.c.l.b16 %v808
      %v844 = vunpack.c.h.b16 %v808
      %v845 = vunpack.c.l.b16 %v809
      %v846 = vunpack.c.h.b16 %v809
      %v847 = vunpack.c.l.b16 %v810
      %v848 = vunpack.c.h.b16 %v810
      %v849 = vunpack.c.l.b16 %v811
      %v850 = vunpack.c.h.b16 %v811
      %v851 = vunpack.c.l.b16 %v812
      %v852 = vunpack.c.h.b16 %v812
      %v853 = vpack.c.b16 %v839, %v837
      %v854 = vpack.c.b16 %v840, %v838
      %v855 = vpack.c.b16 %v843, %v841
      %v856 = vpack.c.b16 %v844, %v842
      %v857 = vpack.c.b16 %v847, %v845
      %v858 = vpack.c.b16 %v848, %v846
      %v859 = vpack.c.b16 %v851, %v849
      %v860 = vpack.c.b16 %v852, %v850
      %869 = vmatprep.subr.bf16.mxu0 0
      %870 = vmatpush1.bf16.msra.mxu0 %v820
      %871 = vmatprep.subr.bf16.mxu0 0
      %872 = vmatpush1.bf16.msra.mxu0 %v819
      %873 = vmatprep.subr.bf16.mxu0 0
      %874 = vmatpush1.bf16.msra.mxu0 %v818
      %875 = vmatprep.subr.bf16.mxu0 0
      %876 = vmatpush1.bf16.msra.mxu0 %v817
      %877 = vmatprep.subr.bf16.mxu0 0
      %878 = vmatpush1.bf16.msra.mxu0 %v816
      %879 = vmatprep.subr.bf16.mxu0 0
      %880 = vmatpush1.bf16.msra.mxu0 %v815
      %881 = vmatprep.subr.bf16.mxu0 0
      %882 = vmatpush1.bf16.msra.mxu0 %v814
      %883 = vmatprep.subr.bf16.mxu0 0
      %884 = vmatpush1.bf16.msra.mxu0 %v813
      %885 = vmatprep.subr.bf16.mxu0 0
      %886 = vmatpush2.bf16.msra.mxu0 %v828
      %887 = vmatprep.subr.bf16.mxu0 0
      %888 = vmatpush2.bf16.msra.mxu0 %v827
      %889 = vmatprep.subr.bf16.mxu0 0
      %890 = vmatpush2.bf16.msra.mxu0 %v826
      %891 = vmatprep.subr.bf16.mxu0 0
      %892 = vmatpush2.bf16.msra.mxu0 %v825
      %893 = vmatprep.subr.bf16.mxu0 0
      %894 = vmatpush2.bf16.msra.mxu0 %v824
      %895 = vmatprep.subr.bf16.mxu0 0
      %896 = vmatpush2.bf16.msra.mxu0 %v823
      %897 = vmatprep.subr.bf16.mxu0 0
      %898 = vmatpush2.bf16.msra.mxu0 %v822
      %899 = vmatprep.subr.bf16.mxu0 0
      %900 = vmatpush2.bf16.msra.mxu0 %v821
      %901 = vmatprep.mubr.bf16.mxu0 %v854
      %902 = vmatmul.mubr.bf16.gmra.mxu0 %v853
      %v903 = vpop.f32.mrf.mxu0
      %v904 = vadd.f32 0.0, %v903
      %v905 = vpop.f32.mrf.mxu0
      %v906 = vpop.f32.mrf.mxu0
      %v907 = vadd.f32 0.0, %v906
      %v908 = vpop.f32.mrf.mxu0
      %909 = vmatprep.mubr.bf16.mxu0 %v856
      %910 = vmatmul.mubr.bf16.gmra.mxu0 %v855
      %v911 = vpop.f32.mrf.mxu0
      %v912 = vadd.f32 0.0, %v911
      %v913 = vpop.f32.mrf.mxu0
      %v914 = vpop.f32.mrf.mxu0
      %v915 = vadd.f32 0.0, %v914
      %v916 = vpop.f32.mrf.mxu0
      %917 = vmatprep.mubr.bf16.mxu0 %v858
      %918 = vmatmul.mubr.bf16.gmra.mxu0 %v857
      %v919 = vpop.f32.mrf.mxu0
      %v920 = vadd.f32 0.0, %v919
      %v921 = vpop.f32.mrf.mxu0
      %v922 = vpop.f32.mrf.mxu0
      %v923 = vadd.f32 0.0, %v922
      %v924 = vpop.f32.mrf.mxu0
      %925 = vmatprep.mubr.bf16.mxu0 %v860
      %926 = vmatmul.mubr.bf16.gmra.mxu0 %v859
      %v927 = vpop.f32.mrf.mxu0
      %v928 = vadd.f32 0.0, %v927
      %v929 = vpop.f32.mrf.mxu0
      %v930 = vpop.f32.mrf.mxu0
      %v931 = vadd.f32 0.0, %v930
      %v932 = vpop.f32.mrf.mxu0
      %933 = vdwg.mxu0
      %v934 = vlaneseq
      %v935 = vshrl.u32 %v934, 7
      %v936 = vadd.s32 %v935, 8
      %v937 = vadd.s32 %v935, 16
      %v938 = vadd.s32 %v935, 24
      %v939 = vadd.s32 %v935, 32
      %v940 = vadd.s32 %v935, 40
      %v941 = vadd.s32 %v935, 48
      %v942 = vadd.s32 %v935, 56
      %v943 = vand.u32 %v935, 7
      %v944 = vand.u32 %v936, 7
      %v945 = vand.u32 %v937, 7
      %v946 = vand.u32 %v938, 7
      %v947 = vand.u32 %v939, 7
      %v948 = vand.u32 %v940, 7
      %v949 = vand.u32 %v941, 7
      %v950 = vand.u32 %v942, 7
      %v951 = vshra.s32 %v935, 3
      %v952 = vshra.s32 %v936, 3
      %v953 = vshra.s32 %v937, 3
      %v954 = vshra.s32 %v938, 3
      %v955 = vshra.s32 %v939, 3
      %v956 = vshra.s32 %v940, 3
      %v957 = vshra.s32 %v941, 3
      %v958 = vshra.s32 %v942, 3
      %v959 = vld [vmem:[%s5] sm:$0x1]
      %v961 = vlaneseq
      %v962 = vshrl.u32 %v961, 7
      %v963 = vsub.s32 0, %v962
      %v964 = vrot.slane %v959, %v963
      %v966 = vrot.slane %v904, 7
      %v967 = vrot.slane %v907, 7
      %v968 = vrot.slane %v912, 7
      %v969 = vrot.slane %v915, 7
      %v970 = vrot.slane %v920, 7
      %v971 = vrot.slane %v923, 7
      %v972 = vrot.slane %v928, 7
      %v973 = vrot.slane %v931, 7
      %vm974 = vcmp.lt.s32.totalorder %v935, 1
      %v975 = vsel %vm974, %v972, %v973
      %v976 = vsel %vm974, %v971, %v972
      %v977 = vsel %vm974, %v970, %v971
      %v978 = vsel %vm974, %v969, %v970
      %v979 = vsel %vm974, %v968, %v969
      %v980 = vsel %vm974, %v967, %v968
      %v981 = vsel %vm974, %v966, %v967
      %v982 = vsel %vm974, %v973, %v966
      %v983 = vadd.s32 %v951, 4294967295
      %v984 = vadd.s32 %v952, 4294967295
      %v985 = vadd.s32 %v953, 4294967295
      %v986 = vadd.s32 %v954, 4294967295
      %v987 = vadd.s32 %v955, 4294967295
      %v988 = vadd.s32 %v956, 4294967295
      %v989 = vadd.s32 %v957, 4294967295
      %v990 = vadd.s32 %v958, 4294967295
      %vm991 = vcmp.ge.s32.totalorder %v983, 0
      %vm992 = vcmp.ge.s32.totalorder %v984, 0
      %vm993 = vcmp.ge.s32.totalorder %v985, 0
      %vm994 = vcmp.ge.s32.totalorder %v986, 0
      %vm995 = vcmp.ge.s32.totalorder %v987, 0
      %vm996 = vcmp.ge.s32.totalorder %v988, 0
      %vm997 = vcmp.ge.s32.totalorder %v989, 0
      %vm998 = vcmp.ge.s32.totalorder %v990, 0
      %vm999 = vcmp.lt.s32.totalorder %v983, 8
      %vm1000 = vcmp.lt.s32.totalorder %v984, 8
      %vm1001 = vcmp.lt.s32.totalorder %v985, 8
      %vm1002 = vcmp.lt.s32.totalorder %v986, 8
      %vm1003 = vcmp.lt.s32.totalorder %v987, 8
      %vm1004 = vcmp.lt.s32.totalorder %v988, 8
      %vm1005 = vcmp.lt.s32.totalorder %v989, 8
      %vm1006 = vcmp.lt.s32.totalorder %v990, 8
      %vm1007 = vmand %vm991, %vm999
      %vm1008 = vmand %vm992, %vm1000
      %vm1009 = vmand %vm993, %vm1001
      %vm1010 = vmand %vm994, %vm1002
      %vm1011 = vmand %vm995, %vm1003
      %vm1012 = vmand %vm996, %vm1004
      %vm1013 = vmand %vm997, %vm1005
      %vm1014 = vmand %vm998, %vm1006
      %v1015 = vadd.s32 %v943, 4294967295
      %v1016 = vadd.s32 %v944, 4294967295
      %v1017 = vadd.s32 %v945, 4294967295
      %v1018 = vadd.s32 %v946, 4294967295
      %v1019 = vadd.s32 %v947, 4294967295
      %v1020 = vadd.s32 %v948, 4294967295
      %v1021 = vadd.s32 %v949, 4294967295
      %v1022 = vadd.s32 %v950, 4294967295
      %vm1023 = vcmp.ge.s32.totalorder %v1015, 0
      %vm1024 = vcmp.ge.s32.totalorder %v1016, 0
      %vm1025 = vcmp.ge.s32.totalorder %v1017, 0
      %vm1026 = vcmp.ge.s32.totalorder %v1018, 0
      %vm1027 = vcmp.ge.s32.totalorder %v1019, 0
      %vm1028 = vcmp.ge.s32.totalorder %v1020, 0
      %vm1029 = vcmp.ge.s32.totalorder %v1021, 0
      %vm1030 = vcmp.ge.s32.totalorder %v1022, 0
      %vm1031 = vmand %vm1007, %vm1023
      %vm1032 = vmand %vm1008, %vm1024
      %vm1033 = vmand %vm1009, %vm1025
      %vm1034 = vmand %vm1010, %vm1026
      %vm1035 = vmand %vm1011, %vm1027
      %vm1036 = vmand %vm1012, %vm1028
      %vm1037 = vmand %vm1013, %vm1029
      %vm1038 = vmand %vm1014, %vm1030
      %vm1039 = vcmp.lt.s32.totalorder %v1015, 8
      %vm1040 = vcmp.lt.s32.totalorder %v1016, 8
      %vm1041 = vcmp.lt.s32.totalorder %v1017, 8
      %vm1042 = vcmp.lt.s32.totalorder %v1018, 8
      %vm1043 = vcmp.lt.s32.totalorder %v1019, 8
      %vm1044 = vcmp.lt.s32.totalorder %v1020, 8
      %vm1045 = vcmp.lt.s32.totalorder %v1021, 8
      %vm1046 = vcmp.lt.s32.totalorder %v1022, 8
      %vm1047 = vmand %vm1031, %vm1039
      %vm1048 = vmand %vm1032, %vm1040
      %vm1049 = vmand %vm1033, %vm1041
      %vm1050 = vmand %vm1034, %vm1042
      %vm1051 = vmand %vm1035, %vm1043
      %vm1052 = vmand %vm1036, %vm1044
      %vm1053 = vmand %vm1037, %vm1045
      %vm1054 = vmand %vm1038, %vm1046
      %v1055 = vsel %vm1047, 1, 0
      %v1056 = vsel %vm1048, 1, 0
      %v1057 = vsel %vm1049, 1, 0
      %v1058 = vsel %vm1050, 1, 0
      %v1059 = vsel %vm1051, 1, 0
      %v1060 = vsel %vm1052, 1, 0
      %v1061 = vsel %vm1053, 1, 0
      %v1062 = vsel %vm1054, 1, 0
      %vm1063 = vcmp.eq.s32.totalorder %v1055, 1
      %vm1064 = vcmp.eq.s32.totalorder %v1056, 1
      %vm1065 = vcmp.eq.s32.totalorder %v1057, 1
      %vm1066 = vcmp.eq.s32.totalorder %v1058, 1
      %vm1067 = vcmp.eq.s32.totalorder %v1059, 1
      %vm1068 = vcmp.eq.s32.totalorder %v1060, 1
      %vm1069 = vcmp.eq.s32.totalorder %v1061, 1
      %vm1070 = vcmp.eq.s32.totalorder %v1062, 1
      %v1071 = vsel %vm1063, %v975, 0.0
      %v1072 = vsel %vm1064, %v982, 0.0
      %v1073 = vsel %vm1065, %v981, 0.0
      %v1074 = vsel %vm1066, %v980, 0.0
      %v1075 = vsel %vm1067, %v979, 0.0
      %v1076 = vsel %vm1068, %v978, 0.0
      %v1077 = vsel %vm1069, %v977, 0.0
      %v1078 = vsel %vm1070, %v976, 0.0
      %v1079 = vpack.c.bf16 %v1072, %v1071
      %v1080 = vpack.c.bf16 %v1074, %v1073
      %v1081 = vpack.c.bf16 %v1076, %v1075
      %v1082 = vpack.c.bf16 %v1078, %v1077
      %v1083 = vld [vmem:[%s4] sm:$0xf]
      %v1084 = vld [vmem:[%s4 + $0x4] sm:$0xf]
      %v1085 = vld [vmem:[%s4 + $0x8] sm:$0xf]
      %v1086 = vld [vmem:[%s4 + $0xc] sm:$0xf]
      %v1087 = vld [vmem:[%s4 + $0x10] sm:$0xf]
      %v1088 = vld [vmem:[%s4 + $0x14] sm:$0xf]
      %v1089 = vld [vmem:[%s4 + $0x18] sm:$0xf]
      %v1090 = vld [vmem:[%s4 + $0x1c] sm:$0xf]
      %v1091 = vld [vmem:[%s4 + $0x20] sm:$0xf]
      %v1092 = vld [vmem:[%s4 + $0x24] sm:$0xf]
      %v1093 = vld [vmem:[%s4 + $0x28] sm:$0xf]
      %v1094 = vld [vmem:[%s4 + $0x2c] sm:$0xf]
      %v1095 = vld [vmem:[%s4 + $0x30] sm:$0xf]
      %v1096 = vld [vmem:[%s4 + $0x34] sm:$0xf]
      %v1097 = vld [vmem:[%s4 + $0x38] sm:$0xf]
      %v1098 = vld [vmem:[%s4 + $0x3c] sm:$0xf]
      %v1115 = vunpack.c.l.b16 %v1083
      %v1116 = vunpack.c.l.b16 %v1084
      %v1117 = vunpack.c.l.b16 %v1085
      %v1118 = vunpack.c.l.b16 %v1086
      %v1119 = vunpack.c.l.b16 %v1087
      %v1120 = vunpack.c.l.b16 %v1088
      %v1121 = vunpack.c.l.b16 %v1089
      %v1122 = vunpack.c.l.b16 %v1090
      %v1123 = vunpack.c.l.b16 %v1091
      %v1124 = vunpack.c.l.b16 %v1092
      %v1125 = vunpack.c.l.b16 %v1093
      %v1126 = vunpack.c.l.b16 %v1094
      %v1127 = vunpack.c.l.b16 %v1095
      %v1128 = vunpack.c.l.b16 %v1096
      %v1129 = vunpack.c.l.b16 %v1097
      %v1130 = vunpack.c.l.b16 %v1098
      %v1131 = vpack.c.b16 %v1116, %v1115
      %v1132 = vpack.c.b16 %v1118, %v1117
      %v1133 = vpack.c.b16 %v1120, %v1119
      %v1134 = vpack.c.b16 %v1122, %v1121
      %v1135 = vpack.c.b16 %v1124, %v1123
      %v1136 = vpack.c.b16 %v1126, %v1125
      %v1137 = vpack.c.b16 %v1128, %v1127
      %v1138 = vpack.c.b16 %v1130, %v1129
      %1147 = vmatprep.subr.bf16.mxu0 0
      %1148 = vmatpush1.bf16.msra.mxu0 %v1138
      %1149 = vmatprep.subr.bf16.mxu0 0
      %1150 = vmatpush1.bf16.msra.mxu0 %v1137
      %1151 = vmatprep.subr.bf16.mxu0 0
      %1152 = vmatpush1.bf16.msra.mxu0 %v1136
      %1153 = vmatprep.subr.bf16.mxu0 0
      %1154 = vmatpush1.bf16.msra.mxu0 %v1135
      %1155 = vmatprep.subr.bf16.mxu0 0
      %1156 = vmatpush1.bf16.msra.mxu0 %v1134
      %1157 = vmatprep.subr.bf16.mxu0 0
      %1158 = vmatpush1.bf16.msra.mxu0 %v1133
      %1159 = vmatprep.subr.bf16.mxu0 0
      %1160 = vmatpush1.bf16.msra.mxu0 %v1132
      %1161 = vmatprep.subr.bf16.mxu0 0
      %1162 = vmatpush1.bf16.msra.mxu0 %v1131
      %1163 = vmatprep.subr.bf16.mxu0 0
      %1164 = vmatpush2.bf16.msra.mxu0 0
      %1165 = vmatprep.subr.bf16.mxu0 0
      %1166 = vmatpush2.bf16.msra.mxu0 0
      %1167 = vmatprep.subr.bf16.mxu0 0
      %1168 = vmatpush2.bf16.msra.mxu0 0
      %1169 = vmatprep.subr.bf16.mxu0 0
      %1170 = vmatpush2.bf16.msra.mxu0 0
      %1171 = vmatprep.subr.bf16.mxu0 0
      %1172 = vmatpush2.bf16.msra.mxu0 0
      %1173 = vmatprep.subr.bf16.mxu0 0
      %1174 = vmatpush2.bf16.msra.mxu0 0
      %1175 = vmatprep.subr.bf16.mxu0 0
      %1176 = vmatpush2.bf16.msra.mxu0 0
      %1177 = vmatprep.subr.bf16.mxu0 0
      %1178 = vmatpush2.bf16.msra.mxu0 0
      %1179 = vmatprep.mubr.bf16.mxu0 0
      %1180 = vmatmul.mubr.bf16.gmra.mxu0 %v1079
      %v1181 = vpop.f32.mrf.mxu0
      %v1182 = vadd.f32 0.0, %v1181
      %v1183 = vpop.f32.mrf.mxu0
      %v1184 = vpop.f32.mrf.mxu0
      %v1185 = vadd.f32 0.0, %v1184
      %v1186 = vpop.f32.mrf.mxu0
      %1187 = vmatprep.mubr.bf16.mxu0 0
      %1188 = vmatmul.mubr.bf16.gmra.mxu0 %v1080
      %v1189 = vpop.f32.mrf.mxu0
      %v1190 = vadd.f32 0.0, %v1189
      %v1191 = vpop.f32.mrf.mxu0
      %v1192 = vpop.f32.mrf.mxu0
      %v1193 = vadd.f32 0.0, %v1192
      %v1194 = vpop.f32.mrf.mxu0
      %1195 = vmatprep.mubr.bf16.mxu0 0
      %1196 = vmatmul.mubr.bf16.gmra.mxu0 %v1081
      %v1197 = vpop.f32.mrf.mxu0
      %v1198 = vadd.f32 0.0, %v1197
      %v1199 = vpop.f32.mrf.mxu0
      %v1200 = vpop.f32.mrf.mxu0
      %v1201 = vadd.f32 0.0, %v1200
      %v1202 = vpop.f32.mrf.mxu0
      %1203 = vmatprep.mubr.bf16.mxu0 0
      %1204 = vmatmul.mubr.bf16.gmra.mxu0 %v1082
      %v1205 = vpop.f32.mrf.mxu0
      %v1206 = vadd.f32 0.0, %v1205
      %v1207 = vpop.f32.mrf.mxu0
      %v1208 = vpop.f32.mrf.mxu0
      %v1209 = vadd.f32 0.0, %v1208
      %v1210 = vpop.f32.mrf.mxu0
      %1211 = vdwg.mxu0
      %v1212 = vadd.f32 %v964, %v1182
      %v1213 = vadd.f32 %v964, %v1185
      %v1214 = vadd.f32 %v964, %v1190
      %v1215 = vadd.f32 %v964, %v1193
      %v1216 = vadd.f32 %v964, %v1198
      %v1217 = vadd.f32 %v964, %v1201
      %v1218 = vadd.f32 %v964, %v1206
      %v1219 = vadd.f32 %v964, %v1209
      %vm1220 = vcmp.ge.s32.totalorder %v943, 0
      %vm1221 = vcmp.ge.s32.totalorder %v944, 0
      %vm1222 = vcmp.ge.s32.totalorder %v945, 0
      %vm1223 = vcmp.ge.s32.totalorder %v946, 0
      %vm1224 = vcmp.ge.s32.totalorder %v947, 0
      %vm1225 = vcmp.ge.s32.totalorder %v948, 0
      %vm1226 = vcmp.ge.s32.totalorder %v949, 0
      %vm1227 = vcmp.ge.s32.totalorder %v950, 0
      %vm1228 = vmand %vm1007, %vm1220
      %vm1229 = vmand %vm1008, %vm1221
      %vm1230 = vmand %vm1009, %vm1222
      %vm1231 = vmand %vm1010, %vm1223
      %vm1232 = vmand %vm1011, %vm1224
      %vm1233 = vmand %vm1012, %vm1225
      %vm1234 = vmand %vm1013, %vm1226
      %vm1235 = vmand %vm1014, %vm1227
      %vm1236 = vcmp.lt.s32.totalorder %v943, 8
      %vm1237 = vcmp.lt.s32.totalorder %v944, 8
      %vm1238 = vcmp.lt.s32.totalorder %v945, 8
      %vm1239 = vcmp.lt.s32.totalorder %v946, 8
      %vm1240 = vcmp.lt.s32.totalorder %v947, 8
      %vm1241 = vcmp.lt.s32.totalorder %v948, 8
      %vm1242 = vcmp.lt.s32.totalorder %v949, 8
      %vm1243 = vcmp.lt.s32.totalorder %v950, 8
      %vm1244 = vmand %vm1228, %vm1236
      %vm1245 = vmand %vm1229, %vm1237
      %vm1246 = vmand %vm1230, %vm1238
      %vm1247 = vmand %vm1231, %vm1239
      %vm1248 = vmand %vm1232, %vm1240
      %vm1249 = vmand %vm1233, %vm1241
      %vm1250 = vmand %vm1234, %vm1242
      %vm1251 = vmand %vm1235, %vm1243
      %v1252 = vsel %vm1244, 1, 0
      %v1253 = vsel %vm1245, 1, 0
      %v1254 = vsel %vm1246, 1, 0
      %v1255 = vsel %vm1247, 1, 0
      %v1256 = vsel %vm1248, 1, 0
      %v1257 = vsel %vm1249, 1, 0
      %v1258 = vsel %vm1250, 1, 0
      %v1259 = vsel %vm1251, 1, 0
      %vm1260 = vcmp.eq.s32.totalorder %v1252, 1
      %vm1261 = vcmp.eq.s32.totalorder %v1253, 1
      %vm1262 = vcmp.eq.s32.totalorder %v1254, 1
      %vm1263 = vcmp.eq.s32.totalorder %v1255, 1
      %vm1264 = vcmp.eq.s32.totalorder %v1256, 1
      %vm1265 = vcmp.eq.s32.totalorder %v1257, 1
      %vm1266 = vcmp.eq.s32.totalorder %v1258, 1
      %vm1267 = vcmp.eq.s32.totalorder %v1259, 1
      %v1268 = vsel %vm1260, %v931, 0.0
      %v1269 = vsel %vm1261, %v904, 0.0
      %v1270 = vsel %vm1262, %v907, 0.0
      %v1271 = vsel %vm1263, %v912, 0.0
      %v1272 = vsel %vm1264, %v915, 0.0
      %v1273 = vsel %vm1265, %v920, 0.0
      %v1274 = vsel %vm1266, %v923, 0.0
      %v1275 = vsel %vm1267, %v928, 0.0
      %v1276 = vpack.c.bf16 %v1269, %v1268
      %v1277 = vpack.c.bf16 %v1271, %v1270
      %v1278 = vpack.c.bf16 %v1273, %v1272
      %v1279 = vpack.c.bf16 %v1275, %v1274
      %s1280 = scalar_lea.vmem %s4, 64
      %v1281 = vld [vmem:[%s1280] sm:$0xf]
      %v1282 = vld [vmem:[%s1280 + $0x4] sm:$0xf]
      %v1283 = vld [vmem:[%s1280 + $0x8] sm:$0xf]
      %v1284 = vld [vmem:[%s1280 + $0xc] sm:$0xf]
      %v1285 = vld [vmem:[%s1280 + $0x10] sm:$0xf]
      %v1286 = vld [vmem:[%s1280 + $0x14] sm:$0xf]
      %v1287 = vld [vmem:[%s1280 + $0x18] sm:$0xf]
      %v1288 = vld [vmem:[%s1280 + $0x1c] sm:$0xf]
      %v1289 = vld [vmem:[%s1280 + $0x20] sm:$0xf]
      %v1290 = vld [vmem:[%s1280 + $0x24] sm:$0xf]
      %v1291 = vld [vmem:[%s1280 + $0x28] sm:$0xf]
      %v1292 = vld [vmem:[%s1280 + $0x2c] sm:$0xf]
      %v1293 = vld [vmem:[%s1280 + $0x30] sm:$0xf]
      %v1294 = vld [vmem:[%s1280 + $0x34] sm:$0xf]
      %v1295 = vld [vmem:[%s1280 + $0x38] sm:$0xf]
      %v1296 = vld [vmem:[%s1280 + $0x3c] sm:$0xf]
      %v1313 = vunpack.c.l.b16 %v1281
      %v1314 = vunpack.c.l.b16 %v1282
      %v1315 = vunpack.c.l.b16 %v1283
      %v1316 = vunpack.c.l.b16 %v1284
      %v1317 = vunpack.c.l.b16 %v1285
      %v1318 = vunpack.c.l.b16 %v1286
      %v1319 = vunpack.c.l.b16 %v1287
      %v1320 = vunpack.c.l.b16 %v1288
      %v1321 = vunpack.c.l.b16 %v1289
      %v1322 = vunpack.c.l.b16 %v1290
      %v1323 = vunpack.c.l.b16 %v1291
      %v1324 = vunpack.c.l.b16 %v1292
      %v1325 = vunpack.c.l.b16 %v1293
      %v1326 = vunpack.c.l.b16 %v1294
      %v1327 = vunpack.c.l.b16 %v1295
      %v1328 = vunpack.c.l.b16 %v1296
      %v1329 = vpack.c.b16 %v1314, %v1313
      %v1330 = vpack.c.b16 %v1316, %v1315
      %v1331 = vpack.c.b16 %v1318, %v1317
      %v1332 = vpack.c.b16 %v1320, %v1319
      %v1333 = vpack.c.b16 %v1322, %v1321
      %v1334 = vpack.c.b16 %v1324, %v1323
      %v1335 = vpack.c.b16 %v1326, %v1325
      %v1336 = vpack.c.b16 %v1328, %v1327
      %1345 = vmatprep.subr.bf16.mxu0 0
      %1346 = vmatpush1.bf16.msra.mxu0 %v1336
      %1347 = vmatprep.subr.bf16.mxu0 0
      %1348 = vmatpush1.bf16.msra.mxu0 %v1335
      %1349 = vmatprep.subr.bf16.mxu0 0
      %1350 = vmatpush1.bf16.msra.mxu0 %v1334
      %1351 = vmatprep.subr.bf16.mxu0 0
      %1352 = vmatpush1.bf16.msra.mxu0 %v1333
      %1353 = vmatprep.subr.bf16.mxu0 0
      %1354 = vmatpush1.bf16.msra.mxu0 %v1332
      %1355 = vmatprep.subr.bf16.mxu0 0
      %1356 = vmatpush1.bf16.msra.mxu0 %v1331
      %1357 = vmatprep.subr.bf16.mxu0 0
      %1358 = vmatpush1.bf16.msra.mxu0 %v1330
      %1359 = vmatprep.subr.bf16.mxu0 0
      %1360 = vmatpush1.bf16.msra.mxu0 %v1329
      %1361 = vmatprep.subr.bf16.mxu0 0
      %1362 = vmatpush2.bf16.msra.mxu0 0
      %1363 = vmatprep.subr.bf16.mxu0 0
      %1364 = vmatpush2.bf16.msra.mxu0 0
      %1365 = vmatprep.subr.bf16.mxu0 0
      %1366 = vmatpush2.bf16.msra.mxu0 0
      %1367 = vmatprep.subr.bf16.mxu0 0
      %1368 = vmatpush2.bf16.msra.mxu0 0
      %1369 = vmatprep.subr.bf16.mxu0 0
      %1370 = vmatpush2.bf16.msra.mxu0 0
      %1371 = vmatprep.subr.bf16.mxu0 0
      %1372 = vmatpush2.bf16.msra.mxu0 0
      %1373 = vmatprep.subr.bf16.mxu0 0
      %1374 = vmatpush2.bf16.msra.mxu0 0
      %1375 = vmatprep.subr.bf16.mxu0 0
      %1376 = vmatpush2.bf16.msra.mxu0 0
      %1377 = vmatprep.mubr.bf16.mxu0 0
      %1378 = vmatmul.mubr.bf16.gmra.mxu0 %v1276
      %v1379 = vpop.f32.mrf.mxu0
      %v1380 = vadd.f32 0.0, %v1379
      %v1381 = vpop.f32.mrf.mxu0
      %v1382 = vpop.f32.mrf.mxu0
      %v1383 = vadd.f32 0.0, %v1382
      %v1384 = vpop.f32.mrf.mxu0
      %1385 = vmatprep.mubr.bf16.mxu0 0
      %1386 = vmatmul.mubr.bf16.gmra.mxu0 %v1277
      %v1387 = vpop.f32.mrf.mxu0
      %v1388 = vadd.f32 0.0, %v1387
      %v1389 = vpop.f32.mrf.mxu0
      %v1390 = vpop.f32.mrf.mxu0
      %v1391 = vadd.f32 0.0, %v1390
      %v1392 = vpop.f32.mrf.mxu0
      %1393 = vmatprep.mubr.bf16.mxu0 0
      %1394 = vmatmul.mubr.bf16.gmra.mxu0 %v1278
      %v1395 = vpop.f32.mrf.mxu0
      %v1396 = vadd.f32 0.0, %v1395
      %v1397 = vpop.f32.mrf.mxu0
      %v1398 = vpop.f32.mrf.mxu0
      %v1399 = vadd.f32 0.0, %v1398
      %v1400 = vpop.f32.mrf.mxu0
      %1401 = vmatprep.mubr.bf16.mxu0 0
      %1402 = vmatmul.mubr.bf16.gmra.mxu0 %v1279
      %v1403 = vpop.f32.mrf.mxu0
      %v1404 = vadd.f32 0.0, %v1403
      %v1405 = vpop.f32.mrf.mxu0
      %v1406 = vpop.f32.mrf.mxu0
      %v1407 = vadd.f32 0.0, %v1406
      %v1408 = vpop.f32.mrf.mxu0
      %1409 = vdwg.mxu0
      %v1410 = vadd.f32 %v1212, %v1380
      %v1411 = vadd.f32 %v1213, %v1383
      %v1412 = vadd.f32 %v1214, %v1388
      %v1413 = vadd.f32 %v1215, %v1391
      %v1414 = vadd.f32 %v1216, %v1396
      %v1415 = vadd.f32 %v1217, %v1399
      %v1416 = vadd.f32 %v1218, %v1404
      %v1417 = vadd.f32 %v1219, %v1407
      %v1418 = vrot.slane %v904, 1
      %v1419 = vrot.slane %v907, 1
      %v1420 = vrot.slane %v912, 1
      %v1421 = vrot.slane %v915, 1
      %v1422 = vrot.slane %v920, 1
      %v1423 = vrot.slane %v923, 1
      %v1424 = vrot.slane %v928, 1
      %v1425 = vrot.slane %v931, 1
      %vm1426 = vcmp.lt.s32.totalorder %v935, 7
      %v1427 = vsel %vm1426, %v1424, %v1425
      %v1428 = vsel %vm1426, %v1423, %v1424
      %v1429 = vsel %vm1426, %v1422, %v1423
      %v1430 = vsel %vm1426, %v1421, %v1422
      %v1431 = vsel %vm1426, %v1420, %v1421
      %v1432 = vsel %vm1426, %v1419, %v1420
      %v1433 = vsel %vm1426, %v1418, %v1419
      %v1434 = vsel %vm1426, %v1425, %v1418
      %v1435 = vadd.s32 %v943, 1
      %v1436 = vadd.s32 %v944, 1
      %v1437 = vadd.s32 %v945, 1
      %v1438 = vadd.s32 %v946, 1
      %v1439 = vadd.s32 %v947, 1
      %v1440 = vadd.s32 %v948, 1
      %v1441 = vadd.s32 %v949, 1
      %v1442 = vadd.s32 %v950, 1
      %vm1443 = vcmp.ge.s32.totalorder %v1435, 0
      %vm1444 = vcmp.ge.s32.totalorder %v1436, 0
      %vm1445 = vcmp.ge.s32.totalorder %v1437, 0
      %vm1446 = vcmp.ge.s32.totalorder %v1438, 0
      %vm1447 = vcmp.ge.s32.totalorder %v1439, 0
      %vm1448 = vcmp.ge.s32.totalorder %v1440, 0
      %vm1449 = vcmp.ge.s32.totalorder %v1441, 0
      %vm1450 = vcmp.ge.s32.totalorder %v1442, 0
      %vm1451 = vmand %vm1007, %vm1443
      %vm1452 = vmand %vm1008, %vm1444
      %vm1453 = vmand %vm1009, %vm1445
      %vm1454 = vmand %vm1010, %vm1446
      %vm1455 = vmand %vm1011, %vm1447
      %vm1456 = vmand %vm1012, %vm1448
      %vm1457 = vmand %vm1013, %vm1449
      %vm1458 = vmand %vm1014, %vm1450
      %vm1459 = vcmp.lt.s32.totalorder %v1435, 8
      %vm1460 = vcmp.lt.s32.totalorder %v1436, 8
      %vm1461 = vcmp.lt.s32.totalorder %v1437, 8
      %vm1462 = vcmp.lt.s32.totalorder %v1438, 8
      %vm1463 = vcmp.lt.s32.totalorder %v1439, 8
      %vm1464 = vcmp.lt.s32.totalorder %v1440, 8
      %vm1465 = vcmp.lt.s32.totalorder %v1441, 8
      %vm1466 = vcmp.lt.s32.totalorder %v1442, 8
      %vm1467 = vmand %vm1451, %vm1459
      %vm1468 = vmand %vm1452, %vm1460
      %vm1469 = vmand %vm1453, %vm1461
      %vm1470 = vmand %vm1454, %vm1462
      %vm1471 = vmand %vm1455, %vm1463
      %vm1472 = vmand %vm1456, %vm1464
      %vm1473 = vmand %vm1457, %vm1465
      %vm1474 = vmand %vm1458, %vm1466
      %v1475 = vsel %vm1467, 1, 0
      %v1476 = vsel %vm1468, 1, 0
      %v1477 = vsel %vm1469, 1, 0
      %v1478 = vsel %vm1470, 1, 0
      %v1479 = vsel %vm1471, 1, 0
      %v1480 = vsel %vm1472, 1, 0
      %v1481 = vsel %vm1473, 1, 0
      %v1482 = vsel %vm1474, 1, 0
      %vm1483 = vcmp.eq.s32.totalorder %v1475, 1
      %vm1484 = vcmp.eq.s32.totalorder %v1476, 1
      %vm1485 = vcmp.eq.s32.totalorder %v1477, 1
      %vm1486 = vcmp.eq.s32.totalorder %v1478, 1
      %vm1487 = vcmp.eq.s32.totalorder %v1479, 1
      %vm1488 = vcmp.eq.s32.totalorder %v1480, 1
      %vm1489 = vcmp.eq.s32.totalorder %v1481, 1
      %vm1490 = vcmp.eq.s32.totalorder %v1482, 1
      %v1491 = vsel %vm1483, %v1434, 0.0
      %v1492 = vsel %vm1484, %v1433, 0.0
      %v1493 = vsel %vm1485, %v1432, 0.0
      %v1494 = vsel %vm1486, %v1431, 0.0
      %v1495 = vsel %vm1487, %v1430, 0.0
      %v1496 = vsel %vm1488, %v1429, 0.0
      %v1497 = vsel %vm1489, %v1428, 0.0
      %v1498 = vsel %vm1490, %v1427, 0.0
      %v1499 = vpack.c.bf16 %v1492, %v1491
      %v1500 = vpack.c.bf16 %v1494, %v1493
      %v1501 = vpack.c.bf16 %v1496, %v1495
      %v1502 = vpack.c.bf16 %v1498, %v1497
      %s1503 = scalar_lea.vmem %s4, 128
      %v1504 = vld [vmem:[%s1503] sm:$0xf]
      %v1505 = vld [vmem:[%s1503 + $0x4] sm:$0xf]
      %v1506 = vld [vmem:[%s1503 + $0x8] sm:$0xf]
      %v1507 = vld [vmem:[%s1503 + $0xc] sm:$0xf]
      %v1508 = vld [vmem:[%s1503 + $0x10] sm:$0xf]
      %v1509 = vld [vmem:[%s1503 + $0x14] sm:$0xf]
      %v1510 = vld [vmem:[%s1503 + $0x18] sm:$0xf]
      %v1511 = vld [vmem:[%s1503 + $0x1c] sm:$0xf]
      %v1512 = vld [vmem:[%s1503 + $0x20] sm:$0xf]
      %v1513 = vld [vmem:[%s1503 + $0x24] sm:$0xf]
      %v1514 = vld [vmem:[%s1503 + $0x28] sm:$0xf]
      %v1515 = vld [vmem:[%s1503 + $0x2c] sm:$0xf]
      %v1516 = vld [vmem:[%s1503 + $0x30] sm:$0xf]
      %v1517 = vld [vmem:[%s1503 + $0x34] sm:$0xf]
      %v1518 = vld [vmem:[%s1503 + $0x38] sm:$0xf]
      %v1519 = vld [vmem:[%s1503 + $0x3c] sm:$0xf]
      %v1536 = vunpack.c.l.b16 %v1504
      %v1537 = vunpack.c.l.b16 %v1505
      %v1538 = vunpack.c.l.b16 %v1506
      %v1539 = vunpack.c.l.b16 %v1507
      %v1540 = vunpack.c.l.b16 %v1508
      %v1541 = vunpack.c.l.b16 %v1509
      %v1542 = vunpack.c.l.b16 %v1510
      %v1543 = vunpack.c.l.b16 %v1511
      %v1544 = vunpack.c.l.b16 %v1512
      %v1545 = vunpack.c.l.b16 %v1513
      %v1546 = vunpack.c.l.b16 %v1514
      %v1547 = vunpack.c.l.b16 %v1515
      %v1548 = vunpack.c.l.b16 %v1516
      %v1549 = vunpack.c.l.b16 %v1517
      %v1550 = vunpack.c.l.b16 %v1518
      %v1551 = vunpack.c.l.b16 %v1519
      %v1552 = vpack.c.b16 %v1537, %v1536
      %v1553 = vpack.c.b16 %v1539, %v1538
      %v1554 = vpack.c.b16 %v1541, %v1540
      %v1555 = vpack.c.b16 %v1543, %v1542
      %v1556 = vpack.c.b16 %v1545, %v1544
      %v1557 = vpack.c.b16 %v1547, %v1546
      %v1558 = vpack.c.b16 %v1549, %v1548
      %v1559 = vpack.c.b16 %v1551, %v1550
      %1568 = vmatprep.subr.bf16.mxu0 0
      %1569 = vmatpush1.bf16.msra.mxu0 %v1559
      %1570 = vmatprep.subr.bf16.mxu0 0
      %1571 = vmatpush1.bf16.msra.mxu0 %v1558
      %1572 = vmatprep.subr.bf16.mxu0 0
      %1573 = vmatpush1.bf16.msra.mxu0 %v1557
      %1574 = vmatprep.subr.bf16.mxu0 0
      %1575 = vmatpush1.bf16.msra.mxu0 %v1556
      %1576 = vmatprep.subr.bf16.mxu0 0
      %1577 = vmatpush1.bf16.msra.mxu0 %v1555
      %1578 = vmatprep.subr.bf16.mxu0 0
      %1579 = vmatpush1.bf16.msra.mxu0 %v1554
      %1580 = vmatprep.subr.bf16.mxu0 0
      %1581 = vmatpush1.bf16.msra.mxu0 %v1553
      %1582 = vmatprep.subr.bf16.mxu0 0
      %1583 = vmatpush1.bf16.msra.mxu0 %v1552
      %1584 = vmatprep.subr.bf16.mxu0 0
      %1585 = vmatpush2.bf16.msra.mxu0 0
      %1586 = vmatprep.subr.bf16.mxu0 0
      %1587 = vmatpush2.bf16.msra.mxu0 0
      %1588 = vmatprep.subr.bf16.mxu0 0
      %1589 = vmatpush2.bf16.msra.mxu0 0
      %1590 = vmatprep.subr.bf16.mxu0 0
      %1591 = vmatpush2.bf16.msra.mxu0 0
      %1592 = vmatprep.subr.bf16.mxu0 0
      %1593 = vmatpush2.bf16.msra.mxu0 0
      %1594 = vmatprep.subr.bf16.mxu0 0
      %1595 = vmatpush2.bf16.msra.mxu0 0
      %1596 = vmatprep.subr.bf16.mxu0 0
      %1597 = vmatpush2.bf16.msra.mxu0 0
      %1598 = vmatprep.subr.bf16.mxu0 0
      %1599 = vmatpush2.bf16.msra.mxu0 0
      %1600 = vmatprep.mubr.bf16.mxu0 0
      %1601 = vmatmul.mubr.bf16.gmra.mxu0 %v1499
      %v1602 = vpop.f32.mrf.mxu0
      %v1603 = vadd.f32 0.0, %v1602
      %v1604 = vpop.f32.mrf.mxu0
      %v1605 = vpop.f32.mrf.mxu0
      %v1606 = vadd.f32 0.0, %v1605
      %v1607 = vpop.f32.mrf.mxu0
      %1608 = vmatprep.mubr.bf16.mxu0 0
      %1609 = vmatmul.mubr.bf16.gmra.mxu0 %v1500
      %v1610 = vpop.f32.mrf.mxu0
      %v1611 = vadd.f32 0.0, %v1610
      %v1612 = vpop.f32.mrf.mxu0
      %v1613 = vpop.f32.mrf.mxu0
      %v1614 = vadd.f32 0.0, %v1613
      %v1615 = vpop.f32.mrf.mxu0
      %1616 = vmatprep.mubr.bf16.mxu0 0
      %1617 = vmatmul.mubr.bf16.gmra.mxu0 %v1501
      %v1618 = vpop.f32.mrf.mxu0
      %v1619 = vadd.f32 0.0, %v1618
      %v1620 = vpop.f32.mrf.mxu0
      %v1621 = vpop.f32.mrf.mxu0
      %v1622 = vadd.f32 0.0, %v1621
      %v1623 = vpop.f32.mrf.mxu0
      %1624 = vmatprep.mubr.bf16.mxu0 0
      %1625 = vmatmul.mubr.bf16.gmra.mxu0 %v1502
      %v1626 = vpop.f32.mrf.mxu0
      %v1627 = vadd.f32 0.0, %v1626
      %v1628 = vpop.f32.mrf.mxu0
      %v1629 = vpop.f32.mrf.mxu0
      %v1630 = vadd.f32 0.0, %v1629
      %v1631 = vpop.f32.mrf.mxu0
      %1632 = vdwg.mxu0
      %v1633 = vadd.f32 %v1410, %v1603
      %v1634 = vadd.f32 %v1411, %v1606
      %v1635 = vadd.f32 %v1412, %v1611
      %v1636 = vadd.f32 %v1413, %v1614
      %v1637 = vadd.f32 %v1414, %v1619
      %v1638 = vadd.f32 %v1415, %v1622
      %v1639 = vadd.f32 %v1416, %v1627
      %v1640 = vadd.f32 %v1417, %v1630
      %vm1641 = vcmp.ge.s32.totalorder %v951, 0
      %vm1642 = vcmp.ge.s32.totalorder %v952, 0
      %vm1643 = vcmp.ge.s32.totalorder %v953, 0
      %vm1644 = vcmp.ge.s32.totalorder %v954, 0
      %vm1645 = vcmp.ge.s32.totalorder %v955, 0
      %vm1646 = vcmp.ge.s32.totalorder %v956, 0
      %vm1647 = vcmp.ge.s32.totalorder %v957, 0
      %vm1648 = vcmp.ge.s32.totalorder %v958, 0
      %vm1649 = vcmp.lt.s32.totalorder %v951, 8
      %vm1650 = vcmp.lt.s32.totalorder %v952, 8
      %vm1651 = vcmp.lt.s32.totalorder %v953, 8
      %vm1652 = vcmp.lt.s32.totalorder %v954, 8
      %vm1653 = vcmp.lt.s32.totalorder %v955, 8
      %vm1654 = vcmp.lt.s32.totalorder %v956, 8
      %vm1655 = vcmp.lt.s32.totalorder %v957, 8
      %vm1656 = vcmp.lt.s32.totalorder %v958, 8
      %vm1657 = vmand %vm1641, %vm1649
      %vm1658 = vmand %vm1642, %vm1650
      %vm1659 = vmand %vm1643, %vm1651
      %vm1660 = vmand %vm1644, %vm1652
      %vm1661 = vmand %vm1645, %vm1653
      %vm1662 = vmand %vm1646, %vm1654
      %vm1663 = vmand %vm1647, %vm1655
      %vm1664 = vmand %vm1648, %vm1656
      %vm1665 = vmand %vm1657, %vm1023
      %vm1666 = vmand %vm1658, %vm1024
      %vm1667 = vmand %vm1659, %vm1025
      %vm1668 = vmand %vm1660, %vm1026
      %vm1669 = vmand %vm1661, %vm1027
      %vm1670 = vmand %vm1662, %vm1028
      %vm1671 = vmand %vm1663, %vm1029
      %vm1672 = vmand %vm1664, %vm1030
      %vm1673 = vmand %vm1665, %vm1039
      %vm1674 = vmand %vm1666, %vm1040
      %vm1675 = vmand %vm1667, %vm1041
      %vm1676 = vmand %vm1668, %vm1042
      %vm1677 = vmand %vm1669, %vm1043
      %vm1678 = vmand %vm1670, %vm1044
      %vm1679 = vmand %vm1671, %vm1045
      %vm1680 = vmand %vm1672, %vm1046
      %v1681 = vsel %vm1673, 1, 0
      %v1682 = vsel %vm1674, 1, 0
      %v1683 = vsel %vm1675, 1, 0
      %v1684 = vsel %vm1676, 1, 0
      %v1685 = vsel %vm1677, 1, 0
      %v1686 = vsel %vm1678, 1, 0
      %v1687 = vsel %vm1679, 1, 0
      %v1688 = vsel %vm1680, 1, 0
      %vm1689 = vcmp.eq.s32.totalorder %v1681, 1
      %vm1690 = vcmp.eq.s32.totalorder %v1682, 1
      %vm1691 = vcmp.eq.s32.totalorder %v1683, 1
      %vm1692 = vcmp.eq.s32.totalorder %v1684, 1
      %vm1693 = vcmp.eq.s32.totalorder %v1685, 1
      %vm1694 = vcmp.eq.s32.totalorder %v1686, 1
      %vm1695 = vcmp.eq.s32.totalorder %v1687, 1
      %vm1696 = vcmp.eq.s32.totalorder %v1688, 1
      %v1697 = vsel %vm1689, %v982, 0.0
      %v1698 = vsel %vm1690, %v981, 0.0
      %v1699 = vsel %vm1691, %v980, 0.0
      %v1700 = vsel %vm1692, %v979, 0.0
      %v1701 = vsel %vm1693, %v978, 0.0
      %v1702 = vsel %vm1694, %v977, 0.0
      %v1703 = vsel %vm1695, %v976, 0.0
      %v1704 = vsel %vm1696, %v975, 0.0
      %v1705 = vpack.c.bf16 %v1698, %v1697
      %v1706 = vpack.c.bf16 %v1700, %v1699
      %v1707 = vpack.c.bf16 %v1702, %v1701
      %v1708 = vpack.c.bf16 %v1704, %v1703
      %s1709 = scalar_lea.vmem %s4, 192
      %v1710 = vld [vmem:[%s1709] sm:$0xf]
      %v1711 = vld [vmem:[%s1709 + $0x4] sm:$0xf]
      %v1712 = vld [vmem:[%s1709 + $0x8] sm:$0xf]
      %v1713 = vld [vmem:[%s1709 + $0xc] sm:$0xf]
      %v1714 = vld [vmem:[%s1709 + $0x10] sm:$0xf]
      %v1715 = vld [vmem:[%s1709 + $0x14] sm:$0xf]
      %v1716 = vld [vmem:[%s1709 + $0x18] sm:$0xf]
      %v1717 = vld [vmem:[%s1709 + $0x1c] sm:$0xf]
      %v1718 = vld [vmem:[%s1709 + $0x20] sm:$0xf]
      %v1719 = vld [vmem:[%s1709 + $0x24] sm:$0xf]
      %v1720 = vld [vmem:[%s1709 + $0x28] sm:$0xf]
      %v1721 = vld [vmem:[%s1709 + $0x2c] sm:$0xf]
      %v1722 = vld [vmem:[%s1709 + $0x30] sm:$0xf]
      %v1723 = vld [vmem:[%s1709 + $0x34] sm:$0xf]
      %v1724 = vld [vmem:[%s1709 + $0x38] sm:$0xf]
      %v1725 = vld [vmem:[%s1709 + $0x3c] sm:$0xf]
      %v1742 = vunpack.c.l.b16 %v1710
      %v1743 = vunpack.c.l.b16 %v1711
      %v1744 = vunpack.c.l.b16 %v1712
      %v1745 = vunpack.c.l.b16 %v1713
      %v1746 = vunpack.c.l.b16 %v1714
      %v1747 = vunpack.c.l.b16 %v1715
      %v1748 = vunpack.c.l.b16 %v1716
      %v1749 = vunpack.c.l.b16 %v1717
      %v1750 = vunpack.c.l.b16 %v1718
      %v1751 = vunpack.c.l.b16 %v1719
      %v1752 = vunpack.c.l.b16 %v1720
      %v1753 = vunpack.c.l.b16 %v1721
      %v1754 = vunpack.c.l.b16 %v1722
      %v1755 = vunpack.c.l.b16 %v1723
      %v1756 = vunpack.c.l.b16 %v1724
      %v1757 = vunpack.c.l.b16 %v1725
      %v1758 = vpack.c.b16 %v1743, %v1742
      %v1759 = vpack.c.b16 %v1745, %v1744
      %v1760 = vpack.c.b16 %v1747, %v1746
      %v1761 = vpack.c.b16 %v1749, %v1748
      %v1762 = vpack.c.b16 %v1751, %v1750
      %v1763 = vpack.c.b16 %v1753, %v1752
      %v1764 = vpack.c.b16 %v1755, %v1754
      %v1765 = vpack.c.b16 %v1757, %v1756
      %1774 = vmatprep.subr.bf16.mxu0 0
      %1775 = vmatpush1.bf16.msra.mxu0 %v1765
      %1776 = vmatprep.subr.bf16.mxu0 0
      %1777 = vmatpush1.bf16.msra.mxu0 %v1764
      %1778 = vmatprep.subr.bf16.mxu0 0
      %1779 = vmatpush1.bf16.msra.mxu0 %v1763
      %1780 = vmatprep.subr.bf16.mxu0 0
      %1781 = vmatpush1.bf16.msra.mxu0 %v1762
      %1782 = vmatprep.subr.bf16.mxu0 0
      %1783 = vmatpush1.bf16.msra.mxu0 %v1761
      %1784 = vmatprep.subr.bf16.mxu0 0
      %1785 = vmatpush1.bf16.msra.mxu0 %v1760
      %1786 = vmatprep.subr.bf16.mxu0 0
      %1787 = vmatpush1.bf16.msra.mxu0 %v1759
      %1788 = vmatprep.subr.bf16.mxu0 0
      %1789 = vmatpush1.bf16.msra.mxu0 %v1758
      %1790 = vmatprep.subr.bf16.mxu0 0
      %1791 = vmatpush2.bf16.msra.mxu0 0
      %1792 = vmatprep.subr.bf16.mxu0 0
      %1793 = vmatpush2.bf16.msra.mxu0 0
      %1794 = vmatprep.subr.bf16.mxu0 0
      %1795 = vmatpush2.bf16.msra.mxu0 0
      %1796 = vmatprep.subr.bf16.mxu0 0
      %1797 = vmatpush2.bf16.msra.mxu0 0
      %1798 = vmatprep.subr.bf16.mxu0 0
      %1799 = vmatpush2.bf16.msra.mxu0 0
      %1800 = vmatprep.subr.bf16.mxu0 0
      %1801 = vmatpush2.bf16.msra.mxu0 0
      %1802 = vmatprep.subr.bf16.mxu0 0
      %1803 = vmatpush2.bf16.msra.mxu0 0
      %1804 = vmatprep.subr.bf16.mxu0 0
      %1805 = vmatpush2.bf16.msra.mxu0 0
      %1806 = vmatprep.mubr.bf16.mxu0 0
      %1807 = vmatmul.mubr.bf16.gmra.mxu0 %v1705
      %v1808 = vpop.f32.mrf.mxu0
      %v1809 = vadd.f32 0.0, %v1808
      %v1810 = vpop.f32.mrf.mxu0
      %v1811 = vpop.f32.mrf.mxu0
      %v1812 = vadd.f32 0.0, %v1811
      %v1813 = vpop.f32.mrf.mxu0
      %1814 = vmatprep.mubr.bf16.mxu0 0
      %1815 = vmatmul.mubr.bf16.gmra.mxu0 %v1706
      %v1816 = vpop.f32.mrf.mxu0
      %v1817 = vadd.f32 0.0, %v1816
      %v1818 = vpop.f32.mrf.mxu0
      %v1819 = vpop.f32.mrf.mxu0
      %v1820 = vadd.f32 0.0, %v1819
      %v1821 = vpop.f32.mrf.mxu0
      %1822 = vmatprep.mubr.bf16.mxu0 0
      %1823 = vmatmul.mubr.bf16.gmra.mxu0 %v1707
      %v1824 = vpop.f32.mrf.mxu0
      %v1825 = vadd.f32 0.0, %v1824
      %v1826 = vpop.f32.mrf.mxu0
      %v1827 = vpop.f32.mrf.mxu0
      %v1828 = vadd.f32 0.0, %v1827
      %v1829 = vpop.f32.mrf.mxu0
      %1830 = vmatprep.mubr.bf16.mxu0 0
      %1831 = vmatmul.mubr.bf16.gmra.mxu0 %v1708
      %v1832 = vpop.f32.mrf.mxu0
      %v1833 = vadd.f32 0.0, %v1832
      %v1834 = vpop.f32.mrf.mxu0
      %v1835 = vpop.f32.mrf.mxu0
      %v1836 = vadd.f32 0.0, %v1835
      %v1837 = vpop.f32.mrf.mxu0
      %1838 = vdwg.mxu0
      %v1839 = vadd.f32 %v1633, %v1809
      %v1840 = vadd.f32 %v1634, %v1812
      %v1841 = vadd.f32 %v1635, %v1817
      %v1842 = vadd.f32 %v1636, %v1820
      %v1843 = vadd.f32 %v1637, %v1825
      %v1844 = vadd.f32 %v1638, %v1828
      %v1845 = vadd.f32 %v1639, %v1833
      %v1846 = vadd.f32 %v1640, %v1836
      %v1847 = vpack.c.bf16 %v907, %v904
      %v1848 = vpack.c.bf16 %v915, %v912
      %v1849 = vpack.c.bf16 %v923, %v920
      %v1850 = vpack.c.bf16 %v931, %v928
      %s1851 = scalar_lea.vmem %s4, 256
      %v1852 = vld [vmem:[%s1851] sm:$0xf]
      %v1853 = vld [vmem:[%s1851 + $0x4] sm:$0xf]
      %v1854 = vld [vmem:[%s1851 + $0x8] sm:$0xf]
      %v1855 = vld [vmem:[%s1851 + $0xc] sm:$0xf]
      %v1856 = vld [vmem:[%s1851 + $0x10] sm:$0xf]
      %v1857 = vld [vmem:[%s1851 + $0x14] sm:$0xf]
      %v1858 = vld [vmem:[%s1851 + $0x18] sm:$0xf]
      %v1859 = vld [vmem:[%s1851 + $0x1c] sm:$0xf]
      %v1860 = vld [vmem:[%s1851 + $0x20] sm:$0xf]
      %v1861 = vld [vmem:[%s1851 + $0x24] sm:$0xf]
      %v1862 = vld [vmem:[%s1851 + $0x28] sm:$0xf]
      %v1863 = vld [vmem:[%s1851 + $0x2c] sm:$0xf]
      %v1864 = vld [vmem:[%s1851 + $0x30] sm:$0xf]
      %v1865 = vld [vmem:[%s1851 + $0x34] sm:$0xf]
      %v1866 = vld [vmem:[%s1851 + $0x38] sm:$0xf]
      %v1867 = vld [vmem:[%s1851 + $0x3c] sm:$0xf]
      %v1884 = vunpack.c.l.b16 %v1852
      %v1885 = vunpack.c.l.b16 %v1853
      %v1886 = vunpack.c.l.b16 %v1854
      %v1887 = vunpack.c.l.b16 %v1855
      %v1888 = vunpack.c.l.b16 %v1856
      %v1889 = vunpack.c.l.b16 %v1857
      %v1890 = vunpack.c.l.b16 %v1858
      %v1891 = vunpack.c.l.b16 %v1859
      %v1892 = vunpack.c.l.b16 %v1860
      %v1893 = vunpack.c.l.b16 %v1861
      %v1894 = vunpack.c.l.b16 %v1862
      %v1895 = vunpack.c.l.b16 %v1863
      %v1896 = vunpack.c.l.b16 %v1864
      %v1897 = vunpack.c.l.b16 %v1865
      %v1898 = vunpack.c.l.b16 %v1866
      %v1899 = vunpack.c.l.b16 %v1867
      %v1900 = vpack.c.b16 %v1885, %v1884
      %v1901 = vpack.c.b16 %v1887, %v1886
      %v1902 = vpack.c.b16 %v1889, %v1888
      %v1903 = vpack.c.b16 %v1891, %v1890
      %v1904 = vpack.c.b16 %v1893, %v1892
      %v1905 = vpack.c.b16 %v1895, %v1894
      %v1906 = vpack.c.b16 %v1897, %v1896
      %v1907 = vpack.c.b16 %v1899, %v1898
      %1916 = vmatprep.subr.bf16.mxu0 0
      %1917 = vmatpush1.bf16.msra.mxu0 %v1907
      %1918 = vmatprep.subr.bf16.mxu0 0
      %1919 = vmatpush1.bf16.msra.mxu0 %v1906
      %1920 = vmatprep.subr.bf16.mxu0 0
      %1921 = vmatpush1.bf16.msra.mxu0 %v1905
      %1922 = vmatprep.subr.bf16.mxu0 0
      %1923 = vmatpush1.bf16.msra.mxu0 %v1904
      %1924 = vmatprep.subr.bf16.mxu0 0
      %1925 = vmatpush1.bf16.msra.mxu0 %v1903
      %1926 = vmatprep.subr.bf16.mxu0 0
      %1927 = vmatpush1.bf16.msra.mxu0 %v1902
      %1928 = vmatprep.subr.bf16.mxu0 0
      %1929 = vmatpush1.bf16.msra.mxu0 %v1901
      %1930 = vmatprep.subr.bf16.mxu0 0
      %1931 = vmatpush1.bf16.msra.mxu0 %v1900
      %1932 = vmatprep.subr.bf16.mxu0 0
      %1933 = vmatpush2.bf16.msra.mxu0 0
      %1934 = vmatprep.subr.bf16.mxu0 0
      %1935 = vmatpush2.bf16.msra.mxu0 0
      %1936 = vmatprep.subr.bf16.mxu0 0
      %1937 = vmatpush2.bf16.msra.mxu0 0
      %1938 = vmatprep.subr.bf16.mxu0 0
      %1939 = vmatpush2.bf16.msra.mxu0 0
      %1940 = vmatprep.subr.bf16.mxu0 0
      %1941 = vmatpush2.bf16.msra.mxu0 0
      %1942 = vmatprep.subr.bf16.mxu0 0
      %1943 = vmatpush2.bf16.msra.mxu0 0
      %1944 = vmatprep.subr.bf16.mxu0 0
      %1945 = vmatpush2.bf16.msra.mxu0 0
      %1946 = vmatprep.subr.bf16.mxu0 0
      %1947 = vmatpush2.bf16.msra.mxu0 0
      %1948 = vmatprep.mubr.bf16.mxu0 0
      %1949 = vmatmul.mubr.bf16.gmra.mxu0 %v1847
      %v1950 = vpop.f32.mrf.mxu0
      %v1951 = vadd.f32 0.0, %v1950
      %v1952 = vpop.f32.mrf.mxu0
      %v1953 = vpop.f32.mrf.mxu0
      %v1954 = vadd.f32 0.0, %v1953
      %v1955 = vpop.f32.mrf.mxu0
      %1956 = vmatprep.mubr.bf16.mxu0 0
      %1957 = vmatmul.mubr.bf16.gmra.mxu0 %v1848
      %v1958 = vpop.f32.mrf.mxu0
      %v1959 = vadd.f32 0.0, %v1958
      %v1960 = vpop.f32.mrf.mxu0
      %v1961 = vpop.f32.mrf.mxu0
      %v1962 = vadd.f32 0.0, %v1961
      %v1963 = vpop.f32.mrf.mxu0
      %1964 = vmatprep.mubr.bf16.mxu0 0
      %1965 = vmatmul.mubr.bf16.gmra.mxu0 %v1849
      %v1966 = vpop.f32.mrf.mxu0
      %v1967 = vadd.f32 0.0, %v1966
      %v1968 = vpop.f32.mrf.mxu0
      %v1969 = vpop.f32.mrf.mxu0
      %v1970 = vadd.f32 0.0, %v1969
      %v1971 = vpop.f32.mrf.mxu0
      %1972 = vmatprep.mubr.bf16.mxu0 0
      %1973 = vmatmul.mubr.bf16.gmra.mxu0 %v1850
      %v1974 = vpop.f32.mrf.mxu0
      %v1975 = vadd.f32 0.0, %v1974
      %v1976 = vpop.f32.mrf.mxu0
      %v1977 = vpop.f32.mrf.mxu0
      %v1978 = vadd.f32 0.0, %v1977
      %v1979 = vpop.f32.mrf.mxu0
      %1980 = vdwg.mxu0
      %v1981 = vadd.f32 %v1839, %v1951
      %v1982 = vadd.f32 %v1840, %v1954
      %v1983 = vadd.f32 %v1841, %v1959
      %v1984 = vadd.f32 %v1842, %v1962
      %v1985 = vadd.f32 %v1843, %v1967
      %v1986 = vadd.f32 %v1844, %v1970
      %v1987 = vadd.f32 %v1845, %v1975
      %v1988 = vadd.f32 %v1846, %v1978
      %vm1989 = vmand %vm1657, %vm1443
      %vm1990 = vmand %vm1658, %vm1444
      %vm1991 = vmand %vm1659, %vm1445
      %vm1992 = vmand %vm1660, %vm1446
      %vm1993 = vmand %vm1661, %vm1447
      %vm1994 = vmand %vm1662, %vm1448
      %vm1995 = vmand %vm1663, %vm1449
      %vm1996 = vmand %vm1664, %vm1450
      %vm1997 = vmand %vm1989, %vm1459
      %vm1998 = vmand %vm1990, %vm1460
      %vm1999 = vmand %vm1991, %vm1461
      %vm2000 = vmand %vm1992, %vm1462
      %vm2001 = vmand %vm1993, %vm1463
      %vm2002 = vmand %vm1994, %vm1464
      %vm2003 = vmand %vm1995, %vm1465
      %vm2004 = vmand %vm1996, %vm1466
      %v2005 = vsel %vm1997, 1, 0
      %v2006 = vsel %vm1998, 1, 0
      %v2007 = vsel %vm1999, 1, 0
      %v2008 = vsel %vm2000, 1, 0
      %v2009 = vsel %vm2001, 1, 0
      %v2010 = vsel %vm2002, 1, 0
      %v2011 = vsel %vm2003, 1, 0
      %v2012 = vsel %vm2004, 1, 0
      %vm2013 = vcmp.eq.s32.totalorder %v2005, 1
      %vm2014 = vcmp.eq.s32.totalorder %v2006, 1
      %vm2015 = vcmp.eq.s32.totalorder %v2007, 1
      %vm2016 = vcmp.eq.s32.totalorder %v2008, 1
      %vm2017 = vcmp.eq.s32.totalorder %v2009, 1
      %vm2018 = vcmp.eq.s32.totalorder %v2010, 1
      %vm2019 = vcmp.eq.s32.totalorder %v2011, 1
      %vm2020 = vcmp.eq.s32.totalorder %v2012, 1
      %v2021 = vsel %vm2013, %v1433, 0.0
      %v2022 = vsel %vm2014, %v1432, 0.0
      %v2023 = vsel %vm2015, %v1431, 0.0
      %v2024 = vsel %vm2016, %v1430, 0.0
      %v2025 = vsel %vm2017, %v1429, 0.0
      %v2026 = vsel %vm2018, %v1428, 0.0
      %v2027 = vsel %vm2019, %v1427, 0.0
      %v2028 = vsel %vm2020, %v1434, 0.0
      %v2029 = vpack.c.bf16 %v2022, %v2021
      %v2030 = vpack.c.bf16 %v2024, %v2023
      %v2031 = vpack.c.bf16 %v2026, %v2025
      %v2032 = vpack.c.bf16 %v2028, %v2027
      %s2033 = scalar_lea.vmem %s4, 320
      %v2034 = vld [vmem:[%s2033] sm:$0xf]
      %v2035 = vld [vmem:[%s2033 + $0x4] sm:$0xf]
      %v2036 = vld [vmem:[%s2033 + $0x8] sm:$0xf]
      %v2037 = vld [vmem:[%s2033 + $0xc] sm:$0xf]
      %v2038 = vld [vmem:[%s2033 + $0x10] sm:$0xf]
      %v2039 = vld [vmem:[%s2033 + $0x14] sm:$0xf]
      %v2040 = vld [vmem:[%s2033 + $0x18] sm:$0xf]
      %v2041 = vld [vmem:[%s2033 + $0x1c] sm:$0xf]
      %v2042 = vld [vmem:[%s2033 + $0x20] sm:$0xf]
      %v2043 = vld [vmem:[%s2033 + $0x24] sm:$0xf]
      %v2044 = vld [vmem:[%s2033 + $0x28] sm:$0xf]
      %v2045 = vld [vmem:[%s2033 + $0x2c] sm:$0xf]
      %v2046 = vld [vmem:[%s2033 + $0x30] sm:$0xf]
      %v2047 = vld [vmem:[%s2033 + $0x34] sm:$0xf]
      %v2048 = vld [vmem:[%s2033 + $0x38] sm:$0xf]
      %v2049 = vld [vmem:[%s2033 + $0x3c] sm:$0xf]
      %v2066 = vunpack.c.l.b16 %v2034
      %v2067 = vunpack.c.l.b16 %v2035
      %v2068 = vunpack.c.l.b16 %v2036
      %v2069 = vunpack.c.l.b16 %v2037
      %v2070 = vunpack.c.l.b16 %v2038
      %v2071 = vunpack.c.l.b16 %v2039
      %v2072 = vunpack.c.l.b16 %v2040
      %v2073 = vunpack.c.l.b16 %v2041
      %v2074 = vunpack.c.l.b16 %v2042
      %v2075 = vunpack.c.l.b16 %v2043
      %v2076 = vunpack.c.l.b16 %v2044
      %v2077 = vunpack.c.l.b16 %v2045
      %v2078 = vunpack.c.l.b16 %v2046
      %v2079 = vunpack.c.l.b16 %v2047
      %v2080 = vunpack.c.l.b16 %v2048
      %v2081 = vunpack.c.l.b16 %v2049
      %v2082 = vpack.c.b16 %v2067, %v2066
      %v2083 = vpack.c.b16 %v2069, %v2068
      %v2084 = vpack.c.b16 %v2071, %v2070
      %v2085 = vpack.c.b16 %v2073, %v2072
      %v2086 = vpack.c.b16 %v2075, %v2074
      %v2087 = vpack.c.b16 %v2077, %v2076
      %v2088 = vpack.c.b16 %v2079, %v2078
      %v2089 = vpack.c.b16 %v2081, %v2080
      %2098 = vmatprep.subr.bf16.mxu0 0
      %2099 = vmatpush1.bf16.msra.mxu0 %v2089
      %2100 = vmatprep.subr.bf16.mxu0 0
      %2101 = vmatpush1.bf16.msra.mxu0 %v2088
      %2102 = vmatprep.subr.bf16.mxu0 0
      %2103 = vmatpush1.bf16.msra.mxu0 %v2087
      %2104 = vmatprep.subr.bf16.mxu0 0
      %2105 = vmatpush1.bf16.msra.mxu0 %v2086
      %2106 = vmatprep.subr.bf16.mxu0 0
      %2107 = vmatpush1.bf16.msra.mxu0 %v2085
      %2108 = vmatprep.subr.bf16.mxu0 0
      %2109 = vmatpush1.bf16.msra.mxu0 %v2084
      %2110 = vmatprep.subr.bf16.mxu0 0
      %2111 = vmatpush1.bf16.msra.mxu0 %v2083
      %2112 = vmatprep.subr.bf16.mxu0 0
      %2113 = vmatpush1.bf16.msra.mxu0 %v2082
      %2114 = vmatprep.subr.bf16.mxu0 0
      %2115 = vmatpush2.bf16.msra.mxu0 0
      %2116 = vmatprep.subr.bf16.mxu0 0
      %2117 = vmatpush2.bf16.msra.mxu0 0
      %2118 = vmatprep.subr.bf16.mxu0 0
      %2119 = vmatpush2.bf16.msra.mxu0 0
      %2120 = vmatprep.subr.bf16.mxu0 0
      %2121 = vmatpush2.bf16.msra.mxu0 0
      %2122 = vmatprep.subr.bf16.mxu0 0
      %2123 = vmatpush2.bf16.msra.mxu0 0
      %2124 = vmatprep.subr.bf16.mxu0 0
      %2125 = vmatpush2.bf16.msra.mxu0 0
      %2126 = vmatprep.subr.bf16.mxu0 0
      %2127 = vmatpush2.bf16.msra.mxu0 0
      %2128 = vmatprep.subr.bf16.mxu0 0
      %2129 = vmatpush2.bf16.msra.mxu0 0
      %2130 = vmatprep.mubr.bf16.mxu0 0
      %2131 = vmatmul.mubr.bf16.gmra.mxu0 %v2029
      %v2132 = vpop.f32.mrf.mxu0
      %v2133 = vadd.f32 0.0, %v2132
      %v2134 = vpop.f32.mrf.mxu0
      %v2135 = vpop.f32.mrf.mxu0
      %v2136 = vadd.f32 0.0, %v2135
      %v2137 = vpop.f32.mrf.mxu0
      %2138 = vmatprep.mubr.bf16.mxu0 0
      %2139 = vmatmul.mubr.bf16.gmra.mxu0 %v2030
      %v2140 = vpop.f32.mrf.mxu0
      %v2141 = vadd.f32 0.0, %v2140
      %v2142 = vpop.f32.mrf.mxu0
      %v2143 = vpop.f32.mrf.mxu0
      %v2144 = vadd.f32 0.0, %v2143
      %v2145 = vpop.f32.mrf.mxu0
      %2146 = vmatprep.mubr.bf16.mxu0 0
      %2147 = vmatmul.mubr.bf16.gmra.mxu0 %v2031
      %v2148 = vpop.f32.mrf.mxu0
      %v2149 = vadd.f32 0.0, %v2148
      %v2150 = vpop.f32.mrf.mxu0
      %v2151 = vpop.f32.mrf.mxu0
      %v2152 = vadd.f32 0.0, %v2151
      %v2153 = vpop.f32.mrf.mxu0
      %2154 = vmatprep.mubr.bf16.mxu0 0
      %2155 = vmatmul.mubr.bf16.gmra.mxu0 %v2032
      %v2156 = vpop.f32.mrf.mxu0
      %v2157 = vadd.f32 0.0, %v2156
      %v2158 = vpop.f32.mrf.mxu0
      %v2159 = vpop.f32.mrf.mxu0
      %v2160 = vadd.f32 0.0, %v2159
      %v2161 = vpop.f32.mrf.mxu0
      %2162 = vdwg.mxu0
      %v2163 = vadd.f32 %v1981, %v2133
      %v2164 = vadd.f32 %v1982, %v2136
      %v2165 = vadd.f32 %v1983, %v2141
      %v2166 = vadd.f32 %v1984, %v2144
      %v2167 = vadd.f32 %v1985, %v2149
      %v2168 = vadd.f32 %v1986, %v2152
      %v2169 = vadd.f32 %v1987, %v2157
      %v2170 = vadd.f32 %v1988, %v2160
      %v2171 = vadd.s32 %v951, 1
      %v2172 = vadd.s32 %v952, 1
      %v2173 = vadd.s32 %v953, 1
      %v2174 = vadd.s32 %v954, 1
      %v2175 = vadd.s32 %v955, 1
      %v2176 = vadd.s32 %v956, 1
      %v2177 = vadd.s32 %v957, 1
      %v2178 = vadd.s32 %v958, 1
      %vm2179 = vcmp.ge.s32.totalorder %v2171, 0
      %vm2180 = vcmp.ge.s32.totalorder %v2172, 0
      %vm2181 = vcmp.ge.s32.totalorder %v2173, 0
      %vm2182 = vcmp.ge.s32.totalorder %v2174, 0
      %vm2183 = vcmp.ge.s32.totalorder %v2175, 0
      %vm2184 = vcmp.ge.s32.totalorder %v2176, 0
      %vm2185 = vcmp.ge.s32.totalorder %v2177, 0
      %vm2186 = vcmp.ge.s32.totalorder %v2178, 0
      %vm2187 = vcmp.lt.s32.totalorder %v2171, 8
      %vm2188 = vcmp.lt.s32.totalorder %v2172, 8
      %vm2189 = vcmp.lt.s32.totalorder %v2173, 8
      %vm2190 = vcmp.lt.s32.totalorder %v2174, 8
      %vm2191 = vcmp.lt.s32.totalorder %v2175, 8
      %vm2192 = vcmp.lt.s32.totalorder %v2176, 8
      %vm2193 = vcmp.lt.s32.totalorder %v2177, 8
      %vm2194 = vcmp.lt.s32.totalorder %v2178, 8
      %vm2195 = vmand %vm2179, %vm2187
      %vm2196 = vmand %vm2180, %vm2188
      %vm2197 = vmand %vm2181, %vm2189
      %vm2198 = vmand %vm2182, %vm2190
      %vm2199 = vmand %vm2183, %vm2191
      %vm2200 = vmand %vm2184, %vm2192
      %vm2201 = vmand %vm2185, %vm2193
      %vm2202 = vmand %vm2186, %vm2194
      %vm2203 = vmand %vm2195, %vm1023
      %vm2204 = vmand %vm2196, %vm1024
      %vm2205 = vmand %vm2197, %vm1025
      %vm2206 = vmand %vm2198, %vm1026
      %vm2207 = vmand %vm2199, %vm1027
      %vm2208 = vmand %vm2200, %vm1028
      %vm2209 = vmand %vm2201, %vm1029
      %vm2210 = vmand %vm2202, %vm1030
      %vm2211 = vmand %vm2203, %vm1039
      %vm2212 = vmand %vm2204, %vm1040
      %vm2213 = vmand %vm2205, %vm1041
      %vm2214 = vmand %vm2206, %vm1042
      %vm2215 = vmand %vm2207, %vm1043
      %vm2216 = vmand %vm2208, %vm1044
      %vm2217 = vmand %vm2209, %vm1045
      %vm2218 = vmand %vm2210, %vm1046
      %v2219 = vsel %vm2211, 1, 0
      %v2220 = vsel %vm2212, 1, 0
      %v2221 = vsel %vm2213, 1, 0
      %v2222 = vsel %vm2214, 1, 0
      %v2223 = vsel %vm2215, 1, 0
      %v2224 = vsel %vm2216, 1, 0
      %v2225 = vsel %vm2217, 1, 0
      %v2226 = vsel %vm2218, 1, 0
      %vm2227 = vcmp.eq.s32.totalorder %v2219, 1
      %vm2228 = vcmp.eq.s32.totalorder %v2220, 1
      %vm2229 = vcmp.eq.s32.totalorder %v2221, 1
      %vm2230 = vcmp.eq.s32.totalorder %v2222, 1
      %vm2231 = vcmp.eq.s32.totalorder %v2223, 1
      %vm2232 = vcmp.eq.s32.totalorder %v2224, 1
      %vm2233 = vcmp.eq.s32.totalorder %v2225, 1
      %vm2234 = vcmp.eq.s32.totalorder %v2226, 1
      %v2235 = vsel %vm2227, %v981, 0.0
      %v2236 = vsel %vm2228, %v980, 0.0
      %v2237 = vsel %vm2229, %v979, 0.0
      %v2238 = vsel %vm2230, %v978, 0.0
      %v2239 = vsel %vm2231, %v977, 0.0
      %v2240 = vsel %vm2232, %v976, 0.0
      %v2241 = vsel %vm2233, %v975, 0.0
      %v2242 = vsel %vm2234, %v982, 0.0
      %v2243 = vpack.c.bf16 %v2236, %v2235
      %v2244 = vpack.c.bf16 %v2238, %v2237
      %v2245 = vpack.c.bf16 %v2240, %v2239
      %v2246 = vpack.c.bf16 %v2242, %v2241
      %s2247 = scalar_lea.vmem %s4, 384
      %v2248 = vld [vmem:[%s2247] sm:$0xf]
      %v2249 = vld [vmem:[%s2247 + $0x4] sm:$0xf]
      %v2250 = vld [vmem:[%s2247 + $0x8] sm:$0xf]
      %v2251 = vld [vmem:[%s2247 + $0xc] sm:$0xf]
      %v2252 = vld [vmem:[%s2247 + $0x10] sm:$0xf]
      %v2253 = vld [vmem:[%s2247 + $0x14] sm:$0xf]
      %v2254 = vld [vmem:[%s2247 + $0x18] sm:$0xf]
      %v2255 = vld [vmem:[%s2247 + $0x1c] sm:$0xf]
      %v2256 = vld [vmem:[%s2247 + $0x20] sm:$0xf]
      %v2257 = vld [vmem:[%s2247 + $0x24] sm:$0xf]
      %v2258 = vld [vmem:[%s2247 + $0x28] sm:$0xf]
      %v2259 = vld [vmem:[%s2247 + $0x2c] sm:$0xf]
      %v2260 = vld [vmem:[%s2247 + $0x30] sm:$0xf]
      %v2261 = vld [vmem:[%s2247 + $0x34] sm:$0xf]
      %v2262 = vld [vmem:[%s2247 + $0x38] sm:$0xf]
      %v2263 = vld [vmem:[%s2247 + $0x3c] sm:$0xf]
      %v2280 = vunpack.c.l.b16 %v2248
      %v2281 = vunpack.c.l.b16 %v2249
      %v2282 = vunpack.c.l.b16 %v2250
      %v2283 = vunpack.c.l.b16 %v2251
      %v2284 = vunpack.c.l.b16 %v2252
      %v2285 = vunpack.c.l.b16 %v2253
      %v2286 = vunpack.c.l.b16 %v2254
      %v2287 = vunpack.c.l.b16 %v2255
      %v2288 = vunpack.c.l.b16 %v2256
      %v2289 = vunpack.c.l.b16 %v2257
      %v2290 = vunpack.c.l.b16 %v2258
      %v2291 = vunpack.c.l.b16 %v2259
      %v2292 = vunpack.c.l.b16 %v2260
      %v2293 = vunpack.c.l.b16 %v2261
      %v2294 = vunpack.c.l.b16 %v2262
      %v2295 = vunpack.c.l.b16 %v2263
      %v2296 = vpack.c.b16 %v2281, %v2280
      %v2297 = vpack.c.b16 %v2283, %v2282
      %v2298 = vpack.c.b16 %v2285, %v2284
      %v2299 = vpack.c.b16 %v2287, %v2286
      %v2300 = vpack.c.b16 %v2289, %v2288
      %v2301 = vpack.c.b16 %v2291, %v2290
      %v2302 = vpack.c.b16 %v2293, %v2292
      %v2303 = vpack.c.b16 %v2295, %v2294
      %2312 = vmatprep.subr.bf16.mxu0 0
      %2313 = vmatpush1.bf16.msra.mxu0 %v2303
      %2314 = vmatprep.subr.bf16.mxu0 0
      %2315 = vmatpush1.bf16.msra.mxu0 %v2302
      %2316 = vmatprep.subr.bf16.mxu0 0
      %2317 = vmatpush1.bf16.msra.mxu0 %v2301
      %2318 = vmatprep.subr.bf16.mxu0 0
      %2319 = vmatpush1.bf16.msra.mxu0 %v2300
      %2320 = vmatprep.subr.bf16.mxu0 0
      %2321 = vmatpush1.bf16.msra.mxu0 %v2299
      %2322 = vmatprep.subr.bf16.mxu0 0
      %2323 = vmatpush1.bf16.msra.mxu0 %v2298
      %2324 = vmatprep.subr.bf16.mxu0 0
      %2325 = vmatpush1.bf16.msra.mxu0 %v2297
      %2326 = vmatprep.subr.bf16.mxu0 0
      %2327 = vmatpush1.bf16.msra.mxu0 %v2296
      %2328 = vmatprep.subr.bf16.mxu0 0
      %2329 = vmatpush2.bf16.msra.mxu0 0
      %2330 = vmatprep.subr.bf16.mxu0 0
      %2331 = vmatpush2.bf16.msra.mxu0 0
      %2332 = vmatprep.subr.bf16.mxu0 0
      %2333 = vmatpush2.bf16.msra.mxu0 0
      %2334 = vmatprep.subr.bf16.mxu0 0
      %2335 = vmatpush2.bf16.msra.mxu0 0
      %2336 = vmatprep.subr.bf16.mxu0 0
      %2337 = vmatpush2.bf16.msra.mxu0 0
      %2338 = vmatprep.subr.bf16.mxu0 0
      %2339 = vmatpush2.bf16.msra.mxu0 0
      %2340 = vmatprep.subr.bf16.mxu0 0
      %2341 = vmatpush2.bf16.msra.mxu0 0
      %2342 = vmatprep.subr.bf16.mxu0 0
      %2343 = vmatpush2.bf16.msra.mxu0 0
      %2344 = vmatprep.mubr.bf16.mxu0 0
      %2345 = vmatmul.mubr.bf16.gmra.mxu0 %v2243
      %v2346 = vpop.f32.mrf.mxu0
      %v2347 = vadd.f32 0.0, %v2346
      %v2348 = vpop.f32.mrf.mxu0
      %v2349 = vpop.f32.mrf.mxu0
      %v2350 = vadd.f32 0.0, %v2349
      %v2351 = vpop.f32.mrf.mxu0
      %2352 = vmatprep.mubr.bf16.mxu0 0
      %2353 = vmatmul.mubr.bf16.gmra.mxu0 %v2244
      %v2354 = vpop.f32.mrf.mxu0
      %v2355 = vadd.f32 0.0, %v2354
      %v2356 = vpop.f32.mrf.mxu0
      %v2357 = vpop.f32.mrf.mxu0
      %v2358 = vadd.f32 0.0, %v2357
      %v2359 = vpop.f32.mrf.mxu0
      %2360 = vmatprep.mubr.bf16.mxu0 0
      %2361 = vmatmul.mubr.bf16.gmra.mxu0 %v2245
      %v2362 = vpop.f32.mrf.mxu0
      %v2363 = vadd.f32 0.0, %v2362
      %v2364 = vpop.f32.mrf.mxu0
      %v2365 = vpop.f32.mrf.mxu0
      %v2366 = vadd.f32 0.0, %v2365
      %v2367 = vpop.f32.mrf.mxu0
      %2368 = vmatprep.mubr.bf16.mxu0 0
      %2369 = vmatmul.mubr.bf16.gmra.mxu0 %v2246
      %v2370 = vpop.f32.mrf.mxu0
      %v2371 = vadd.f32 0.0, %v2370
      %v2372 = vpop.f32.mrf.mxu0
      %v2373 = vpop.f32.mrf.mxu0
      %v2374 = vadd.f32 0.0, %v2373
      %v2375 = vpop.f32.mrf.mxu0
      %2376 = vdwg.mxu0
      %v2377 = vadd.f32 %v2163, %v2347
      %v2378 = vadd.f32 %v2164, %v2350
      %v2379 = vadd.f32 %v2165, %v2355
      %v2380 = vadd.f32 %v2166, %v2358
      %v2381 = vadd.f32 %v2167, %v2363
      %v2382 = vadd.f32 %v2168, %v2366
      %v2383 = vadd.f32 %v2169, %v2371
      %v2384 = vadd.f32 %v2170, %v2374
      %vm2385 = vmand %vm2195, %vm1220
      %vm2386 = vmand %vm2196, %vm1221
      %vm2387 = vmand %vm2197, %vm1222
      %vm2388 = vmand %vm2198, %vm1223
      %vm2389 = vmand %vm2199, %vm1224
      %vm2390 = vmand %vm2200, %vm1225
      %vm2391 = vmand %vm2201, %vm1226
      %vm2392 = vmand %vm2202, %vm1227
      %vm2393 = vmand %vm2385, %vm1236
      %vm2394 = vmand %vm2386, %vm1237
      %vm2395 = vmand %vm2387, %vm1238
      %vm2396 = vmand %vm2388, %vm1239
      %vm2397 = vmand %vm2389, %vm1240
      %vm2398 = vmand %vm2390, %vm1241
      %vm2399 = vmand %vm2391, %vm1242
      %vm2400 = vmand %vm2392, %vm1243
      %v2401 = vsel %vm2393, 1, 0
      %v2402 = vsel %vm2394, 1, 0
      %v2403 = vsel %vm2395, 1, 0
      %v2404 = vsel %vm2396, 1, 0
      %v2405 = vsel %vm2397, 1, 0
      %v2406 = vsel %vm2398, 1, 0
      %v2407 = vsel %vm2399, 1, 0
      %v2408 = vsel %vm2400, 1, 0
      %vm2409 = vcmp.eq.s32.totalorder %v2401, 1
      %vm2410 = vcmp.eq.s32.totalorder %v2402, 1
      %vm2411 = vcmp.eq.s32.totalorder %v2403, 1
      %vm2412 = vcmp.eq.s32.totalorder %v2404, 1
      %vm2413 = vcmp.eq.s32.totalorder %v2405, 1
      %vm2414 = vcmp.eq.s32.totalorder %v2406, 1
      %vm2415 = vcmp.eq.s32.totalorder %v2407, 1
      %vm2416 = vcmp.eq.s32.totalorder %v2408, 1
      %v2417 = vsel %vm2409, %v907, 0.0
      %v2418 = vsel %vm2410, %v912, 0.0
      %v2419 = vsel %vm2411, %v915, 0.0
      %v2420 = vsel %vm2412, %v920, 0.0
      %v2421 = vsel %vm2413, %v923, 0.0
      %v2422 = vsel %vm2414, %v928, 0.0
      %v2423 = vsel %vm2415, %v931, 0.0
      %v2424 = vsel %vm2416, %v904, 0.0
      %v2425 = vpack.c.bf16 %v2418, %v2417
      %v2426 = vpack.c.bf16 %v2420, %v2419
      %v2427 = vpack.c.bf16 %v2422, %v2421
      %v2428 = vpack.c.bf16 %v2424, %v2423
      %s2429 = scalar_lea.vmem %s4, 448
      %v2430 = vld [vmem:[%s2429] sm:$0xf]
      %v2431 = vld [vmem:[%s2429 + $0x4] sm:$0xf]
      %v2432 = vld [vmem:[%s2429 + $0x8] sm:$0xf]
      %v2433 = vld [vmem:[%s2429 + $0xc] sm:$0xf]
      %v2434 = vld [vmem:[%s2429 + $0x10] sm:$0xf]
      %v2435 = vld [vmem:[%s2429 + $0x14] sm:$0xf]
      %v2436 = vld [vmem:[%s2429 + $0x18] sm:$0xf]
      %v2437 = vld [vmem:[%s2429 + $0x1c] sm:$0xf]
      %v2438 = vld [vmem:[%s2429 + $0x20] sm:$0xf]
      %v2439 = vld [vmem:[%s2429 + $0x24] sm:$0xf]
      %v2440 = vld [vmem:[%s2429 + $0x28] sm:$0xf]
      %v2441 = vld [vmem:[%s2429 + $0x2c] sm:$0xf]
      %v2442 = vld [vmem:[%s2429 + $0x30] sm:$0xf]
      %v2443 = vld [vmem:[%s2429 + $0x34] sm:$0xf]
      %v2444 = vld [vmem:[%s2429 + $0x38] sm:$0xf]
      %v2445 = vld [vmem:[%s2429 + $0x3c] sm:$0xf]
      %v2462 = vunpack.c.l.b16 %v2430
      %v2463 = vunpack.c.l.b16 %v2431
      %v2464 = vunpack.c.l.b16 %v2432
      %v2465 = vunpack.c.l.b16 %v2433
      %v2466 = vunpack.c.l.b16 %v2434
      %v2467 = vunpack.c.l.b16 %v2435
      %v2468 = vunpack.c.l.b16 %v2436
      %v2469 = vunpack.c.l.b16 %v2437
      %v2470 = vunpack.c.l.b16 %v2438
      %v2471 = vunpack.c.l.b16 %v2439
      %v2472 = vunpack.c.l.b16 %v2440
      %v2473 = vunpack.c.l.b16 %v2441
      %v2474 = vunpack.c.l.b16 %v2442
      %v2475 = vunpack.c.l.b16 %v2443
      %v2476 = vunpack.c.l.b16 %v2444
      %v2477 = vunpack.c.l.b16 %v2445
      %v2478 = vpack.c.b16 %v2463, %v2462
      %v2479 = vpack.c.b16 %v2465, %v2464
      %v2480 = vpack.c.b16 %v2467, %v2466
      %v2481 = vpack.c.b16 %v2469, %v2468
      %v2482 = vpack.c.b16 %v2471, %v2470
      %v2483 = vpack.c.b16 %v2473, %v2472
      %v2484 = vpack.c.b16 %v2475, %v2474
      %v2485 = vpack.c.b16 %v2477, %v2476
      %2494 = vmatprep.subr.bf16.mxu0 0
      %2495 = vmatpush1.bf16.msra.mxu0 %v2485
      %2496 = vmatprep.subr.bf16.mxu0 0
      %2497 = vmatpush1.bf16.msra.mxu0 %v2484
      %2498 = vmatprep.subr.bf16.mxu0 0
      %2499 = vmatpush1.bf16.msra.mxu0 %v2483
      %2500 = vmatprep.subr.bf16.mxu0 0
      %2501 = vmatpush1.bf16.msra.mxu0 %v2482
      %2502 = vmatprep.subr.bf16.mxu0 0
      %2503 = vmatpush1.bf16.msra.mxu0 %v2481
      %2504 = vmatprep.subr.bf16.mxu0 0
      %2505 = vmatpush1.bf16.msra.mxu0 %v2480
      %2506 = vmatprep.subr.bf16.mxu0 0
      %2507 = vmatpush1.bf16.msra.mxu0 %v2479
      %2508 = vmatprep.subr.bf16.mxu0 0
      %2509 = vmatpush1.bf16.msra.mxu0 %v2478
      %2510 = vmatprep.subr.bf16.mxu0 0
      %2511 = vmatpush2.bf16.msra.mxu0 0
      %2512 = vmatprep.subr.bf16.mxu0 0
      %2513 = vmatpush2.bf16.msra.mxu0 0
      %2514 = vmatprep.subr.bf16.mxu0 0
      %2515 = vmatpush2.bf16.msra.mxu0 0
      %2516 = vmatprep.subr.bf16.mxu0 0
      %2517 = vmatpush2.bf16.msra.mxu0 0
      %2518 = vmatprep.subr.bf16.mxu0 0
      %2519 = vmatpush2.bf16.msra.mxu0 0
      %2520 = vmatprep.subr.bf16.mxu0 0
      %2521 = vmatpush2.bf16.msra.mxu0 0
      %2522 = vmatprep.subr.bf16.mxu0 0
      %2523 = vmatpush2.bf16.msra.mxu0 0
      %2524 = vmatprep.subr.bf16.mxu0 0
      %2525 = vmatpush2.bf16.msra.mxu0 0
      %2526 = vmatprep.mubr.bf16.mxu0 0
      %2527 = vmatmul.mubr.bf16.gmra.mxu0 %v2425
      %v2528 = vpop.f32.mrf.mxu0
      %v2529 = vadd.f32 0.0, %v2528
      %v2530 = vpop.f32.mrf.mxu0
      %v2531 = vpop.f32.mrf.mxu0
      %v2532 = vadd.f32 0.0, %v2531
      %v2533 = vpop.f32.mrf.mxu0
      %2534 = vmatprep.mubr.bf16.mxu0 0
      %2535 = vmatmul.mubr.bf16.gmra.mxu0 %v2426
      %v2536 = vpop.f32.mrf.mxu0
      %v2537 = vadd.f32 0.0, %v2536
      %v2538 = vpop.f32.mrf.mxu0
      %v2539 = vpop.f32.mrf.mxu0
      %v2540 = vadd.f32 0.0, %v2539
      %v2541 = vpop.f32.mrf.mxu0
      %2542 = vmatprep.mubr.bf16.mxu0 0
      %2543 = vmatmul.mubr.bf16.gmra.mxu0 %v2427
      %v2544 = vpop.f32.mrf.mxu0
      %v2545 = vadd.f32 0.0, %v2544
      %v2546 = vpop.f32.mrf.mxu0
      %v2547 = vpop.f32.mrf.mxu0
      %v2548 = vadd.f32 0.0, %v2547
      %v2549 = vpop.f32.mrf.mxu0
      %2550 = vmatprep.mubr.bf16.mxu0 0
      %2551 = vmatmul.mubr.bf16.gmra.mxu0 %v2428
      %v2552 = vpop.f32.mrf.mxu0
      %v2553 = vadd.f32 0.0, %v2552
      %v2554 = vpop.f32.mrf.mxu0
      %v2555 = vpop.f32.mrf.mxu0
      %v2556 = vadd.f32 0.0, %v2555
      %v2557 = vpop.f32.mrf.mxu0
      %2558 = vdwg.mxu0
      %v2559 = vadd.f32 %v2377, %v2529
      %v2560 = vadd.f32 %v2378, %v2532
      %v2561 = vadd.f32 %v2379, %v2537
      %v2562 = vadd.f32 %v2380, %v2540
      %v2563 = vadd.f32 %v2381, %v2545
      %v2564 = vadd.f32 %v2382, %v2548
      %v2565 = vadd.f32 %v2383, %v2553
      %v2566 = vadd.f32 %v2384, %v2556
      %vm2567 = vmand %vm2195, %vm1443
      %vm2568 = vmand %vm2196, %vm1444
      %vm2569 = vmand %vm2197, %vm1445
      %vm2570 = vmand %vm2198, %vm1446
      %vm2571 = vmand %vm2199, %vm1447
      %vm2572 = vmand %vm2200, %vm1448
      %vm2573 = vmand %vm2201, %vm1449
      %vm2574 = vmand %vm2202, %vm1450
      %vm2575 = vmand %vm2567, %vm1459
      %vm2576 = vmand %vm2568, %vm1460
      %vm2577 = vmand %vm2569, %vm1461
      %vm2578 = vmand %vm2570, %vm1462
      %vm2579 = vmand %vm2571, %vm1463
      %vm2580 = vmand %vm2572, %vm1464
      %vm2581 = vmand %vm2573, %vm1465
      %vm2582 = vmand %vm2574, %vm1466
      %v2583 = vsel %vm2575, 1, 0
      %v2584 = vsel %vm2576, 1, 0
      %v2585 = vsel %vm2577, 1, 0
      %v2586 = vsel %vm2578, 1, 0
      %v2587 = vsel %vm2579, 1, 0
      %v2588 = vsel %vm2580, 1, 0
      %v2589 = vsel %vm2581, 1, 0
      %v2590 = vsel %vm2582, 1, 0
      %vm2591 = vcmp.eq.s32.totalorder %v2583, 1
      %vm2592 = vcmp.eq.s32.totalorder %v2584, 1
      %vm2593 = vcmp.eq.s32.totalorder %v2585, 1
      %vm2594 = vcmp.eq.s32.totalorder %v2586, 1
      %vm2595 = vcmp.eq.s32.totalorder %v2587, 1
      %vm2596 = vcmp.eq.s32.totalorder %v2588, 1
      %vm2597 = vcmp.eq.s32.totalorder %v2589, 1
      %vm2598 = vcmp.eq.s32.totalorder %v2590, 1
      %v2599 = vsel %vm2591, %v1432, 0.0
      %v2600 = vsel %vm2592, %v1431, 0.0
      %v2601 = vsel %vm2593, %v1430, 0.0
      %v2602 = vsel %vm2594, %v1429, 0.0
      %v2603 = vsel %vm2595, %v1428, 0.0
      %v2604 = vsel %vm2596, %v1427, 0.0
      %v2605 = vsel %vm2597, %v1434, 0.0
      %v2606 = vsel %vm2598, %v1433, 0.0
      %v2607 = vpack.c.bf16 %v2600, %v2599
      %v2608 = vpack.c.bf16 %v2602, %v2601
      %v2609 = vpack.c.bf16 %v2604, %v2603
      %v2610 = vpack.c.bf16 %v2606, %v2605
      %s2611 = scalar_lea.vmem %s4, 512
      %v2612 = vld [vmem:[%s2611] sm:$0xf]
      %v2613 = vld [vmem:[%s2611 + $0x4] sm:$0xf]
      %v2614 = vld [vmem:[%s2611 + $0x8] sm:$0xf]
      %v2615 = vld [vmem:[%s2611 + $0xc] sm:$0xf]
      %v2616 = vld [vmem:[%s2611 + $0x10] sm:$0xf]
      %v2617 = vld [vmem:[%s2611 + $0x14] sm:$0xf]
      %v2618 = vld [vmem:[%s2611 + $0x18] sm:$0xf]
      %v2619 = vld [vmem:[%s2611 + $0x1c] sm:$0xf]
      %v2620 = vld [vmem:[%s2611 + $0x20] sm:$0xf]
      %v2621 = vld [vmem:[%s2611 + $0x24] sm:$0xf]
      %v2622 = vld [vmem:[%s2611 + $0x28] sm:$0xf]
      %v2623 = vld [vmem:[%s2611 + $0x2c] sm:$0xf]
      %v2624 = vld [vmem:[%s2611 + $0x30] sm:$0xf]
      %v2625 = vld [vmem:[%s2611 + $0x34] sm:$0xf]
      %v2626 = vld [vmem:[%s2611 + $0x38] sm:$0xf]
      %v2627 = vld [vmem:[%s2611 + $0x3c] sm:$0xf]
      %v2644 = vunpack.c.l.b16 %v2612
      %v2645 = vunpack.c.l.b16 %v2613
      %v2646 = vunpack.c.l.b16 %v2614
      %v2647 = vunpack.c.l.b16 %v2615
      %v2648 = vunpack.c.l.b16 %v2616
      %v2649 = vunpack.c.l.b16 %v2617
      %v2650 = vunpack.c.l.b16 %v2618
      %v2651 = vunpack.c.l.b16 %v2619
      %v2652 = vunpack.c.l.b16 %v2620
      %v2653 = vunpack.c.l.b16 %v2621
      %v2654 = vunpack.c.l.b16 %v2622
      %v2655 = vunpack.c.l.b16 %v2623
      %v2656 = vunpack.c.l.b16 %v2624
      %v2657 = vunpack.c.l.b16 %v2625
      %v2658 = vunpack.c.l.b16 %v2626
      %v2659 = vunpack.c.l.b16 %v2627
      %v2660 = vpack.c.b16 %v2645, %v2644
      %v2661 = vpack.c.b16 %v2647, %v2646
      %v2662 = vpack.c.b16 %v2649, %v2648
      %v2663 = vpack.c.b16 %v2651, %v2650
      %v2664 = vpack.c.b16 %v2653, %v2652
      %v2665 = vpack.c.b16 %v2655, %v2654
      %v2666 = vpack.c.b16 %v2657, %v2656
      %v2667 = vpack.c.b16 %v2659, %v2658
      %2676 = vmatprep.subr.bf16.mxu0 0
      %2677 = vmatpush1.bf16.msra.mxu0 %v2667
      %2678 = vmatprep.subr.bf16.mxu0 0
      %2679 = vmatpush1.bf16.msra.mxu0 %v2666
      %2680 = vmatprep.subr.bf16.mxu0 0
      %2681 = vmatpush1.bf16.msra.mxu0 %v2665
      %2682 = vmatprep.subr.bf16.mxu0 0
      %2683 = vmatpush1.bf16.msra.mxu0 %v2664
      %2684 = vmatprep.subr.bf16.mxu0 0
      %2685 = vmatpush1.bf16.msra.mxu0 %v2663
      %2686 = vmatprep.subr.bf16.mxu0 0
      %2687 = vmatpush1.bf16.msra.mxu0 %v2662
      %2688 = vmatprep.subr.bf16.mxu0 0
      %2689 = vmatpush1.bf16.msra.mxu0 %v2661
      %2690 = vmatprep.subr.bf16.mxu0 0
      %2691 = vmatpush1.bf16.msra.mxu0 %v2660
      %2692 = vmatprep.subr.bf16.mxu0 0
      %2693 = vmatpush2.bf16.msra.mxu0 0
      %2694 = vmatprep.subr.bf16.mxu0 0
      %2695 = vmatpush2.bf16.msra.mxu0 0
      %2696 = vmatprep.subr.bf16.mxu0 0
      %2697 = vmatpush2.bf16.msra.mxu0 0
      %2698 = vmatprep.subr.bf16.mxu0 0
      %2699 = vmatpush2.bf16.msra.mxu0 0
      %2700 = vmatprep.subr.bf16.mxu0 0
      %2701 = vmatpush2.bf16.msra.mxu0 0
      %2702 = vmatprep.subr.bf16.mxu0 0
      %2703 = vmatpush2.bf16.msra.mxu0 0
      %2704 = vmatprep.subr.bf16.mxu0 0
      %2705 = vmatpush2.bf16.msra.mxu0 0
      %2706 = vmatprep.subr.bf16.mxu0 0
      %2707 = vmatpush2.bf16.msra.mxu0 0
      %2708 = vmatprep.mubr.bf16.mxu0 0
      %2709 = vmatmul.mubr.bf16.gmra.mxu0 %v2607
      %v2710 = vpop.f32.mrf.mxu0
      %v2711 = vadd.f32 0.0, %v2710
      %v2712 = vpop.f32.mrf.mxu0
      %v2713 = vpop.f32.mrf.mxu0
      %v2714 = vadd.f32 0.0, %v2713
      %v2715 = vpop.f32.mrf.mxu0
      %2716 = vmatprep.mubr.bf16.mxu0 0
      %2717 = vmatmul.mubr.bf16.gmra.mxu0 %v2608
      %v2718 = vpop.f32.mrf.mxu0
      %v2719 = vadd.f32 0.0, %v2718
      %v2720 = vpop.f32.mrf.mxu0
      %v2721 = vpop.f32.mrf.mxu0
      %v2722 = vadd.f32 0.0, %v2721
      %v2723 = vpop.f32.mrf.mxu0
      %2724 = vmatprep.mubr.bf16.mxu0 0
      %2725 = vmatmul.mubr.bf16.gmra.mxu0 %v2609
      %v2726 = vpop.f32.mrf.mxu0
      %v2727 = vadd.f32 0.0, %v2726
      %v2728 = vpop.f32.mrf.mxu0
      %v2729 = vpop.f32.mrf.mxu0
      %v2730 = vadd.f32 0.0, %v2729
      %v2731 = vpop.f32.mrf.mxu0
      %2732 = vmatprep.mubr.bf16.mxu0 0
      %2733 = vmatmul.mubr.bf16.gmra.mxu0 %v2610
      %v2734 = vpop.f32.mrf.mxu0
      %v2735 = vadd.f32 0.0, %v2734
      %v2736 = vpop.f32.mrf.mxu0
      %v2737 = vpop.f32.mrf.mxu0
      %v2738 = vadd.f32 0.0, %v2737
      %v2739 = vpop.f32.mrf.mxu0
      %2740 = vdwg.mxu0
      %v2741 = vadd.f32 %v2559, %v2711
      %v2742 = vadd.f32 %v2560, %v2714
      %v2743 = vadd.f32 %v2561, %v2719
      %v2744 = vadd.f32 %v2562, %v2722
      %v2745 = vadd.f32 %v2563, %v2727
      %v2746 = vadd.f32 %v2564, %v2730
      %v2747 = vadd.f32 %v2565, %v2735
      %v2748 = vadd.f32 %v2566, %v2738
      %v2749 = vmax.f32 %v2741, 0.0
      %v2750 = vmax.f32 %v2742, 0.0
      %v2751 = vmax.f32 %v2743, 0.0
      %v2752 = vmax.f32 %v2744, 0.0
      %v2753 = vmax.f32 %v2745, 0.0
      %v2754 = vmax.f32 %v2746, 0.0
      %v2755 = vmax.f32 %v2747, 0.0
      %v2756 = vmax.f32 %v2748, 0.0
      %v2757 = vld [vmem:[%s6] sm:$0xf]
      %v2758 = vld [vmem:[%s6 + $0x4] sm:$0xf]
      %v2759 = vpack.c.bf16 %v2750, %v2749
      %v2760 = vpack.c.bf16 %v2752, %v2751
      %v2761 = vpack.c.bf16 %v2754, %v2753
      %v2762 = vpack.c.bf16 %v2756, %v2755
      %v2765 = vunpack.c.l.b16 %v2757
      %v2766 = vunpack.c.l.b16 %v2758
      %v2767 = vpack.c.b16 %v2766, %v2765
      %vm2768 = vcmask 523264
      %v2770 = vsel %vm2768, %v2767, 0
      %2772 = vmatprep.subr.bf16.mxu0 0
      %2773 = vmatpush1.bf16.msra.mxu0 0
      %2774 = vmatprep.subr.bf16.mxu0 0
      %2775 = vmatpush1.bf16.msra.mxu0 0
      %2776 = vmatprep.subr.bf16.mxu0 0
      %2777 = vmatpush1.bf16.msra.mxu0 0
      %2778 = vmatprep.subr.bf16.mxu0 0
      %2779 = vmatpush1.bf16.msra.mxu0 0
      %2780 = vmatprep.subr.bf16.mxu0 0
      %2781 = vmatpush1.bf16.msra.mxu0 %v2762
      %2782 = vmatprep.subr.bf16.mxu0 0
      %2783 = vmatpush1.bf16.msra.mxu0 %v2761
      %2784 = vmatprep.subr.bf16.mxu0 0
      %2785 = vmatpush1.bf16.msra.mxu0 %v2760
      %2786 = vmatprep.subr.bf16.mxu0 0
      %2787 = vmatpush1.bf16.msra.mxu0 %v2759
      %2788 = vmatprep.subr.bf16.mxu0 0
      %2789 = vmatpush2.bf16.msra.mxu0 0
      %2790 = vmatprep.subr.bf16.mxu0 0
      %2791 = vmatpush2.bf16.msra.mxu0 0
      %2792 = vmatprep.subr.bf16.mxu0 0
      %2793 = vmatpush2.bf16.msra.mxu0 0
      %2794 = vmatprep.subr.bf16.mxu0 0
      %2795 = vmatpush2.bf16.msra.mxu0 0
      %2796 = vmatprep.subr.bf16.mxu0 0
      %2797 = vmatpush2.bf16.msra.mxu0 0
      %2798 = vmatprep.subr.bf16.mxu0 0
      %2799 = vmatpush2.bf16.msra.mxu0 0
      %2800 = vmatprep.subr.bf16.mxu0 0
      %2801 = vmatpush2.bf16.msra.mxu0 0
      %2802 = vmatprep.subr.bf16.mxu0 0
      %2803 = vmatpush2.bf16.msra.mxu0 0
      %2804 = vmatprep.mubr.bf16.mxu0 0
      %2805 = vmatmul.mubr.bf16.gmra.mxu0 %v2770
      %v2806 = vpop.f32.mrf.mxu0
      %v2807 = vadd.f32 0.0, %v2806
      %v2808 = vpop.f32.mrf.mxu0
      %v2809 = vpop.f32.mrf.mxu0
      %v2810 = vadd.f32 0.0, %v2809
      %v2811 = vpop.f32.mrf.mxu0
      %2812 = vdwg.mxu0
      %v2813 = vand.u32 %v935, 3
      %v2814 = vand.u32 %v936, 3
      %v2815 = vshra.s32 %v935, 2
      %v2816 = vshra.s32 %v936, 2
      %v2817 = vld [vmem:[%s8] sm:$0x1]
      %v2819 = vlaneseq
      %v2820 = vshrl.u32 %v2819, 7
      %v2821 = vsub.s32 0, %v2820
      %v2822 = vrot.slane %v2817, %v2821
      %v2824 = vrot.slane %v2807, 3
      %v2825 = vrot.slane %v2810, 3
      %vm2826 = vcmp.lt.s32.totalorder %v935, 5
      %v2827 = vsel %vm2826, %v2824, %v2825
      %v2828 = vsel %vm2826, %v2825, %v2824
      %v2829 = vadd.s32 %v2815, 4294967295
      %v2830 = vadd.s32 %v2816, 4294967295
      %vm2831 = vcmp.ge.s32.totalorder %v2829, 0
      %vm2832 = vcmp.ge.s32.totalorder %v2830, 0
      %vm2833 = vcmp.lt.s32.totalorder %v2829, 4
      %vm2834 = vcmp.lt.s32.totalorder %v2830, 4
      %vm2835 = vmand %vm2831, %vm2833
      %vm2836 = vmand %vm2832, %vm2834
      %v2837 = vadd.s32 %v2813, 4294967295
      %v2838 = vadd.s32 %v2814, 4294967295
      %vm2839 = vcmp.ge.s32.totalorder %v2837, 0
      %vm2840 = vcmp.ge.s32.totalorder %v2838, 0
      %vm2841 = vmand %vm2835, %vm2839
      %vm2842 = vmand %vm2836, %vm2840
      %vm2843 = vcmp.lt.s32.totalorder %v2837, 4
      %vm2844 = vcmp.lt.s32.totalorder %v2838, 4
      %vm2845 = vmand %vm2841, %vm2843
      %vm2846 = vmand %vm2842, %vm2844
      %v2847 = vsel %vm2845, 1, 0
      %v2848 = vsel %vm2846, 1, 0
      %vm2849 = vcmp.eq.s32.totalorder %v2847, 1
      %vm2850 = vcmp.eq.s32.totalorder %v2848, 1
      %v2851 = vsel %vm2849, %v2828, 0.0
      %v2852 = vsel %vm2850, %v2827, 0.0
      %v2853 = vpack.c.bf16 %v2852, %v2851
      %v2854 = vld [vmem:[%s7] sm:$0xf]
      %v2855 = vld [vmem:[%s7 + $0x4] sm:$0xf]
      %v2856 = vld [vmem:[%s7 + $0x8] sm:$0xf]
      %v2857 = vld [vmem:[%s7 + $0xc] sm:$0xf]
      %v2858 = vld [vmem:[%s7 + $0x10] sm:$0xf]
      %v2859 = vld [vmem:[%s7 + $0x14] sm:$0xf]
      %v2860 = vld [vmem:[%s7 + $0x18] sm:$0xf]
      %v2861 = vld [vmem:[%s7 + $0x1c] sm:$0xf]
      %v2862 = vld [vmem:[%s7 + $0x20] sm:$0xf]
      %v2863 = vld [vmem:[%s7 + $0x24] sm:$0xf]
      %v2864 = vld [vmem:[%s7 + $0x28] sm:$0xf]
      %v2865 = vld [vmem:[%s7 + $0x2c] sm:$0xf]
      %v2866 = vld [vmem:[%s7 + $0x30] sm:$0xf]
      %v2867 = vld [vmem:[%s7 + $0x34] sm:$0xf]
      %v2868 = vld [vmem:[%s7 + $0x38] sm:$0xf]
      %v2869 = vld [vmem:[%s7 + $0x3c] sm:$0xf]
      %v2886 = vunpack.c.l.b16 %v2854
      %v2887 = vunpack.c.l.b16 %v2855
      %v2888 = vunpack.c.l.b16 %v2856
      %v2889 = vunpack.c.l.b16 %v2857
      %v2890 = vunpack.c.l.b16 %v2858
      %v2891 = vunpack.c.l.b16 %v2859
      %v2892 = vunpack.c.l.b16 %v2860
      %v2893 = vunpack.c.l.b16 %v2861
      %v2894 = vunpack.c.l.b16 %v2862
      %v2895 = vunpack.c.l.b16 %v2863
      %v2896 = vunpack.c.l.b16 %v2864
      %v2897 = vunpack.c.l.b16 %v2865
      %v2898 = vunpack.c.l.b16 %v2866
      %v2899 = vunpack.c.l.b16 %v2867
      %v2900 = vunpack.c.l.b16 %v2868
      %v2901 = vunpack.c.l.b16 %v2869
      %v2902 = vpack.c.b16 %v2887, %v2886
      %v2903 = vpack.c.b16 %v2889, %v2888
      %v2904 = vpack.c.b16 %v2891, %v2890
      %v2905 = vpack.c.b16 %v2893, %v2892
      %v2906 = vpack.c.b16 %v2895, %v2894
      %v2907 = vpack.c.b16 %v2897, %v2896
      %v2908 = vpack.c.b16 %v2899, %v2898
      %v2909 = vpack.c.b16 %v2901, %v2900
      %2918 = vmatprep.subr.bf16.mxu0 0
      %2919 = vmatpush1.bf16.msra.mxu0 %v2909
      %2920 = vmatprep.subr.bf16.mxu0 0
      %2921 = vmatpush1.bf16.msra.mxu0 %v2908
      %2922 = vmatprep.subr.bf16.mxu0 0
      %2923 = vmatpush1.bf16.msra.mxu0 %v2907
      %2924 = vmatprep.subr.bf16.mxu0 0
      %2925 = vmatpush1.bf16.msra.mxu0 %v2906
      %2926 = vmatprep.subr.bf16.mxu0 0
      %2927 = vmatpush1.bf16.msra.mxu0 %v2905
      %2928 = vmatprep.subr.bf16.mxu0 0
      %2929 = vmatpush1.bf16.msra.mxu0 %v2904
      %2930 = vmatprep.subr.bf16.mxu0 0
      %2931 = vmatpush1.bf16.msra.mxu0 %v2903
      %2932 = vmatprep.subr.bf16.mxu0 0
      %2933 = vmatpush1.bf16.msra.mxu0 %v2902
      %2934 = vmatprep.subr.bf16.mxu0 0
      %2935 = vmatpush2.bf16.msra.mxu0 0
      %2936 = vmatprep.subr.bf16.mxu0 0
      %2937 = vmatpush2.bf16.msra.mxu0 0
      %2938 = vmatprep.subr.bf16.mxu0 0
      %2939 = vmatpush2.bf16.msra.mxu0 0
      %2940 = vmatprep.subr.bf16.mxu0 0
      %2941 = vmatpush2.bf16.msra.mxu0 0
      %2942 = vmatprep.subr.bf16.mxu0 0
      %2943 = vmatpush2.bf16.msra.mxu0 0
      %2944 = vmatprep.subr.bf16.mxu0 0
      %2945 = vmatpush2.bf16.msra.mxu0 0
      %2946 = vmatprep.subr.bf16.mxu0 0
      %2947 = vmatpush2.bf16.msra.mxu0 0
      %2948 = vmatprep.subr.bf16.mxu0 0
      %2949 = vmatpush2.bf16.msra.mxu0 0
      %2950 = vmatprep.mubr.bf16.mxu0 0
      %2951 = vmatmul.mubr.bf16.gmra.mxu0 %v2853
      %v2952 = vpop.f32.mrf.mxu0
      %v2953 = vadd.f32 0.0, %v2952
      %v2954 = vpop.f32.mrf.mxu0
      %v2955 = vpop.f32.mrf.mxu0
      %v2956 = vadd.f32 0.0, %v2955
      %v2957 = vpop.f32.mrf.mxu0
      %2958 = vdwg.mxu0
      %v2959 = vadd.f32 %v2822, %v2953
      %v2960 = vadd.f32 %v2822, %v2956
      %v2961 = vrot.slane %v2807, 4
      %v2962 = vrot.slane %v2810, 4
      %vm2963 = vcmp.lt.s32.totalorder %v935, 4
      %v2964 = vsel %vm2963, %v2961, %v2962
      %v2965 = vsel %vm2963, %v2962, %v2961
      %vm2966 = vcmp.ge.s32.totalorder %v2813, 0
      %vm2967 = vcmp.ge.s32.totalorder %v2814, 0
      %vm2968 = vmand %vm2835, %vm2966
      %vm2969 = vmand %vm2836, %vm2967
      %vm2970 = vcmp.lt.s32.totalorder %v2813, 4
      %vm2971 = vcmp.lt.s32.totalorder %v2814, 4
      %vm2972 = vmand %vm2968, %vm2970
      %vm2973 = vmand %vm2969, %vm2971
      %v2974 = vsel %vm2972, 1, 0
      %v2975 = vsel %vm2973, 1, 0
      %vm2976 = vcmp.eq.s32.totalorder %v2974, 1
      %vm2977 = vcmp.eq.s32.totalorder %v2975, 1
      %v2978 = vsel %vm2976, %v2965, 0.0
      %v2979 = vsel %vm2977, %v2964, 0.0
      %v2980 = vpack.c.bf16 %v2979, %v2978
      %s2981 = scalar_lea.vmem %s7, 64
      %v2982 = vld [vmem:[%s2981] sm:$0xf]
      %v2983 = vld [vmem:[%s2981 + $0x4] sm:$0xf]
      %v2984 = vld [vmem:[%s2981 + $0x8] sm:$0xf]
      %v2985 = vld [vmem:[%s2981 + $0xc] sm:$0xf]
      %v2986 = vld [vmem:[%s2981 + $0x10] sm:$0xf]
      %v2987 = vld [vmem:[%s2981 + $0x14] sm:$0xf]
      %v2988 = vld [vmem:[%s2981 + $0x18] sm:$0xf]
      %v2989 = vld [vmem:[%s2981 + $0x1c] sm:$0xf]
      %v2990 = vld [vmem:[%s2981 + $0x20] sm:$0xf]
      %v2991 = vld [vmem:[%s2981 + $0x24] sm:$0xf]
      %v2992 = vld [vmem:[%s2981 + $0x28] sm:$0xf]
      %v2993 = vld [vmem:[%s2981 + $0x2c] sm:$0xf]
      %v2994 = vld [vmem:[%s2981 + $0x30] sm:$0xf]
      %v2995 = vld [vmem:[%s2981 + $0x34] sm:$0xf]
      %v2996 = vld [vmem:[%s2981 + $0x38] sm:$0xf]
      %v2997 = vld [vmem:[%s2981 + $0x3c] sm:$0xf]
      %v3014 = vunpack.c.l.b16 %v2982
      %v3015 = vunpack.c.l.b16 %v2983
      %v3016 = vunpack.c.l.b16 %v2984
      %v3017 = vunpack.c.l.b16 %v2985
      %v3018 = vunpack.c.l.b16 %v2986
      %v3019 = vunpack.c.l.b16 %v2987
      %v3020 = vunpack.c.l.b16 %v2988
      %v3021 = vunpack.c.l.b16 %v2989
      %v3022 = vunpack.c.l.b16 %v2990
      %v3023 = vunpack.c.l.b16 %v2991
      %v3024 = vunpack.c.l.b16 %v2992
      %v3025 = vunpack.c.l.b16 %v2993
      %v3026 = vunpack.c.l.b16 %v2994
      %v3027 = vunpack.c.l.b16 %v2995
      %v3028 = vunpack.c.l.b16 %v2996
      %v3029 = vunpack.c.l.b16 %v2997
      %v3030 = vpack.c.b16 %v3015, %v3014
      %v3031 = vpack.c.b16 %v3017, %v3016
      %v3032 = vpack.c.b16 %v3019, %v3018
      %v3033 = vpack.c.b16 %v3021, %v3020
      %v3034 = vpack.c.b16 %v3023, %v3022
      %v3035 = vpack.c.b16 %v3025, %v3024
      %v3036 = vpack.c.b16 %v3027, %v3026
      %v3037 = vpack.c.b16 %v3029, %v3028
      %3046 = vmatprep.subr.bf16.mxu0 0
      %3047 = vmatpush1.bf16.msra.mxu0 %v3037
      %3048 = vmatprep.subr.bf16.mxu0 0
      %3049 = vmatpush1.bf16.msra.mxu0 %v3036
      %3050 = vmatprep.subr.bf16.mxu0 0
      %3051 = vmatpush1.bf16.msra.mxu0 %v3035
      %3052 = vmatprep.subr.bf16.mxu0 0
      %3053 = vmatpush1.bf16.msra.mxu0 %v3034
      %3054 = vmatprep.subr.bf16.mxu0 0
      %3055 = vmatpush1.bf16.msra.mxu0 %v3033
      %3056 = vmatprep.subr.bf16.mxu0 0
      %3057 = vmatpush1.bf16.msra.mxu0 %v3032
      %3058 = vmatprep.subr.bf16.mxu0 0
      %3059 = vmatpush1.bf16.msra.mxu0 %v3031
      %3060 = vmatprep.subr.bf16.mxu0 0
      %3061 = vmatpush1.bf16.msra.mxu0 %v3030
      %3062 = vmatprep.subr.bf16.mxu0 0
      %3063 = vmatpush2.bf16.msra.mxu0 0
      %3064 = vmatprep.subr.bf16.mxu0 0
      %3065 = vmatpush2.bf16.msra.mxu0 0
      %3066 = vmatprep.subr.bf16.mxu0 0
      %3067 = vmatpush2.bf16.msra.mxu0 0
      %3068 = vmatprep.subr.bf16.mxu0 0
      %3069 = vmatpush2.bf16.msra.mxu0 0
      %3070 = vmatprep.subr.bf16.mxu0 0
      %3071 = vmatpush2.bf16.msra.mxu0 0
      %3072 = vmatprep.subr.bf16.mxu0 0
      %3073 = vmatpush2.bf16.msra.mxu0 0
      %3074 = vmatprep.subr.bf16.mxu0 0
      %3075 = vmatpush2.bf16.msra.mxu0 0
      %3076 = vmatprep.subr.bf16.mxu0 0
      %3077 = vmatpush2.bf16.msra.mxu0 0
      %3078 = vmatprep.mubr.bf16.mxu0 0
      %3079 = vmatmul.mubr.bf16.gmra.mxu0 %v2980
      %v3080 = vpop.f32.mrf.mxu0
      %v3081 = vadd.f32 0.0, %v3080
      %v3082 = vpop.f32.mrf.mxu0
      %v3083 = vpop.f32.mrf.mxu0
      %v3084 = vadd.f32 0.0, %v3083
      %v3085 = vpop.f32.mrf.mxu0
      %3086 = vdwg.mxu0
      %v3087 = vadd.f32 %v2959, %v3081
      %v3088 = vadd.f32 %v2960, %v3084
      %v3089 = vrot.slane %v2807, 5
      %v3090 = vrot.slane %v2810, 5
      %vm3091 = vcmp.lt.s32.totalorder %v935, 3
      %v3092 = vsel %vm3091, %v3089, %v3090
      %v3093 = vsel %vm3091, %v3090, %v3089
      %v3094 = vadd.s32 %v2813, 1
      %v3095 = vadd.s32 %v2814, 1
      %vm3096 = vcmp.ge.s32.totalorder %v3094, 0
      %vm3097 = vcmp.ge.s32.totalorder %v3095, 0
      %vm3098 = vmand %vm2835, %vm3096
      %vm3099 = vmand %vm2836, %vm3097
      %vm3100 = vcmp.lt.s32.totalorder %v3094, 4
      %vm3101 = vcmp.lt.s32.totalorder %v3095, 4
      %vm3102 = vmand %vm3098, %vm3100
      %vm3103 = vmand %vm3099, %vm3101
      %v3104 = vsel %vm3102, 1, 0
      %v3105 = vsel %vm3103, 1, 0
      %vm3106 = vcmp.eq.s32.totalorder %v3104, 1
      %vm3107 = vcmp.eq.s32.totalorder %v3105, 1
      %v3108 = vsel %vm3106, %v3093, 0.0
      %v3109 = vsel %vm3107, %v3092, 0.0
      %v3110 = vpack.c.bf16 %v3109, %v3108
      %s3111 = scalar_lea.vmem %s7, 128
      %v3112 = vld [vmem:[%s3111] sm:$0xf]
      %v3113 = vld [vmem:[%s3111 + $0x4] sm:$0xf]
      %v3114 = vld [vmem:[%s3111 + $0x8] sm:$0xf]
      %v3115 = vld [vmem:[%s3111 + $0xc] sm:$0xf]
      %v3116 = vld [vmem:[%s3111 + $0x10] sm:$0xf]
      %v3117 = vld [vmem:[%s3111 + $0x14] sm:$0xf]
      %v3118 = vld [vmem:[%s3111 + $0x18] sm:$0xf]
      %v3119 = vld [vmem:[%s3111 + $0x1c] sm:$0xf]
      %v3120 = vld [vmem:[%s3111 + $0x20] sm:$0xf]
      %v3121 = vld [vmem:[%s3111 + $0x24] sm:$0xf]
      %v3122 = vld [vmem:[%s3111 + $0x28] sm:$0xf]
      %v3123 = vld [vmem:[%s3111 + $0x2c] sm:$0xf]
      %v3124 = vld [vmem:[%s3111 + $0x30] sm:$0xf]
      %v3125 = vld [vmem:[%s3111 + $0x34] sm:$0xf]
      %v3126 = vld [vmem:[%s3111 + $0x38] sm:$0xf]
      %v3127 = vld [vmem:[%s3111 + $0x3c] sm:$0xf]
      %v3144 = vunpack.c.l.b16 %v3112
      %v3145 = vunpack.c.l.b16 %v3113
      %v3146 = vunpack.c.l.b16 %v3114
      %v3147 = vunpack.c.l.b16 %v3115
      %v3148 = vunpack.c.l.b16 %v3116
      %v3149 = vunpack.c.l.b16 %v3117
      %v3150 = vunpack.c.l.b16 %v3118
      %v3151 = vunpack.c.l.b16 %v3119
      %v3152 = vunpack.c.l.b16 %v3120
      %v3153 = vunpack.c.l.b16 %v3121
      %v3154 = vunpack.c.l.b16 %v3122
      %v3155 = vunpack.c.l.b16 %v3123
      %v3156 = vunpack.c.l.b16 %v3124
      %v3157 = vunpack.c.l.b16 %v3125
      %v3158 = vunpack.c.l.b16 %v3126
      %v3159 = vunpack.c.l.b16 %v3127
      %v3160 = vpack.c.b16 %v3145, %v3144
      %v3161 = vpack.c.b16 %v3147, %v3146
      %v3162 = vpack.c.b16 %v3149, %v3148
      %v3163 = vpack.c.b16 %v3151, %v3150
      %v3164 = vpack.c.b16 %v3153, %v3152
      %v3165 = vpack.c.b16 %v3155, %v3154
      %v3166 = vpack.c.b16 %v3157, %v3156
      %v3167 = vpack.c.b16 %v3159, %v3158
      %3176 = vmatprep.subr.bf16.mxu0 0
      %3177 = vmatpush1.bf16.msra.mxu0 %v3167
      %3178 = vmatprep.subr.bf16.mxu0 0
      %3179 = vmatpush1.bf16.msra.mxu0 %v3166
      %3180 = vmatprep.subr.bf16.mxu0 0
      %3181 = vmatpush1.bf16.msra.mxu0 %v3165
      %3182 = vmatprep.subr.bf16.mxu0 0
      %3183 = vmatpush1.bf16.msra.mxu0 %v3164
      %3184 = vmatprep.subr.bf16.mxu0 0
      %3185 = vmatpush1.bf16.msra.mxu0 %v3163
      %3186 = vmatprep.subr.bf16.mxu0 0
      %3187 = vmatpush1.bf16.msra.mxu0 %v3162
      %3188 = vmatprep.subr.bf16.mxu0 0
      %3189 = vmatpush1.bf16.msra.mxu0 %v3161
      %3190 = vmatprep.subr.bf16.mxu0 0
      %3191 = vmatpush1.bf16.msra.mxu0 %v3160
      %3192 = vmatprep.subr.bf16.mxu0 0
      %3193 = vmatpush2.bf16.msra.mxu0 0
      %3194 = vmatprep.subr.bf16.mxu0 0
      %3195 = vmatpush2.bf16.msra.mxu0 0
      %3196 = vmatprep.subr.bf16.mxu0 0
      %3197 = vmatpush2.bf16.msra.mxu0 0
      %3198 = vmatprep.subr.bf16.mxu0 0
      %3199 = vmatpush2.bf16.msra.mxu0 0
      %3200 = vmatprep.subr.bf16.mxu0 0
      %3201 = vmatpush2.bf16.msra.mxu0 0
      %3202 = vmatprep.subr.bf16.mxu0 0
      %3203 = vmatpush2.bf16.msra.mxu0 0
      %3204 = vmatprep.subr.bf16.mxu0 0
      %3205 = vmatpush2.bf16.msra.mxu0 0
      %3206 = vmatprep.subr.bf16.mxu0 0
      %3207 = vmatpush2.bf16.msra.mxu0 0
      %3208 = vmatprep.mubr.bf16.mxu0 0
      %3209 = vmatmul.mubr.bf16.gmra.mxu0 %v3110
      %v3210 = vpop.f32.mrf.mxu0
      %v3211 = vadd.f32 0.0, %v3210
      %v3212 = vpop.f32.mrf.mxu0
      %v3213 = vpop.f32.mrf.mxu0
      %v3214 = vadd.f32 0.0, %v3213
      %v3215 = vpop.f32.mrf.mxu0
      %3216 = vdwg.mxu0
      %v3217 = vadd.f32 %v3087, %v3211
      %v3218 = vadd.f32 %v3088, %v3214
      %v3219 = vrot.slane %v2807, 7
      %v3220 = vrot.slane %v2810, 7
      %v3221 = vsel %vm974, %v3219, %v3220
      %v3222 = vsel %vm974, %v3220, %v3219
      %vm3223 = vcmp.ge.s32.totalorder %v2815, 0
      %vm3224 = vcmp.ge.s32.totalorder %v2816, 0
      %vm3225 = vcmp.lt.s32.totalorder %v2815, 4
      %vm3226 = vcmp.lt.s32.totalorder %v2816, 4
      %vm3227 = vmand %vm3223, %vm3225
      %vm3228 = vmand %vm3224, %vm3226
      %vm3229 = vmand %vm3227, %vm2839
      %vm3230 = vmand %vm3228, %vm2840
      %vm3231 = vmand %vm3229, %vm2843
      %vm3232 = vmand %vm3230, %vm2844
      %v3233 = vsel %vm3231, 1, 0
      %v3234 = vsel %vm3232, 1, 0
      %vm3235 = vcmp.eq.s32.totalorder %v3233, 1
      %vm3236 = vcmp.eq.s32.totalorder %v3234, 1
      %v3237 = vsel %vm3235, %v3222, 0.0
      %v3238 = vsel %vm3236, %v3221, 0.0
      %v3239 = vpack.c.bf16 %v3238, %v3237
      %s3240 = scalar_lea.vmem %s7, 192
      %v3241 = vld [vmem:[%s3240] sm:$0xf]
      %v3242 = vld [vmem:[%s3240 + $0x4] sm:$0xf]
      %v3243 = vld [vmem:[%s3240 + $0x8] sm:$0xf]
      %v3244 = vld [vmem:[%s3240 + $0xc] sm:$0xf]
      %v3245 = vld [vmem:[%s3240 + $0x10] sm:$0xf]
      %v3246 = vld [vmem:[%s3240 + $0x14] sm:$0xf]
      %v3247 = vld [vmem:[%s3240 + $0x18] sm:$0xf]
      %v3248 = vld [vmem:[%s3240 + $0x1c] sm:$0xf]
      %v3249 = vld [vmem:[%s3240 + $0x20] sm:$0xf]
      %v3250 = vld [vmem:[%s3240 + $0x24] sm:$0xf]
      %v3251 = vld [vmem:[%s3240 + $0x28] sm:$0xf]
      %v3252 = vld [vmem:[%s3240 + $0x2c] sm:$0xf]
      %v3253 = vld [vmem:[%s3240 + $0x30] sm:$0xf]
      %v3254 = vld [vmem:[%s3240 + $0x34] sm:$0xf]
      %v3255 = vld [vmem:[%s3240 + $0x38] sm:$0xf]
      %v3256 = vld [vmem:[%s3240 + $0x3c] sm:$0xf]
      %v3273 = vunpack.c.l.b16 %v3241
      %v3274 = vunpack.c.l.b16 %v3242
      %v3275 = vunpack.c.l.b16 %v3243
      %v3276 = vunpack.c.l.b16 %v3244
      %v3277 = vunpack.c.l.b16 %v3245
      %v3278 = vunpack.c.l.b16 %v3246
      %v3279 = vunpack.c.l.b16 %v3247
      %v3280 = vunpack.c.l.b16 %v3248
      %v3281 = vunpack.c.l.b16 %v3249
      %v3282 = vunpack.c.l.b16 %v3250
      %v3283 = vunpack.c.l.b16 %v3251
      %v3284 = vunpack.c.l.b16 %v3252
      %v3285 = vunpack.c.l.b16 %v3253
      %v3286 = vunpack.c.l.b16 %v3254
      %v3287 = vunpack.c.l.b16 %v3255
      %v3288 = vunpack.c.l.b16 %v3256
      %v3289 = vpack.c.b16 %v3274, %v3273
      %v3290 = vpack.c.b16 %v3276, %v3275
      %v3291 = vpack.c.b16 %v3278, %v3277
      %v3292 = vpack.c.b16 %v3280, %v3279
      %v3293 = vpack.c.b16 %v3282, %v3281
      %v3294 = vpack.c.b16 %v3284, %v3283
      %v3295 = vpack.c.b16 %v3286, %v3285
      %v3296 = vpack.c.b16 %v3288, %v3287
      %3305 = vmatprep.subr.bf16.mxu0 0
      %3306 = vmatpush1.bf16.msra.mxu0 %v3296
      %3307 = vmatprep.subr.bf16.mxu0 0
      %3308 = vmatpush1.bf16.msra.mxu0 %v3295
      %3309 = vmatprep.subr.bf16.mxu0 0
      %3310 = vmatpush1.bf16.msra.mxu0 %v3294
      %3311 = vmatprep.subr.bf16.mxu0 0
      %3312 = vmatpush1.bf16.msra.mxu0 %v3293
      %3313 = vmatprep.subr.bf16.mxu0 0
      %3314 = vmatpush1.bf16.msra.mxu0 %v3292
      %3315 = vmatprep.subr.bf16.mxu0 0
      %3316 = vmatpush1.bf16.msra.mxu0 %v3291
      %3317 = vmatprep.subr.bf16.mxu0 0
      %3318 = vmatpush1.bf16.msra.mxu0 %v3290
      %3319 = vmatprep.subr.bf16.mxu0 0
      %3320 = vmatpush1.bf16.msra.mxu0 %v3289
      %3321 = vmatprep.subr.bf16.mxu0 0
      %3322 = vmatpush2.bf16.msra.mxu0 0
      %3323 = vmatprep.subr.bf16.mxu0 0
      %3324 = vmatpush2.bf16.msra.mxu0 0
      %3325 = vmatprep.subr.bf16.mxu0 0
      %3326 = vmatpush2.bf16.msra.mxu0 0
      %3327 = vmatprep.subr.bf16.mxu0 0
      %3328 = vmatpush2.bf16.msra.mxu0 0
      %3329 = vmatprep.subr.bf16.mxu0 0
      %3330 = vmatpush2.bf16.msra.mxu0 0
      %3331 = vmatprep.subr.bf16.mxu0 0
      %3332 = vmatpush2.bf16.msra.mxu0 0
      %3333 = vmatprep.subr.bf16.mxu0 0
      %3334 = vmatpush2.bf16.msra.mxu0 0
      %3335 = vmatprep.subr.bf16.mxu0 0
      %3336 = vmatpush2.bf16.msra.mxu0 0
      %3337 = vmatprep.mubr.bf16.mxu0 0
      %3338 = vmatmul.mubr.bf16.gmra.mxu0 %v3239
      %v3339 = vpop.f32.mrf.mxu0
      %v3340 = vadd.f32 0.0, %v3339
      %v3341 = vpop.f32.mrf.mxu0
      %v3342 = vpop.f32.mrf.mxu0
      %v3343 = vadd.f32 0.0, %v3342
      %v3344 = vpop.f32.mrf.mxu0
      %3345 = vdwg.mxu0
      %v3346 = vadd.f32 %v3217, %v3340
      %v3347 = vadd.f32 %v3218, %v3343
      %v3348 = vpack.c.bf16 %v2810, %v2807
      %s3349 = scalar_lea.vmem %s7, 256
      %v3350 = vld [vmem:[%s3349] sm:$0xf]
      %v3351 = vld [vmem:[%s3349 + $0x4] sm:$0xf]
      %v3352 = vld [vmem:[%s3349 + $0x8] sm:$0xf]
      %v3353 = vld [vmem:[%s3349 + $0xc] sm:$0xf]
      %v3354 = vld [vmem:[%s3349 + $0x10] sm:$0xf]
      %v3355 = vld [vmem:[%s3349 + $0x14] sm:$0xf]
      %v3356 = vld [vmem:[%s3349 + $0x18] sm:$0xf]
      %v3357 = vld [vmem:[%s3349 + $0x1c] sm:$0xf]
      %v3358 = vld [vmem:[%s3349 + $0x20] sm:$0xf]
      %v3359 = vld [vmem:[%s3349 + $0x24] sm:$0xf]
      %v3360 = vld [vmem:[%s3349 + $0x28] sm:$0xf]
      %v3361 = vld [vmem:[%s3349 + $0x2c] sm:$0xf]
      %v3362 = vld [vmem:[%s3349 + $0x30] sm:$0xf]
      %v3363 = vld [vmem:[%s3349 + $0x34] sm:$0xf]
      %v3364 = vld [vmem:[%s3349 + $0x38] sm:$0xf]
      %v3365 = vld [vmem:[%s3349 + $0x3c] sm:$0xf]
      %v3382 = vunpack.c.l.b16 %v3350
      %v3383 = vunpack.c.l.b16 %v3351
      %v3384 = vunpack.c.l.b16 %v3352
      %v3385 = vunpack.c.l.b16 %v3353
      %v3386 = vunpack.c.l.b16 %v3354
      %v3387 = vunpack.c.l.b16 %v3355
      %v3388 = vunpack.c.l.b16 %v3356
      %v3389 = vunpack.c.l.b16 %v3357
      %v3390 = vunpack.c.l.b16 %v3358
      %v3391 = vunpack.c.l.b16 %v3359
      %v3392 = vunpack.c.l.b16 %v3360
      %v3393 = vunpack.c.l.b16 %v3361
      %v3394 = vunpack.c.l.b16 %v3362
      %v3395 = vunpack.c.l.b16 %v3363
      %v3396 = vunpack.c.l.b16 %v3364
      %v3397 = vunpack.c.l.b16 %v3365
      %v3398 = vpack.c.b16 %v3383, %v3382
      %v3399 = vpack.c.b16 %v3385, %v3384
      %v3400 = vpack.c.b16 %v3387, %v3386
      %v3401 = vpack.c.b16 %v3389, %v3388
      %v3402 = vpack.c.b16 %v3391, %v3390
      %v3403 = vpack.c.b16 %v3393, %v3392
      %v3404 = vpack.c.b16 %v3395, %v3394
      %v3405 = vpack.c.b16 %v3397, %v3396
      %3414 = vmatprep.subr.bf16.mxu0 0
      %3415 = vmatpush1.bf16.msra.mxu0 %v3405
      %3416 = vmatprep.subr.bf16.mxu0 0
      %3417 = vmatpush1.bf16.msra.mxu0 %v3404
      %3418 = vmatprep.subr.bf16.mxu0 0
      %3419 = vmatpush1.bf16.msra.mxu0 %v3403
      %3420 = vmatprep.subr.bf16.mxu0 0
      %3421 = vmatpush1.bf16.msra.mxu0 %v3402
      %3422 = vmatprep.subr.bf16.mxu0 0
      %3423 = vmatpush1.bf16.msra.mxu0 %v3401
      %3424 = vmatprep.subr.bf16.mxu0 0
      %3425 = vmatpush1.bf16.msra.mxu0 %v3400
      %3426 = vmatprep.subr.bf16.mxu0 0
      %3427 = vmatpush1.bf16.msra.mxu0 %v3399
      %3428 = vmatprep.subr.bf16.mxu0 0
      %3429 = vmatpush1.bf16.msra.mxu0 %v3398
      %3430 = vmatprep.subr.bf16.mxu0 0
      %3431 = vmatpush2.bf16.msra.mxu0 0
      %3432 = vmatprep.subr.bf16.mxu0 0
      %3433 = vmatpush2.bf16.msra.mxu0 0
      %3434 = vmatprep.subr.bf16.mxu0 0
      %3435 = vmatpush2.bf16.msra.mxu0 0
      %3436 = vmatprep.subr.bf16.mxu0 0
      %3437 = vmatpush2.bf16.msra.mxu0 0
      %3438 = vmatprep.subr.bf16.mxu0 0
      %3439 = vmatpush2.bf16.msra.mxu0 0
      %3440 = vmatprep.subr.bf16.mxu0 0
      %3441 = vmatpush2.bf16.msra.mxu0 0
      %3442 = vmatprep.subr.bf16.mxu0 0
      %3443 = vmatpush2.bf16.msra.mxu0 0
      %3444 = vmatprep.subr.bf16.mxu0 0
      %3445 = vmatpush2.bf16.msra.mxu0 0
      %3446 = vmatprep.mubr.bf16.mxu0 0
      %3447 = vmatmul.mubr.bf16.gmra.mxu0 %v3348
      %v3448 = vpop.f32.mrf.mxu0
      %v3449 = vadd.f32 0.0, %v3448
      %v3450 = vpop.f32.mrf.mxu0
      %v3451 = vpop.f32.mrf.mxu0
      %v3452 = vadd.f32 0.0, %v3451
      %v3453 = vpop.f32.mrf.mxu0
      %3454 = vdwg.mxu0
      %v3455 = vadd.f32 %v3346, %v3449
      %v3456 = vadd.f32 %v3347, %v3452
      %v3457 = vrot.slane %v2807, 1
      %v3458 = vrot.slane %v2810, 1
      %v3459 = vsel %vm1426, %v3457, %v3458
      %v3460 = vsel %vm1426, %v3458, %v3457
      %vm3461 = vmand %vm3227, %vm3096
      %vm3462 = vmand %vm3228, %vm3097
      %vm3463 = vmand %vm3461, %vm3100
      %vm3464 = vmand %vm3462, %vm3101
      %v3465 = vsel %vm3463, 1, 0
      %v3466 = vsel %vm3464, 1, 0
      %vm3467 = vcmp.eq.s32.totalorder %v3465, 1
      %vm3468 = vcmp.eq.s32.totalorder %v3466, 1
      %v3469 = vsel %vm3467, %v3459, 0.0
      %v3470 = vsel %vm3468, %v3460, 0.0
      %v3471 = vpack.c.bf16 %v3470, %v3469
      %s3472 = scalar_lea.vmem %s7, 320
      %v3473 = vld [vmem:[%s3472] sm:$0xf]
      %v3474 = vld [vmem:[%s3472 + $0x4] sm:$0xf]
      %v3475 = vld [vmem:[%s3472 + $0x8] sm:$0xf]
      %v3476 = vld [vmem:[%s3472 + $0xc] sm:$0xf]
      %v3477 = vld [vmem:[%s3472 + $0x10] sm:$0xf]
      %v3478 = vld [vmem:[%s3472 + $0x14] sm:$0xf]
      %v3479 = vld [vmem:[%s3472 + $0x18] sm:$0xf]
      %v3480 = vld [vmem:[%s3472 + $0x1c] sm:$0xf]
      %v3481 = vld [vmem:[%s3472 + $0x20] sm:$0xf]
      %v3482 = vld [vmem:[%s3472 + $0x24] sm:$0xf]
      %v3483 = vld [vmem:[%s3472 + $0x28] sm:$0xf]
      %v3484 = vld [vmem:[%s3472 + $0x2c] sm:$0xf]
      %v3485 = vld [vmem:[%s3472 + $0x30] sm:$0xf]
      %v3486 = vld [vmem:[%s3472 + $0x34] sm:$0xf]
      %v3487 = vld [vmem:[%s3472 + $0x38] sm:$0xf]
      %v3488 = vld [vmem:[%s3472 + $0x3c] sm:$0xf]
      %v3505 = vunpack.c.l.b16 %v3473
      %v3506 = vunpack.c.l.b16 %v3474
      %v3507 = vunpack.c.l.b16 %v3475
      %v3508 = vunpack.c.l.b16 %v3476
      %v3509 = vunpack.c.l.b16 %v3477
      %v3510 = vunpack.c.l.b16 %v3478
      %v3511 = vunpack.c.l.b16 %v3479
      %v3512 = vunpack.c.l.b16 %v3480
      %v3513 = vunpack.c.l.b16 %v3481
      %v3514 = vunpack.c.l.b16 %v3482
      %v3515 = vunpack.c.l.b16 %v3483
      %v3516 = vunpack.c.l.b16 %v3484
      %v3517 = vunpack.c.l.b16 %v3485
      %v3518 = vunpack.c.l.b16 %v3486
      %v3519 = vunpack.c.l.b16 %v3487
      %v3520 = vunpack.c.l.b16 %v3488
      %v3521 = vpack.c.b16 %v3506, %v3505
      %v3522 = vpack.c.b16 %v3508, %v3507
      %v3523 = vpack.c.b16 %v3510, %v3509
      %v3524 = vpack.c.b16 %v3512, %v3511
      %v3525 = vpack.c.b16 %v3514, %v3513
      %v3526 = vpack.c.b16 %v3516, %v3515
      %v3527 = vpack.c.b16 %v3518, %v3517
      %v3528 = vpack.c.b16 %v3520, %v3519
      %3537 = vmatprep.subr.bf16.mxu0 0
      %3538 = vmatpush1.bf16.msra.mxu0 %v3528
      %3539 = vmatprep.subr.bf16.mxu0 0
      %3540 = vmatpush1.bf16.msra.mxu0 %v3527
      %3541 = vmatprep.subr.bf16.mxu0 0
      %3542 = vmatpush1.bf16.msra.mxu0 %v3526
      %3543 = vmatprep.subr.bf16.mxu0 0
      %3544 = vmatpush1.bf16.msra.mxu0 %v3525
      %3545 = vmatprep.subr.bf16.mxu0 0
      %3546 = vmatpush1.bf16.msra.mxu0 %v3524
      %3547 = vmatprep.subr.bf16.mxu0 0
      %3548 = vmatpush1.bf16.msra.mxu0 %v3523
      %3549 = vmatprep.subr.bf16.mxu0 0
      %3550 = vmatpush1.bf16.msra.mxu0 %v3522
      %3551 = vmatprep.subr.bf16.mxu0 0
      %3552 = vmatpush1.bf16.msra.mxu0 %v3521
      %3553 = vmatprep.subr.bf16.mxu0 0
      %3554 = vmatpush2.bf16.msra.mxu0 0
      %3555 = vmatprep.subr.bf16.mxu0 0
      %3556 = vmatpush2.bf16.msra.mxu0 0
      %3557 = vmatprep.subr.bf16.mxu0 0
      %3558 = vmatpush2.bf16.msra.mxu0 0
      %3559 = vmatprep.subr.bf16.mxu0 0
      %3560 = vmatpush2.bf16.msra.mxu0 0
      %3561 = vmatprep.subr.bf16.mxu0 0
      %3562 = vmatpush2.bf16.msra.mxu0 0
      %3563 = vmatprep.subr.bf16.mxu0 0
      %3564 = vmatpush2.bf16.msra.mxu0 0
      %3565 = vmatprep.subr.bf16.mxu0 0
      %3566 = vmatpush2.bf16.msra.mxu0 0
      %3567 = vmatprep.subr.bf16.mxu0 0
      %3568 = vmatpush2.bf16.msra.mxu0 0
      %3569 = vmatprep.mubr.bf16.mxu0 0
      %3570 = vmatmul.mubr.bf16.gmra.mxu0 %v3471
      %v3571 = vpop.f32.mrf.mxu0
      %v3572 = vadd.f32 0.0, %v3571
      %v3573 = vpop.f32.mrf.mxu0
      %v3574 = vpop.f32.mrf.mxu0
      %v3575 = vadd.f32 0.0, %v3574
      %v3576 = vpop.f32.mrf.mxu0
      %3577 = vdwg.mxu0
      %v3578 = vadd.f32 %v3455, %v3572
      %v3579 = vadd.f32 %v3456, %v3575
      %v3580 = vadd.s32 %v2815, 1
      %v3581 = vadd.s32 %v2816, 1
      %vm3582 = vcmp.ge.s32.totalorder %v3580, 0
      %vm3583 = vcmp.ge.s32.totalorder %v3581, 0
      %vm3584 = vcmp.lt.s32.totalorder %v3580, 4
      %vm3585 = vcmp.lt.s32.totalorder %v3581, 4
      %vm3586 = vmand %vm3582, %vm3584
      %vm3587 = vmand %vm3583, %vm3585
      %vm3588 = vmand %vm3586, %vm2839
      %vm3589 = vmand %vm3587, %vm2840
      %vm3590 = vmand %vm3588, %vm2843
      %vm3591 = vmand %vm3589, %vm2844
      %v3592 = vsel %vm3590, 1, 0
      %v3593 = vsel %vm3591, 1, 0
      %vm3594 = vcmp.eq.s32.totalorder %v3592, 1
      %vm3595 = vcmp.eq.s32.totalorder %v3593, 1
      %v3596 = vsel %vm3594, %v2827, 0.0
      %v3597 = vsel %vm3595, %v2828, 0.0
      %v3598 = vpack.c.bf16 %v3597, %v3596
      %s3599 = scalar_lea.vmem %s7, 384
      %v3600 = vld [vmem:[%s3599] sm:$0xf]
      %v3601 = vld [vmem:[%s3599 + $0x4] sm:$0xf]
      %v3602 = vld [vmem:[%s3599 + $0x8] sm:$0xf]
      %v3603 = vld [vmem:[%s3599 + $0xc] sm:$0xf]
      %v3604 = vld [vmem:[%s3599 + $0x10] sm:$0xf]
      %v3605 = vld [vmem:[%s3599 + $0x14] sm:$0xf]
      %v3606 = vld [vmem:[%s3599 + $0x18] sm:$0xf]
      %v3607 = vld [vmem:[%s3599 + $0x1c] sm:$0xf]
      %v3608 = vld [vmem:[%s3599 + $0x20] sm:$0xf]
      %v3609 = vld [vmem:[%s3599 + $0x24] sm:$0xf]
      %v3610 = vld [vmem:[%s3599 + $0x28] sm:$0xf]
      %v3611 = vld [vmem:[%s3599 + $0x2c] sm:$0xf]
      %v3612 = vld [vmem:[%s3599 + $0x30] sm:$0xf]
      %v3613 = vld [vmem:[%s3599 + $0x34] sm:$0xf]
      %v3614 = vld [vmem:[%s3599 + $0x38] sm:$0xf]
      %v3615 = vld [vmem:[%s3599 + $0x3c] sm:$0xf]
      %v3632 = vunpack.c.l.b16 %v3600
      %v3633 = vunpack.c.l.b16 %v3601
      %v3634 = vunpack.c.l.b16 %v3602
      %v3635 = vunpack.c.l.b16 %v3603
      %v3636 = vunpack.c.l.b16 %v3604
      %v3637 = vunpack.c.l.b16 %v3605
      %v3638 = vunpack.c.l.b16 %v3606
      %v3639 = vunpack.c.l.b16 %v3607
      %v3640 = vunpack.c.l.b16 %v3608
      %v3641 = vunpack.c.l.b16 %v3609
      %v3642 = vunpack.c.l.b16 %v3610
      %v3643 = vunpack.c.l.b16 %v3611
      %v3644 = vunpack.c.l.b16 %v3612
      %v3645 = vunpack.c.l.b16 %v3613
      %v3646 = vunpack.c.l.b16 %v3614
      %v3647 = vunpack.c.l.b16 %v3615
      %v3648 = vpack.c.b16 %v3633, %v3632
      %v3649 = vpack.c.b16 %v3635, %v3634
      %v3650 = vpack.c.b16 %v3637, %v3636
      %v3651 = vpack.c.b16 %v3639, %v3638
      %v3652 = vpack.c.b16 %v3641, %v3640
      %v3653 = vpack.c.b16 %v3643, %v3642
      %v3654 = vpack.c.b16 %v3645, %v3644
      %v3655 = vpack.c.b16 %v3647, %v3646
      %3664 = vmatprep.subr.bf16.mxu0 0
      %3665 = vmatpush1.bf16.msra.mxu0 %v3655
      %3666 = vmatprep.subr.bf16.mxu0 0
      %3667 = vmatpush1.bf16.msra.mxu0 %v3654
      %3668 = vmatprep.subr.bf16.mxu0 0
      %3669 = vmatpush1.bf16.msra.mxu0 %v3653
      %3670 = vmatprep.subr.bf16.mxu0 0
      %3671 = vmatpush1.bf16.msra.mxu0 %v3652
      %3672 = vmatprep.subr.bf16.mxu0 0
      %3673 = vmatpush1.bf16.msra.mxu0 %v3651
      %3674 = vmatprep.subr.bf16.mxu0 0
      %3675 = vmatpush1.bf16.msra.mxu0 %v3650
      %3676 = vmatprep.subr.bf16.mxu0 0
      %3677 = vmatpush1.bf16.msra.mxu0 %v3649
      %3678 = vmatprep.subr.bf16.mxu0 0
      %3679 = vmatpush1.bf16.msra.mxu0 %v3648
      %3680 = vmatprep.subr.bf16.mxu0 0
      %3681 = vmatpush2.bf16.msra.mxu0 0
      %3682 = vmatprep.subr.bf16.mxu0 0
      %3683 = vmatpush2.bf16.msra.mxu0 0
      %3684 = vmatprep.subr.bf16.mxu0 0
      %3685 = vmatpush2.bf16.msra.mxu0 0
      %3686 = vmatprep.subr.bf16.mxu0 0
      %3687 = vmatpush2.bf16.msra.mxu0 0
      %3688 = vmatprep.subr.bf16.mxu0 0
      %3689 = vmatpush2.bf16.msra.mxu0 0
      %3690 = vmatprep.subr.bf16.mxu0 0
      %3691 = vmatpush2.bf16.msra.mxu0 0
      %3692 = vmatprep.subr.bf16.mxu0 0
      %3693 = vmatpush2.bf16.msra.mxu0 0
      %3694 = vmatprep.subr.bf16.mxu0 0
      %3695 = vmatpush2.bf16.msra.mxu0 0
      %3696 = vmatprep.mubr.bf16.mxu0 0
      %3697 = vmatmul.mubr.bf16.gmra.mxu0 %v3598
      %v3698 = vpop.f32.mrf.mxu0
      %v3699 = vadd.f32 0.0, %v3698
      %v3700 = vpop.f32.mrf.mxu0
      %v3701 = vpop.f32.mrf.mxu0
      %v3702 = vadd.f32 0.0, %v3701
      %v3703 = vpop.f32.mrf.mxu0
      %3704 = vdwg.mxu0
      %v3705 = vadd.f32 %v3578, %v3699
      %v3706 = vadd.f32 %v3579, %v3702
      %vm3707 = vmand %vm3586, %vm2966
      %vm3708 = vmand %vm3587, %vm2967
      %vm3709 = vmand %vm3707, %vm2970
      %vm3710 = vmand %vm3708, %vm2971
      %v3711 = vsel %vm3709, 1, 0
      %v3712 = vsel %vm3710, 1, 0
      %vm3713 = vcmp.eq.s32.totalorder %v3711, 1
      %vm3714 = vcmp.eq.s32.totalorder %v3712, 1
      %v3715 = vsel %vm3713, %v2964, 0.0
      %v3716 = vsel %vm3714, %v2965, 0.0
      %v3717 = vpack.c.bf16 %v3716, %v3715
      %s3718 = scalar_lea.vmem %s7, 448
      %v3719 = vld [vmem:[%s3718] sm:$0xf]
      %v3720 = vld [vmem:[%s3718 + $0x4] sm:$0xf]
      %v3721 = vld [vmem:[%s3718 + $0x8] sm:$0xf]
      %v3722 = vld [vmem:[%s3718 + $0xc] sm:$0xf]
      %v3723 = vld [vmem:[%s3718 + $0x10] sm:$0xf]
      %v3724 = vld [vmem:[%s3718 + $0x14] sm:$0xf]
      %v3725 = vld [vmem:[%s3718 + $0x18] sm:$0xf]
      %v3726 = vld [vmem:[%s3718 + $0x1c] sm:$0xf]
      %v3727 = vld [vmem:[%s3718 + $0x20] sm:$0xf]
      %v3728 = vld [vmem:[%s3718 + $0x24] sm:$0xf]
      %v3729 = vld [vmem:[%s3718 + $0x28] sm:$0xf]
      %v3730 = vld [vmem:[%s3718 + $0x2c] sm:$0xf]
      %v3731 = vld [vmem:[%s3718 + $0x30] sm:$0xf]
      %v3732 = vld [vmem:[%s3718 + $0x34] sm:$0xf]
      %v3733 = vld [vmem:[%s3718 + $0x38] sm:$0xf]
      %v3734 = vld [vmem:[%s3718 + $0x3c] sm:$0xf]
      %v3751 = vunpack.c.l.b16 %v3719
      %v3752 = vunpack.c.l.b16 %v3720
      %v3753 = vunpack.c.l.b16 %v3721
      %v3754 = vunpack.c.l.b16 %v3722
      %v3755 = vunpack.c.l.b16 %v3723
      %v3756 = vunpack.c.l.b16 %v3724
      %v3757 = vunpack.c.l.b16 %v3725
      %v3758 = vunpack.c.l.b16 %v3726
      %v3759 = vunpack.c.l.b16 %v3727
      %v3760 = vunpack.c.l.b16 %v3728
      %v3761 = vunpack.c.l.b16 %v3729
      %v3762 = vunpack.c.l.b16 %v3730
      %v3763 = vunpack.c.l.b16 %v3731
      %v3764 = vunpack.c.l.b16 %v3732
      %v3765 = vunpack.c.l.b16 %v3733
      %v3766 = vunpack.c.l.b16 %v3734
      %v3767 = vpack.c.b16 %v3752, %v3751
      %v3768 = vpack.c.b16 %v3754, %v3753
      %v3769 = vpack.c.b16 %v3756, %v3755
      %v3770 = vpack.c.b16 %v3758, %v3757
      %v3771 = vpack.c.b16 %v3760, %v3759
      %v3772 = vpack.c.b16 %v3762, %v3761
      %v3773 = vpack.c.b16 %v3764, %v3763
      %v3774 = vpack.c.b16 %v3766, %v3765
      %3783 = vmatprep.subr.bf16.mxu0 0
      %3784 = vmatpush1.bf16.msra.mxu0 %v3774
      %3785 = vmatprep.subr.bf16.mxu0 0
      %3786 = vmatpush1.bf16.msra.mxu0 %v3773
      %3787 = vmatprep.subr.bf16.mxu0 0
      %3788 = vmatpush1.bf16.msra.mxu0 %v3772
      %3789 = vmatprep.subr.bf16.mxu0 0
      %3790 = vmatpush1.bf16.msra.mxu0 %v3771
      %3791 = vmatprep.subr.bf16.mxu0 0
      %3792 = vmatpush1.bf16.msra.mxu0 %v3770
      %3793 = vmatprep.subr.bf16.mxu0 0
      %3794 = vmatpush1.bf16.msra.mxu0 %v3769
      %3795 = vmatprep.subr.bf16.mxu0 0
      %3796 = vmatpush1.bf16.msra.mxu0 %v3768
      %3797 = vmatprep.subr.bf16.mxu0 0
      %3798 = vmatpush1.bf16.msra.mxu0 %v3767
      %3799 = vmatprep.subr.bf16.mxu0 0
      %3800 = vmatpush2.bf16.msra.mxu0 0
      %3801 = vmatprep.subr.bf16.mxu0 0
      %3802 = vmatpush2.bf16.msra.mxu0 0
      %3803 = vmatprep.subr.bf16.mxu0 0
      %3804 = vmatpush2.bf16.msra.mxu0 0
      %3805 = vmatprep.subr.bf16.mxu0 0
      %3806 = vmatpush2.bf16.msra.mxu0 0
      %3807 = vmatprep.subr.bf16.mxu0 0
      %3808 = vmatpush2.bf16.msra.mxu0 0
      %3809 = vmatprep.subr.bf16.mxu0 0
      %3810 = vmatpush2.bf16.msra.mxu0 0
      %3811 = vmatprep.subr.bf16.mxu0 0
      %3812 = vmatpush2.bf16.msra.mxu0 0
      %3813 = vmatprep.subr.bf16.mxu0 0
      %3814 = vmatpush2.bf16.msra.mxu0 0
      %3815 = vmatprep.mubr.bf16.mxu0 0
      %3816 = vmatmul.mubr.bf16.gmra.mxu0 %v3717
      %v3817 = vpop.f32.mrf.mxu0
      %v3818 = vadd.f32 0.0, %v3817
      %v3819 = vpop.f32.mrf.mxu0
      %v3820 = vpop.f32.mrf.mxu0
      %v3821 = vadd.f32 0.0, %v3820
      %v3822 = vpop.f32.mrf.mxu0
      %3823 = vdwg.mxu0
      %v3824 = vadd.f32 %v3705, %v3818
      %v3825 = vadd.f32 %v3706, %v3821
      %vm3826 = vmand %vm3586, %vm3096
      %vm3827 = vmand %vm3587, %vm3097
      %vm3828 = vmand %vm3826, %vm3100
      %vm3829 = vmand %vm3827, %vm3101
      %v3830 = vsel %vm3828, 1, 0
      %v3831 = vsel %vm3829, 1, 0
      %vm3832 = vcmp.eq.s32.totalorder %v3830, 1
      %vm3833 = vcmp.eq.s32.totalorder %v3831, 1
      %v3834 = vsel %vm3832, %v3092, 0.0
      %v3835 = vsel %vm3833, %v3093, 0.0
      %v3836 = vpack.c.bf16 %v3835, %v3834
      %s3837 = scalar_lea.vmem %s7, 512
      %v3838 = vld [vmem:[%s3837] sm:$0xf]
      %v3839 = vld [vmem:[%s3837 + $0x4] sm:$0xf]
      %v3840 = vld [vmem:[%s3837 + $0x8] sm:$0xf]
      %v3841 = vld [vmem:[%s3837 + $0xc] sm:$0xf]
      %v3842 = vld [vmem:[%s3837 + $0x10] sm:$0xf]
      %v3843 = vld [vmem:[%s3837 + $0x14] sm:$0xf]
      %v3844 = vld [vmem:[%s3837 + $0x18] sm:$0xf]
      %v3845 = vld [vmem:[%s3837 + $0x1c] sm:$0xf]
      %v3846 = vld [vmem:[%s3837 + $0x20] sm:$0xf]
      %v3847 = vld [vmem:[%s3837 + $0x24] sm:$0xf]
      %v3848 = vld [vmem:[%s3837 + $0x28] sm:$0xf]
      %v3849 = vld [vmem:[%s3837 + $0x2c] sm:$0xf]
      %v3850 = vld [vmem:[%s3837 + $0x30] sm:$0xf]
      %v3851 = vld [vmem:[%s3837 + $0x34] sm:$0xf]
      %v3852 = vld [vmem:[%s3837 + $0x38] sm:$0xf]
      %v3853 = vld [vmem:[%s3837 + $0x3c] sm:$0xf]
      %v3870 = vunpack.c.l.b16 %v3838
      %v3871 = vunpack.c.l.b16 %v3839
      %v3872 = vunpack.c.l.b16 %v3840
      %v3873 = vunpack.c.l.b16 %v3841
      %v3874 = vunpack.c.l.b16 %v3842
      %v3875 = vunpack.c.l.b16 %v3843
      %v3876 = vunpack.c.l.b16 %v3844
      %v3877 = vunpack.c.l.b16 %v3845
      %v3878 = vunpack.c.l.b16 %v3846
      %v3879 = vunpack.c.l.b16 %v3847
      %v3880 = vunpack.c.l.b16 %v3848
      %v3881 = vunpack.c.l.b16 %v3849
      %v3882 = vunpack.c.l.b16 %v3850
      %v3883 = vunpack.c.l.b16 %v3851
      %v3884 = vunpack.c.l.b16 %v3852
      %v3885 = vunpack.c.l.b16 %v3853
      %v3886 = vpack.c.b16 %v3871, %v3870
      %v3887 = vpack.c.b16 %v3873, %v3872
      %v3888 = vpack.c.b16 %v3875, %v3874
      %v3889 = vpack.c.b16 %v3877, %v3876
      %v3890 = vpack.c.b16 %v3879, %v3878
      %v3891 = vpack.c.b16 %v3881, %v3880
      %v3892 = vpack.c.b16 %v3883, %v3882
      %v3893 = vpack.c.b16 %v3885, %v3884
      %3902 = vmatprep.subr.bf16.mxu0 0
      %3903 = vmatpush1.bf16.msra.mxu0 %v3893
      %3904 = vmatprep.subr.bf16.mxu0 0
      %3905 = vmatpush1.bf16.msra.mxu0 %v3892
      %3906 = vmatprep.subr.bf16.mxu0 0
      %3907 = vmatpush1.bf16.msra.mxu0 %v3891
      %3908 = vmatprep.subr.bf16.mxu0 0
      %3909 = vmatpush1.bf16.msra.mxu0 %v3890
      %3910 = vmatprep.subr.bf16.mxu0 0
      %3911 = vmatpush1.bf16.msra.mxu0 %v3889
      %3912 = vmatprep.subr.bf16.mxu0 0
      %3913 = vmatpush1.bf16.msra.mxu0 %v3888
      %3914 = vmatprep.subr.bf16.mxu0 0
      %3915 = vmatpush1.bf16.msra.mxu0 %v3887
      %3916 = vmatprep.subr.bf16.mxu0 0
      %3917 = vmatpush1.bf16.msra.mxu0 %v3886
      %3918 = vmatprep.subr.bf16.mxu0 0
      %3919 = vmatpush2.bf16.msra.mxu0 0
      %3920 = vmatprep.subr.bf16.mxu0 0
      %3921 = vmatpush2.bf16.msra.mxu0 0
      %3922 = vmatprep.subr.bf16.mxu0 0
      %3923 = vmatpush2.bf16.msra.mxu0 0
      %3924 = vmatprep.subr.bf16.mxu0 0
      %3925 = vmatpush2.bf16.msra.mxu0 0
      %3926 = vmatprep.subr.bf16.mxu0 0
      %3927 = vmatpush2.bf16.msra.mxu0 0
      %3928 = vmatprep.subr.bf16.mxu0 0
      %3929 = vmatpush2.bf16.msra.mxu0 0
      %3930 = vmatprep.subr.bf16.mxu0 0
      %3931 = vmatpush2.bf16.msra.mxu0 0
      %3932 = vmatprep.subr.bf16.mxu0 0
      %3933 = vmatpush2.bf16.msra.mxu0 0
      %3934 = vmatprep.mubr.bf16.mxu0 0
      %3935 = vmatmul.mubr.bf16.gmra.mxu0 %v3836
      %v3936 = vpop.f32.mrf.mxu0
      %v3937 = vadd.f32 0.0, %v3936
      %v3938 = vpop.f32.mrf.mxu0
      %v3939 = vpop.f32.mrf.mxu0
      %v3940 = vadd.f32 0.0, %v3939
      %v3941 = vpop.f32.mrf.mxu0
      %3942 = vdwg.mxu0
      %v3943 = vadd.f32 %v3824, %v3937
      %v3944 = vadd.f32 %v3825, %v3940
      %v3945 = vmax.f32 %v3943, 0.0
      %v3946 = vmax.f32 %v3944, 0.0
      %v3947 = vld [vmem:[%s9] sm:$0x3]
      %v3948 = vpack.c.bf16 %v3946, %v3945
      %vm3949 = vcmask 130048
      %v3951 = vsel %vm3949, %v3947, 0
      %3953 = vmatprep.subr.bf16.mxu0 0
      %3954 = vmatpush1.bf16.msra.mxu0 0
      %3955 = vmatprep.subr.bf16.mxu0 0
      %3956 = vmatpush1.bf16.msra.mxu0 0
      %3957 = vmatprep.subr.bf16.mxu0 0
      %3958 = vmatpush1.bf16.msra.mxu0 0
      %3959 = vmatprep.subr.bf16.mxu0 0
      %3960 = vmatpush1.bf16.msra.mxu0 0
      %3961 = vmatprep.subr.bf16.mxu0 0
      %3962 = vmatpush1.bf16.msra.mxu0 0
      %3963 = vmatprep.subr.bf16.mxu0 0
      %3964 = vmatpush1.bf16.msra.mxu0 0
      %3965 = vmatprep.subr.bf16.mxu0 0
      %3966 = vmatpush1.bf16.msra.mxu0 0
      %3967 = vmatprep.subr.bf16.mxu0 0
      %3968 = vmatpush1.bf16.msra.mxu0 %v3948
      %3969 = vmatprep.subr.bf16.mxu0 0
      %3970 = vmatpush2.bf16.msra.mxu0 0
      %3971 = vmatprep.subr.bf16.mxu0 0
      %3972 = vmatpush2.bf16.msra.mxu0 0
      %3973 = vmatprep.subr.bf16.mxu0 0
      %3974 = vmatpush2.bf16.msra.mxu0 0
      %3975 = vmatprep.subr.bf16.mxu0 0
      %3976 = vmatpush2.bf16.msra.mxu0 0
      %3977 = vmatprep.subr.bf16.mxu0 0
      %3978 = vmatpush2.bf16.msra.mxu0 0
      %3979 = vmatprep.subr.bf16.mxu0 0
      %3980 = vmatpush2.bf16.msra.mxu0 0
      %3981 = vmatprep.subr.bf16.mxu0 0
      %3982 = vmatpush2.bf16.msra.mxu0 0
      %3983 = vmatprep.subr.bf16.mxu0 0
      %3984 = vmatpush2.bf16.msra.mxu0 0
      %3985 = vmatprep.mubr.bf16.mxu0 0
      %3986 = vmatmul.mubr.bf16.gmra.mxu0 %v3951
      %v3987 = vpop.f32.mrf.mxu0
      %v3988 = vadd.f32 0.0, %v3987
      %v3989 = vpop.f32.mrf.mxu0
      %v3990 = vpop.f32.mrf.mxu0
      %v3991 = vpop.f32.mrf.mxu0
      %3992 = vdwg.mxu0
      %vm3993 = vcmask 1043456
      %v3994 = vsel %vm3993, %v3988, 0.0
      %v3995 = vrot.slane %v3994, 4
      %v3996 = vadd.f32 %v3994, %v3995
      %v3997 = vrot.slane %v3996, 2
      %v3998 = vadd.f32 %v3996, %v3997
      %v3999 = vrot.slane %v3998, 1
      %v4000 = vadd.f32 %v3998, %v3999
      %v4001 = vrcp.pop 4.0
      %v4002 = vmul.f32 %v4000, %v4001
      %v4003 = vld [vmem:[%s10] sm:$0x1]
      %v4004 = vmul.f32 %v4002, %v4003
      %vm4005 = vcmask 1040384
      %v4006 = vsel %vm4005, %v4004, 0.0
      %4007 = vadd.xlane.f32.xlu0 %v4006
      %v4008 = vpop.xlane.xlu0 %4007
      %v4009 = vld [vmem:[#allocation2] sm:$0x1]
      %v4010 = vadd.f32 %v4008, %v4009
      %vm4011 = vcmp.ge.f32.partialorder %v4010, 0.0
      %v4012 = vsub.f32 0.0, %v4010
      %v4013 = vsel %vm4011, %v4012, %v4010
      %v4014 = vmul.f32 %v4013, 1.442695
      %v4015 = vpow.pop %v4014
      %v4016 = vadd.f32 %v4015, 1.0
      %v4017 = vrcp.pop %v4016
      %v4018 = vmul.f32 1.0, %v4017
      %v4019 = vmul.f32 %v4015, %v4017
      %v4020 = vsel %vm4011, %v4018, %v4019
      %vm4021 = vcmask 0
      %4022 = vst.msk [vmem:[%s411] sm:$0x1] %vm4021, %v4020
      %p4023 = scmp.lt.s32.totalorder %s25, 1
      %s4024 = scalar_select %p4023, %s25, 1
      %s4025 = scalar_lea.vmem %s12, %s4024
      // Predicated region
      $region69: #{cgan_discriminator_forward.1} parent=67 // pred_check
        %p4026 = pneg %p300
      $region70: #{cgan_discriminator_forward.1} parent=67 // pred_check_branch
        %4028 = sbr.rel (%p4026) target = $region72
      $region71: #{cgan_discriminator_forward.1} parent=67 // pred_region
        _
      $region72: #{cgan_discriminator_forward.1} parent=67 // pred_fallthru
        _
    $region68: #{cgan_discriminator_forward.1} parent=5 // pred_fallthru
      _
    %p4029 = scmp.le.s32.totalorder 2, %s20
    // Predicated region
    $region73: #{cgan_discriminator_forward.1} parent=5 // pred_check
      %p4030 = pneg %p4029
    $region74: #{cgan_discriminator_forward.1} parent=5 // pred_check_branch
      %4032 = sbr.rel (%p4030) target = $region76
    $region75: #{cgan_discriminator_forward.1} parent=5 // pred_region
      %s4033 = ssub.s32 %s20, 2
      // Predicated region
      $region77: #{cgan_discriminator_forward.1} parent=75 // pred_check
        %p4034 = pneg %p306
      $region78: #{cgan_discriminator_forward.1} parent=75 // pred_check_branch
        %4036 = sbr.rel (%p4034) target = $region80
      $region79: #{cgan_discriminator_forward.1} parent=75 // pred_region
        %p4037 = scmp.lt.s32.totalorder %s26, 1
        %s4038 = scalar_select %p4037, %s26, 1
        %s4039 = scalar_lea.vmem %s12, %s4038
      $region80: #{cgan_discriminator_forward.1} parent=75 // pred_fallthru
        _
    $region76: #{cgan_discriminator_forward.1} parent=5 // pred_fallthru
      _
  $region6: #{cgan_discriminator_forward.1} parent=0 // loop_footer
    %s24 = sadd.s32 1, %s20
  $region7: #{cgan_discriminator_forward.1} parent=0 // loop_footer_branch
    %19 = sbr.rel target = $region3
  $region8: #{cgan_discriminator_forward.1} parent=0 // loop_exit
    _

</llo_original>
